<compile_context>
chip_gen: v7x
topology: tpu7x:2x2x1
jax: 0.10.0
libtpu: 0.0.40
codegen_flags: <defaults>
</compile_context>

<pallas_src>
import functools

import jax
import jax.numpy as jnp
import numpy as np
from jax.experimental import pallas as pl
from jax.experimental.pallas import tpu as pltpu

LN_EPS = 1e-5                 # PyTorch nn.LayerNorm default eps
SOFTPLUS_THRESHOLD = 20.0     # PyTorch nn.Softplus default (beta=1)
H2X_HIDDEN = 2048             # hard-coded in the original module's h2x head
LANE = 128


# ----------------------------- small helpers -------------------------------

def _round_up(n, m):
    return ((n + m - 1) // m) * m


def _softplus(v):
    # PyTorch Softplus(beta=1, threshold=20): x if x > 20 else log1p(exp(x))
    return jnp.where(v > SOFTPLUS_THRESHOLD,
                     v,
                     jnp.log1p(jnp.exp(jnp.minimum(v, SOFTPLUS_THRESHOLD))))


# ------------------------------- the kernel --------------------------------

def _edecoder_kernel(n_seq, h_true, z_ref, *refs):
    """Fused EDecoder forward for one batch tile.

    refs (in order):
      W_z2h, b_z2h,
      (W_seq, b_seq) * n_seq,
      W_h2x_a, b_h2x_a,        # h_dim -> 2048, plain ReLU
      W_h2x_b, b_h2x_b,        # 2048 -> x_dim
      out_ref
    Weights are bf16 (in_pad, out_pad); biases f32 (1, out_pad).
    """
    it = iter(refs)
    w0, b0 = next(it), next(it)
    seq = [(next(it), next(it)) for _ in range(n_seq)]
    wa, ba = next(it), next(it)
    wb, bb = next(it), next(it)
    out_ref = next(it)

    h_pad = w0.shape[1]

    def linear(h, w_ref, b_ref):
        # MXU bf16 x bf16 with f32 accumulation (default precision; HIGHEST
        # removed per perf review).
        return jnp.dot(h.astype(jnp.bfloat16), w_ref[...],
                       preferred_element_type=jnp.float32) + b_ref[...]

    # Lane-padding compensation for LayerNorm: padded columns are exactly zero
    # pre-LN (weight cols / bias pads are zero), so sums over the padded array
    # equal sums over the true features; divide by the true count and mask the
    # (x - mean) term on padded lanes.
    if h_pad == h_true:
        mask = None
    else:
        mask = jax.lax.broadcasted_iota(jnp.int32, (1, h_pad), 1) < h_true
    inv_n = 1.0 / float(h_true)

    def ln_relu(h):
        # LayerNorm(elementwise_affine=False), biased variance, + ReLU (f32).
        mean = jnp.sum(h, axis=-1, keepdims=True) * inv_n
        d = h - mean
        if mask is not None:
            d = jnp.where(mask, d, 0.0)
        var = jnp.sum(d * d, axis=-1, keepdims=True) * inv_n
        hn = d * jax.lax.rsqrt(var + LN_EPS)
        return jnp.maximum(hn, 0.0)

    # z2h: Linear -> LayerNorm -> ReLU
    h = ln_relu(linear(z_ref[...], w0, b0))
    # seq_nn: (num_h_layers - 1) x [Linear -> LayerNorm -> ReLU]
    for w, b in seq:
        h = ln_relu(linear(h, w, b))
    # h2x: Linear(h_dim, 2048) -> ReLU -> Linear(2048, x_dim)
    h = jnp.maximum(linear(h, wa, ba), 0.0)
    x = linear(h, wb, bb)
    # Softplus output
    out_ref[...] = _softplus(x)


# ------------------------------ python wrapper ------------------------------

def edecoder_forward(z, params, *, block_b=None):
    """Runs the fused EDecoder forward.  Returns e_feature of shape (B, x_dim)."""
    B, z_dim = z.shape
    h_dim = params["z2h"][0].shape[0]
    x_dim = params["h2x_b"][0].shape[0]
    n_seq = len(params["seq"])

    # Batch tile: >=128 when B allows, multiple of 8, and >=2 grid iterations
    # when possible so v7x's two TensorCores both get work.
    if block_b is None:
        if B >= 512:
            block_b = 256
        elif B >= 256:
            block_b = 128
        else:
            block_b = _round_up(B, 8)
    b_pad = _round_up(B, block_b)

    # Lane-pad all feature dims to multiples of 128.
    z_pad = _round_up(z_dim, LANE)
    h_pad = _round_up(h_dim, LANE)
    x_pad = _round_up(x_dim, LANE)

    def prep(w, b, in_pad, out_pad):
        # torch (out, in) -> (in, out), zero-pad, weights bf16 / bias f32 row.
        w = jnp.asarray(w, jnp.float32).T
        w = jnp.pad(w, ((0, in_pad - w.shape[0]), (0, out_pad - w.shape[1])))
        bia = jnp.pad(jnp.asarray(b, jnp.float32), (0, out_pad - b.shape[0]))
        return w.astype(jnp.bfloat16), bia.reshape(1, -1)

    flat_params = []
    flat_params += list(prep(*params["z2h"], z_pad, h_pad))
    for w, b in params["seq"]:
        flat_params += list(prep(w, b, h_pad, h_pad))
    flat_params += list(prep(*params["h2x_a"], h_pad, H2X_HIDDEN))
    flat_params += list(prep(*params["h2x_b"], H2X_HIDDEN, x_pad))

    zp = jnp.pad(jnp.asarray(z, jnp.float32),
                 ((0, b_pad - B), (0, z_pad - z_dim)))

    grid = (b_pad // block_b,)

    def batch_spec(feat):
        return pl.BlockSpec((block_b, feat), lambda i: (i, 0))

    def full_spec(arr):
        # Grid-invariant weight/bias block.  NOTE: BlockSpec pipelining still
        # double-buffers these; fine at these sizes, revisit (pl.Buffered(1)
        # or a resident VMEM scratch) before scaling hidden dims on v7x.
        return pl.BlockSpec(arr.shape, lambda i: (0, 0))

    in_specs = [batch_spec(z_pad)] + [full_spec(p) for p in flat_params]
    out_specs = batch_spec(x_pad)                      # lane-dense output slab
    out_shape = jax.ShapeDtypeStruct((b_pad, x_pad), jnp.float32)

    # Explicit VMEM budget (double-buffered I/O + weights + activation headroom).
    weight_bytes = sum(int(np.prod(p.shape)) * p.dtype.itemsize
                       for p in flat_params)
    est = (2 * block_b * z_pad * 4 + 2 * block_b * x_pad * 4
           + 2 * weight_bytes
           + 6 * block_b * max(h_pad, H2X_HIDDEN, x_pad) * 4)
    vmem_limit = int(min(max(2 * est, 32 * 1024 * 1024), 48 * 1024 * 1024))

    kernel = functools.partial(_edecoder_kernel, n_seq, h_dim)

    out = pl.pallas_call(
        kernel,
        out_shape=out_shape,
        grid_spec=pltpu.PrefetchScalarGridSpec(
            num_scalar_prefetch=0,
            grid=grid,
            in_specs=in_specs,
            out_specs=out_specs,
        ),
        compiler_params=pltpu.CompilerParams(
            dimension_semantics=("parallel",),
            vmem_limit_bytes=vmem_limit),
    )(zp, *flat_params)

    return out[:B, :x_dim]


# ------------------------- parameter initialization -------------------------

def init_params(key, num_h_layers, z_dim, h_dim, x_dim):
    """Deterministic init mimicking nn.Linear defaults (uniform +/- 1/sqrt(fan_in))."""
    def linear_init(k, in_dim, out_dim):
        kw, kb = jax.random.split(k)
        bound = 1.0 / np.sqrt(in_dim)
        w = jax.random.uniform(kw, (out_dim, in_dim), jnp.float32, -bound, bound)
        b = jax.random.uniform(kb, (out_dim,), jnp.float32, -bound, bound)
        return w, b

    keys = iter(jax.random.split(key, num_h_layers + 3))
    z2h = linear_init(next(keys), z_dim, h_dim)
    seq = [linear_init(next(keys), h_dim, h_dim) for _ in range(num_h_layers - 1)]
    h2x_a = linear_init(next(keys), h_dim, H2X_HIDDEN)
    h2x_b = linear_init(next(keys), H2X_HIDDEN, x_dim)
    return dict(z2h=z2h, seq=seq, h2x_a=h2x_a, h2x_b=h2x_b)


# ------------------------------ pure-JAX reference ---------------------------

def edecoder_reference(z, params):
    """Same math as the kernel (bf16 matmul operands, f32 accumulate/LN)."""
    def linear(h, wb):
        w, b = wb
        return jnp.dot(h.astype(jnp.bfloat16),
                       jnp.asarray(w, jnp.float32).T.astype(jnp.bfloat16),
                       preferred_element_type=jnp.float32) \
               + jnp.asarray(b, jnp.float32)

    def ln_relu(h):
        m = jnp.mean(h, axis=-1, keepdims=True)
        d = h - m
        v = jnp.mean(d * d, axis=-1, keepdims=True)
        return jnp.maximum(d * jax.lax.rsqrt(v + LN_EPS), 0.0)

    h = ln_relu(linear(z, params["z2h"]))
    for wb in params["seq"]:
        h = ln_relu(linear(h, wb))
    h = jnp.maximum(linear(h, params["h2x_a"]), 0.0)
    x = linear(h, params["h2x_b"])
    return _softplus(x)


# ------------------------------------ main -----------------------------------

if __name__ == "__main__":
    # Small shapes consistent with the module's forward (the 2048-wide hidden
    # in h2x is hard-coded by the module itself).
    B = 256
    num_h_layers = 2
    z_dim = 16
    h_dim = 64
    x_dim = 100

    key = jax.random.PRNGKey(0)
    k_param, k_z = jax.random.split(key)

    params = init_params(k_param, num_h_layers, z_dim, h_dim, x_dim)
    z = jax.random.normal(k_z, (B, z_dim), jnp.float32)

    # Default block_b -> 128 here: lane-dense tiles and a 2-step parallel grid.
    e_feature = edecoder_forward(z, params)
    jax.block_until_ready(e_feature)

    e_ref = edecoder_reference(z, params)
    np.testing.assert_allclose(np.asarray(e_feature), np.asarray(e_ref),
                               rtol=1e-2, atol=5e-3)

    print("KERNEL_OK")
</pallas_src>

<mosaic_0001>
module attributes {stable_mosaic.version = 11 : i64} {
  func.func @_edecoder_kernel(%arg0: i32, %arg1: memref<128x128xf32, #tpu.memory_space<vmem>>, %arg2: memref<128x128xbf16, #tpu.memory_space<vmem>>, %arg3: memref<1x128xf32, #tpu.memory_space<vmem>>, %arg4: memref<128x128xbf16, #tpu.memory_space<vmem>>, %arg5: memref<1x128xf32, #tpu.memory_space<vmem>>, %arg6: memref<128x2048xbf16, #tpu.memory_space<vmem>>, %arg7: memref<1x2048xf32, #tpu.memory_space<vmem>>, %arg8: memref<2048x128xbf16, #tpu.memory_space<vmem>>, %arg9: memref<1x128xf32, #tpu.memory_space<vmem>>, %arg10: memref<128x128xf32, #tpu.memory_space<vmem>>) attributes {dimension_semantics = [#tpu.dimension_semantics<parallel>], iteration_bounds = array<i64: 2>, scalar_prefetch = 0 : i64, scratch_operands = 0 : i64, tpu.core_type = #tpu.core_type<tc>, window_params = [{transform_indices = @transform_0, window_bounds = array<i64: 128, 128>}, {pipeline_mode = #tpu.pipeline_mode<synchronous>, transform_indices = @transform_1, window_bounds = array<i64: 128, 128>}, {pipeline_mode = #tpu.pipeline_mode<synchronous>, transform_indices = @transform_2, window_bounds = array<i64: 1, 128>}, {pipeline_mode = #tpu.pipeline_mode<synchronous>, transform_indices = @transform_3, window_bounds = array<i64: 128, 128>}, {pipeline_mode = #tpu.pipeline_mode<synchronous>, transform_indices = @transform_4, window_bounds = array<i64: 1, 128>}, {pipeline_mode = #tpu.pipeline_mode<synchronous>, transform_indices = @transform_5, window_bounds = array<i64: 128, 2048>}, {pipeline_mode = #tpu.pipeline_mode<synchronous>, transform_indices = @transform_6, window_bounds = array<i64: 1, 2048>}, {pipeline_mode = #tpu.pipeline_mode<synchronous>, transform_indices = @transform_7, window_bounds = array<i64: 2048, 128>}, {pipeline_mode = #tpu.pipeline_mode<synchronous>, transform_indices = @transform_8, window_bounds = array<i64: 1, 128>}, {transform_indices = @transform_9, window_bounds = array<i64: 128, 128>}]} {
    %0 = tpu.iota {dimensions = array<i32: 1>} : vector<1x128xi32>
    %c64_i32 = arith.constant 64 : i32
    %1 = vector.broadcast %c64_i32 : i32 to vector<1x128xi32>
    %2 = arith.cmpi slt, %0, %1 : vector<1x128xi32>
    %c0 = arith.constant 0 : index
    %c0_0 = arith.constant 0 : index
    %3 = vector.load %arg1[%c0, %c0_0] : memref<128x128xf32, #tpu.memory_space<vmem>>, vector<128x128xf32>
    %4 = arith.truncf %3 : vector<128x128xf32> to vector<128x128xbf16>
    %c0_1 = arith.constant 0 : index
    %c0_2 = arith.constant 0 : index
    %5 = vector.load %arg2[%c0_1, %c0_2] : memref<128x128xbf16, #tpu.memory_space<vmem>>, vector<128x128xbf16>
    %cst = arith.constant dense<0.000000e+00> : vector<128x128xf32>
    %6 = tpu.matmul %4, %5, %cst {dimension_numbers = #tpu.dot_dimension_numbers<[1], [0], [0], [1], [0, 0, 1, 1], [], []>} : vector<128x128xbf16>, vector<128x128xbf16>, vector<128x128xf32> -> vector<128x128xf32>
    %c0_3 = arith.constant 0 : index
    %c0_4 = arith.constant 0 : index
    %7 = vector.load %arg3[%c0_3, %c0_4] : memref<1x128xf32, #tpu.memory_space<vmem>>, vector<1x128xf32>
    %8 = vector.broadcast %7 : vector<1x128xf32> to vector<128x128xf32>
    %9 = arith.addf %6, %8 : vector<128x128xf32>
    %cst_5 = arith.constant dense<0.000000e+00> : vector<128xf32>
    %10 = vector.multi_reduction <add>, %9, %cst_5 [1] : vector<128x128xf32> to vector<128xf32>
    %11 = vector.shape_cast %10 : vector<128xf32> to vector<128x1xf32>
    %cst_6 = arith.constant 1.562500e-02 : f32
    %12 = vector.broadcast %cst_6 : f32 to vector<128x1xf32>
    %13 = arith.mulf %11, %12 : vector<128x1xf32>
    %14 = vector.broadcast %13 : vector<128x1xf32> to vector<128x128xf32>
    %15 = arith.subf %9, %14 : vector<128x128xf32>
    %cst_7 = arith.constant 0.000000e+00 : f32
    %16 = vector.shape_cast %2 : vector<1x128xi1> to vector<1x128xi1>
    %17 = vector.broadcast %16 : vector<1x128xi1> to vector<128x128xi1>
    %18 = vector.broadcast %cst_7 : f32 to vector<128x128xf32>
    %19 = arith.select %17, %15, %18 : vector<128x128xi1>, vector<128x128xf32>
    %20 = arith.mulf %19, %19 : vector<128x128xf32>
    %cst_8 = arith.constant dense<0.000000e+00> : vector<128xf32>
    %21 = vector.multi_reduction <add>, %20, %cst_8 [1] : vector<128x128xf32> to vector<128xf32>
    %22 = vector.shape_cast %21 : vector<128xf32> to vector<128x1xf32>
    %cst_9 = arith.constant 1.562500e-02 : f32
    %23 = vector.broadcast %cst_9 : f32 to vector<128x1xf32>
    %24 = arith.mulf %22, %23 : vector<128x1xf32>
    %cst_10 = arith.constant 9.99999974E-6 : f32
    %25 = vector.broadcast %cst_10 : f32 to vector<128x1xf32>
    %26 = arith.addf %24, %25 : vector<128x1xf32>
    %27 = math.rsqrt %26 : vector<128x1xf32>
    %28 = vector.broadcast %27 : vector<128x1xf32> to vector<128x128xf32>
    %29 = arith.mulf %19, %28 : vector<128x128xf32>
    %cst_11 = arith.constant 0.000000e+00 : f32
    %30 = vector.broadcast %cst_11 : f32 to vector<128x128xf32>
    %31 = arith.maximumf %29, %30 : vector<128x128xf32>
    %32 = arith.truncf %31 : vector<128x128xf32> to vector<128x128xbf16>
    %c0_12 = arith.constant 0 : index
    %c0_13 = arith.constant 0 : index
    %33 = vector.load %arg4[%c0_12, %c0_13] : memref<128x128xbf16, #tpu.memory_space<vmem>>, vector<128x128xbf16>
    %cst_14 = arith.constant dense<0.000000e+00> : vector<128x128xf32>
    %34 = tpu.matmul %32, %33, %cst_14 {dimension_numbers = #tpu.dot_dimension_numbers<[1], [0], [0], [1], [0, 0, 1, 1], [], []>} : vector<128x128xbf16>, vector<128x128xbf16>, vector<128x128xf32> -> vector<128x128xf32>
    %c0_15 = arith.constant 0 : index
    %c0_16 = arith.constant 0 : index
    %35 = vector.load %arg5[%c0_15, %c0_16] : memref<1x128xf32, #tpu.memory_space<vmem>>, vector<1x128xf32>
    %36 = vector.broadcast %35 : vector<1x128xf32> to vector<128x128xf32>
    %37 = arith.addf %34, %36 : vector<128x128xf32>
    %cst_17 = arith.constant dense<0.000000e+00> : vector<128xf32>
    %38 = vector.multi_reduction <add>, %37, %cst_17 [1] : vector<128x128xf32> to vector<128xf32>
    %39 = vector.shape_cast %38 : vector<128xf32> to vector<128x1xf32>
    %cst_18 = arith.constant 1.562500e-02 : f32
    %40 = vector.broadcast %cst_18 : f32 to vector<128x1xf32>
    %41 = arith.mulf %39, %40 : vector<128x1xf32>
    %42 = vector.broadcast %41 : vector<128x1xf32> to vector<128x128xf32>
    %43 = arith.subf %37, %42 : vector<128x128xf32>
    %cst_19 = arith.constant 0.000000e+00 : f32
    %44 = vector.shape_cast %2 : vector<1x128xi1> to vector<1x128xi1>
    %45 = vector.broadcast %44 : vector<1x128xi1> to vector<128x128xi1>
    %46 = vector.broadcast %cst_19 : f32 to vector<128x128xf32>
    %47 = arith.select %45, %43, %46 : vector<128x128xi1>, vector<128x128xf32>
    %48 = arith.mulf %47, %47 : vector<128x128xf32>
    %cst_20 = arith.constant dense<0.000000e+00> : vector<128xf32>
    %49 = vector.multi_reduction <add>, %48, %cst_20 [1] : vector<128x128xf32> to vector<128xf32>
    %50 = vector.shape_cast %49 : vector<128xf32> to vector<128x1xf32>
    %cst_21 = arith.constant 1.562500e-02 : f32
    %51 = vector.broadcast %cst_21 : f32 to vector<128x1xf32>
    %52 = arith.mulf %50, %51 : vector<128x1xf32>
    %cst_22 = arith.constant 9.99999974E-6 : f32
    %53 = vector.broadcast %cst_22 : f32 to vector<128x1xf32>
    %54 = arith.addf %52, %53 : vector<128x1xf32>
    %55 = math.rsqrt %54 : vector<128x1xf32>
    %56 = vector.broadcast %55 : vector<128x1xf32> to vector<128x128xf32>
    %57 = arith.mulf %47, %56 : vector<128x128xf32>
    %cst_23 = arith.constant 0.000000e+00 : f32
    %58 = vector.broadcast %cst_23 : f32 to vector<128x128xf32>
    %59 = arith.maximumf %57, %58 : vector<128x128xf32>
    %60 = arith.truncf %59 : vector<128x128xf32> to vector<128x128xbf16>
    %c0_24 = arith.constant 0 : index
    %c0_25 = arith.constant 0 : index
    %61 = vector.load %arg6[%c0_24, %c0_25] : memref<128x2048xbf16, #tpu.memory_space<vmem>>, vector<128x2048xbf16>
    %cst_26 = arith.constant dense<0.000000e+00> : vector<128x2048xf32>
    %62 = tpu.matmul %60, %61, %cst_26 {dimension_numbers = #tpu.dot_dimension_numbers<[1], [0], [0], [1], [0, 0, 1, 1], [], []>} : vector<128x128xbf16>, vector<128x2048xbf16>, vector<128x2048xf32> -> vector<128x2048xf32>
    %c0_27 = arith.constant 0 : index
    %c0_28 = arith.constant 0 : index
    %63 = vector.load %arg7[%c0_27, %c0_28] : memref<1x2048xf32, #tpu.memory_space<vmem>>, vector<1x2048xf32>
    %64 = vector.broadcast %63 : vector<1x2048xf32> to vector<128x2048xf32>
    %65 = arith.addf %62, %64 : vector<128x2048xf32>
    %cst_29 = arith.constant 0.000000e+00 : f32
    %66 = vector.broadcast %cst_29 : f32 to vector<128x2048xf32>
    %67 = arith.maximumf %65, %66 : vector<128x2048xf32>
    %68 = arith.truncf %67 : vector<128x2048xf32> to vector<128x2048xbf16>
    %c0_30 = arith.constant 0 : index
    %c0_31 = arith.constant 0 : index
    %69 = vector.load %arg8[%c0_30, %c0_31] : memref<2048x128xbf16, #tpu.memory_space<vmem>>, vector<2048x128xbf16>
    %cst_32 = arith.constant dense<0.000000e+00> : vector<128x128xf32>
    %70 = tpu.matmul %68, %69, %cst_32 {dimension_numbers = #tpu.dot_dimension_numbers<[1], [0], [0], [1], [0, 0, 1, 1], [], []>} : vector<128x2048xbf16>, vector<2048x128xbf16>, vector<128x128xf32> -> vector<128x128xf32>
    %c0_33 = arith.constant 0 : index
    %c0_34 = arith.constant 0 : index
    %71 = vector.load %arg9[%c0_33, %c0_34] : memref<1x128xf32, #tpu.memory_space<vmem>>, vector<1x128xf32>
    %72 = vector.broadcast %71 : vector<1x128xf32> to vector<128x128xf32>
    %73 = arith.addf %70, %72 : vector<128x128xf32>
    %cst_35 = arith.constant 2.000000e+01 : f32
    %74 = vector.broadcast %cst_35 : f32 to vector<128x128xf32>
    %75 = arith.cmpf ogt, %73, %74 : vector<128x128xf32>
    %cst_36 = arith.constant 2.000000e+01 : f32
    %76 = vector.broadcast %cst_36 : f32 to vector<128x128xf32>
    %77 = arith.minimumf %73, %76 : vector<128x128xf32>
    %78 = math.exp %77 : vector<128x128xf32>
    %79 = math.log1p %78 : vector<128x128xf32>
    %80 = arith.select %75, %73, %79 : vector<128x128xi1>, vector<128x128xf32>
    %c0_37 = arith.constant 0 : index
    %c0_38 = arith.constant 0 : index
    %81 = vector.load %arg10[%c0_37, %c0_38] : memref<128x128xf32, #tpu.memory_space<vmem>>, vector<128x128xf32>
    tpu.vector_store %arg10[%c0_37, %c0_38], %80 {strides = array<i32>} : memref<128x128xf32, #tpu.memory_space<vmem>>, vector<128x128xf32>,
    return
  }
  func.func @transform_0(%arg0: i32) -> (i32, i32) {
    %c0_i32 = arith.constant 0 : i32
    %c0_i32_0 = arith.constant 0 : i32
    return %arg0, %c0_i32 : i32, i32
  }
  func.func @transform_1(%arg0: i32) -> (i32, i32) {
    %c0_i32 = arith.constant 0 : i32
    %c0_i32_0 = arith.constant 0 : i32
    %c0_i32_1 = arith.constant 0 : i32
    return %c0_i32, %c0_i32_0 : i32, i32
  }
  func.func @transform_2(%arg0: i32) -> (i32, i32) {
    %c0_i32 = arith.constant 0 : i32
    %c0_i32_0 = arith.constant 0 : i32
    %c0_i32_1 = arith.constant 0 : i32
    return %c0_i32, %c0_i32_0 : i32, i32
  }
  func.func @transform_3(%arg0: i32) -> (i32, i32) {
    %c0_i32 = arith.constant 0 : i32
    %c0_i32_0 = arith.constant 0 : i32
    %c0_i32_1 = arith.constant 0 : i32
    return %c0_i32, %c0_i32_0 : i32, i32
  }
  func.func @transform_4(%arg0: i32) -> (i32, i32) {
    %c0_i32 = arith.constant 0 : i32
    %c0_i32_0 = arith.constant 0 : i32
    %c0_i32_1 = arith.constant 0 : i32
    return %c0_i32, %c0_i32_0 : i32, i32
  }
  func.func @transform_5(%arg0: i32) -> (i32, i32) {
    %c0_i32 = arith.constant 0 : i32
    %c0_i32_0 = arith.constant 0 : i32
    %c0_i32_1 = arith.constant 0 : i32
    return %c0_i32, %c0_i32_0 : i32, i32
  }
  func.func @transform_6(%arg0: i32) -> (i32, i32) {
    %c0_i32 = arith.constant 0 : i32
    %c0_i32_0 = arith.constant 0 : i32
    %c0_i32_1 = arith.constant 0 : i32
    return %c0_i32, %c0_i32_0 : i32, i32
  }
  func.func @transform_7(%arg0: i32) -> (i32, i32) {
    %c0_i32 = arith.constant 0 : i32
    %c0_i32_0 = arith.constant 0 : i32
    %c0_i32_1 = arith.constant 0 : i32
    return %c0_i32, %c0_i32_0 : i32, i32
  }
  func.func @transform_8(%arg0: i32) -> (i32, i32) {
    %c0_i32 = arith.constant 0 : i32
    %c0_i32_0 = arith.constant 0 : i32
    %c0_i32_1 = arith.constant 0 : i32
    return %c0_i32, %c0_i32_0 : i32, i32
  }
  func.func @transform_9(%arg0: i32) -> (i32, i32) {
    %c0_i32 = arith.constant 0 : i32
    %c0_i32_0 = arith.constant 0 : i32
    return %arg0, %c0_i32 : i32, i32
  }
}

</mosaic_0001>

<llo_original>
// kernel: tpu_custom_call.1
$region0: #{tpu_custom_call.1}
  #allocation0 [shape = 'u32[]', space=smem, size = 0x4, offset = 0x4, fixed_abs, tag = 'smem constant byte address 0x4 - core index']
  #allocation1 [shape = 'u32[144,128]{1,0:T(1,128)}', space=vmem, size = 0x12000, scoped, tag = 'internal scratch']
  %s0 = inlined_call_operand.hbm [shape: f32[256,128], index: 0, kind: input, shape index: {}]
  %s1 = inlined_call_operand.hbm [shape: bf16[128,128], index: 1, kind: input, shape index: {}]
  %s2 = inlined_call_operand.vmem [shape: f32[1,128], index: 2, kind: input, shape index: {}]
  %s3 = inlined_call_operand.hbm [shape: bf16[128,128], index: 3, kind: input, shape index: {}]
  %s4 = inlined_call_operand.vmem [shape: f32[1,128], index: 4, kind: input, shape index: {}]
  %s5 = inlined_call_operand.hbm [shape: bf16[128,2048], index: 5, kind: input, shape index: {}]
  %s6 = inlined_call_operand.vmem [shape: f32[1,2048], index: 6, kind: input, shape index: {}]
  %s7 = inlined_call_operand.hbm [shape: bf16[2048,128], index: 7, kind: input, shape index: {}]
  %s8 = inlined_call_operand.vmem [shape: f32[1,128], index: 8, kind: input, shape index: {}]
  %s9 = inlined_call_operand.hbm [shape: f32[256,128], index: 9, kind: output, shape index: {}]
  %s10 = sld [smem:[#allocation0]]
  $region89: #{tpu_custom_call.1} parent=0
    _
  %s12 = ssub.s32 1, %s10
  %s13 = scalar_select 0, %s12, %s10
  $region1: #{tpu_custom_call.1} parent=0
    #allocation2 [shape = 'u8[131072]{0}', space=vmem, size = 0x20000, scoped, tag = 'input window, operand 0']
    #allocation3 [shape = 's32[2]{0}', space=sflag, size = 0x8, scoped, tag = 'scoped memory for tpu_custom_call.1']
    #allocation4 [shape = 's32[2]{0}', space=sflag, size = 0x8, scoped, tag = 'scoped memory for tpu_custom_call.1']
    #allocation5 [shape = 'u8[32768]{0}', space=vmem, size = 0x8000, scoped, tag = 'input window, operand 1, single buffered']
    #allocation6 [shape = 's32[1]{0}', space=sflag, size = 0x4, scoped, tag = 'scoped memory for tpu_custom_call.1']
    #allocation7 [shape = 'u8[32768]{0}', space=vmem, size = 0x8000, scoped, tag = 'input window, operand 3, single buffered']
    #allocation8 [shape = 'u8[524288]{0}', space=vmem, size = 0x80000, scoped, tag = 'input window, operand 5, single buffered']
    #allocation9 [shape = 's32[1]{0}', space=sflag, size = 0x4, scoped, tag = 'scoped memory for tpu_custom_call.1']
    #allocation10 [shape = 'u8[524288]{0}', space=vmem, size = 0x80000, scoped, tag = 'input window, operand 7, single buffered']
    #allocation11 [shape = 'u8[131072]{0}', space=vmem, size = 0x20000, scoped, tag = 'output window, operand 0']
    %14 = vsyncpa [#allocation3], 0
    %s15 = scalar_lea.sflag [#allocation3], 1
    %16 = vsyncpa %s15, 0
    %17 = vsyncpa [#allocation6], 0
    %18 = vsyncpa [#allocation9], 0
    %19 = vsyncpa [#allocation4], 0
    %s20 = scalar_lea.sflag [#allocation4], 1
    %21 = vsyncpa %s20, 0
    loop: start=0, step=1, limit=4
    $region2: #{tpu_custom_call.1} parent=1 // loop_pre_header
      _
    $region3: #{tpu_custom_call.1} parent=1 // loop_header
      %s23 = sphi 0, %s27
      %p24 = scmp.ge.s32.totalorder %s23, 4
      %s33 = sphi 0, %s35
      %s36 = sphi 0, %s33
      %s37 = sphi 0, %s36
      %s53 = sphi 0, %s37
      %s57 = sphi 0, %s57
      %s59 = sphi 0, %s57
      %s60 = sphi 0, %s59
      %s74 = sphi 0, %s60
      %s78 = sphi 0, %s78
      %s80 = sphi 0, %s78
      %s81 = sphi 0, %s80
      %s95 = sphi 0, %s81
      %s99 = sphi 0, %s99
      %s101 = sphi 0, %s99
      %s102 = sphi 0, %s101
      %s116 = sphi 0, %s102
      %s120 = sphi 0, %s120
      %s122 = sphi 0, %s120
      %s123 = sphi 0, %s122
      %s137 = sphi 0, %s123
      %s141 = sphi 0, %s141
      %s143 = sphi 0, %s141
      %s144 = sphi 0, %s143
      %s158 = sphi 0, %s144
      %s162 = sphi 0, %s162
      %s164 = sphi 0, %s162
      %s165 = sphi 0, %s164
      %s179 = sphi 0, %s165
      %s183 = sphi 0, %s183
      %s185 = sphi 0, %s183
      %s186 = sphi 0, %s185
      %s200 = sphi 0, %s186
      %s204 = sphi 0, %s204
      %s206 = sphi 0, %s204
      %s207 = sphi 0, %s206
      %s221 = sphi 0, %s207
      %s227 = sphi 0, %s229
      %s230 = sphi 0, %s227
      %s231 = sphi 0, %s230
      %s247 = sphi 0, %s231
    $region4: #{tpu_custom_call.1} parent=1 // loop_header_branch
      %26 = sbr.rel (%p24) target = $region8
    $region5: #{tpu_custom_call.1} parent=1 // loop_body
      %s28 = ssub.s32 %s23, 1
      %s29 = ssub.s32 %s23, 2
      %s30 = sadd.s32 %s23, 1
      %s31 = ssub.s32 %s23, %s30
      %p32 = scmp.eq.s32.totalorder %s31, 0
      %s34 = sadd.s32 %s33, 1
      %s35 = scalar_select %p32, %s33, %s34
      %p38 = pneg %p32
      %p39 = scmp.eq.s32.totalorder %s23, 1
      %p40 = por %p38, %p39
      %p41 = scmp.ne.s32.totalorder %s33, %s36
      %p42 = scmp.eq.s32.totalorder %s23, 0
      %p43 = por %p41, %p42
      %p44 = scmp.ne.s32.totalorder %s33, %s36
      %p45 = scmp.eq.s32.totalorder %s28, 1
      %p46 = por %p44, %p45
      %p47 = scmp.ne.s32.totalorder %s36, %s37
      %p48 = scmp.eq.s32.totalorder %s28, 0
      %p49 = por %p47, %p48
      %p50 = scmp.ne.s32.totalorder %s36, %s37
      %p51 = scmp.eq.s32.totalorder %s29, 1
      %p52 = por %p50, %p51
      %p54 = scmp.ne.s32.totalorder %s37, %s53
      %p55 = scmp.eq.s32.totalorder %s29, 0
      %p56 = por %p54, %p55
      %s58 = sadd.s32 %s57, 1
      %p61 = scmp.eq.s32.totalorder %s23, 1
      %p62 = scmp.ne.s32.totalorder %s57, %s59
      %p63 = scmp.eq.s32.totalorder %s23, 0
      %p64 = por %p62, %p63
      %p65 = scmp.ne.s32.totalorder %s57, %s59
      %p66 = scmp.eq.s32.totalorder %s28, 1
      %p67 = por %p65, %p66
      %p68 = scmp.ne.s32.totalorder %s59, %s60
      %p69 = scmp.eq.s32.totalorder %s28, 0
      %p70 = por %p68, %p69
      %p71 = scmp.ne.s32.totalorder %s59, %s60
      %p72 = scmp.eq.s32.totalorder %s29, 1
      %p73 = por %p71, %p72
      %p75 = scmp.ne.s32.totalorder %s60, %s74
      %p76 = scmp.eq.s32.totalorder %s29, 0
      %p77 = por %p75, %p76
      %s79 = sadd.s32 %s78, 1
      %p82 = scmp.eq.s32.totalorder %s23, 1
      %p83 = scmp.ne.s32.totalorder %s78, %s80
      %p84 = scmp.eq.s32.totalorder %s23, 0
      %p85 = por %p83, %p84
      %p86 = scmp.ne.s32.totalorder %s78, %s80
      %p87 = scmp.eq.s32.totalorder %s28, 1
      %p88 = por %p86, %p87
      %p89 = scmp.ne.s32.totalorder %s80, %s81
      %p90 = scmp.eq.s32.totalorder %s28, 0
      %p91 = por %p89, %p90
      %p92 = scmp.ne.s32.totalorder %s80, %s81
      %p93 = scmp.eq.s32.totalorder %s29, 1
      %p94 = por %p92, %p93
      %p96 = scmp.ne.s32.totalorder %s81, %s95
      %p97 = scmp.eq.s32.totalorder %s29, 0
      %p98 = por %p96, %p97
      %s100 = sadd.s32 %s99, 1
      %p103 = scmp.eq.s32.totalorder %s23, 1
      %p104 = scmp.ne.s32.totalorder %s99, %s101
      %p105 = scmp.eq.s32.totalorder %s23, 0
      %p106 = por %p104, %p105
      %p107 = scmp.ne.s32.totalorder %s99, %s101
      %p108 = scmp.eq.s32.totalorder %s28, 1
      %p109 = por %p107, %p108
      %p110 = scmp.ne.s32.totalorder %s101, %s102
      %p111 = scmp.eq.s32.totalorder %s28, 0
      %p112 = por %p110, %p111
      %p113 = scmp.ne.s32.totalorder %s101, %s102
      %p114 = scmp.eq.s32.totalorder %s29, 1
      %p115 = por %p113, %p114
      %p117 = scmp.ne.s32.totalorder %s102, %s116
      %p118 = scmp.eq.s32.totalorder %s29, 0
      %p119 = por %p117, %p118
      %s121 = sadd.s32 %s120, 1
      %p124 = scmp.eq.s32.totalorder %s23, 1
      %p125 = scmp.ne.s32.totalorder %s120, %s122
      %p126 = scmp.eq.s32.totalorder %s23, 0
      %p127 = por %p125, %p126
      %p128 = scmp.ne.s32.totalorder %s120, %s122
      %p129 = scmp.eq.s32.totalorder %s28, 1
      %p130 = por %p128, %p129
      %p131 = scmp.ne.s32.totalorder %s122, %s123
      %p132 = scmp.eq.s32.totalorder %s28, 0
      %p133 = por %p131, %p132
      %p134 = scmp.ne.s32.totalorder %s122, %s123
      %p135 = scmp.eq.s32.totalorder %s29, 1
      %p136 = por %p134, %p135
      %p138 = scmp.ne.s32.totalorder %s123, %s137
      %p139 = scmp.eq.s32.totalorder %s29, 0
      %p140 = por %p138, %p139
      %s142 = sadd.s32 %s141, 1
      %p145 = scmp.eq.s32.totalorder %s23, 1
      %p146 = scmp.ne.s32.totalorder %s141, %s143
      %p147 = scmp.eq.s32.totalorder %s23, 0
      %p148 = por %p146, %p147
      %p149 = scmp.ne.s32.totalorder %s141, %s143
      %p150 = scmp.eq.s32.totalorder %s28, 1
      %p151 = por %p149, %p150
      %p152 = scmp.ne.s32.totalorder %s143, %s144
      %p153 = scmp.eq.s32.totalorder %s28, 0
      %p154 = por %p152, %p153
      %p155 = scmp.ne.s32.totalorder %s143, %s144
      %p156 = scmp.eq.s32.totalorder %s29, 1
      %p157 = por %p155, %p156
      %p159 = scmp.ne.s32.totalorder %s144, %s158
      %p160 = scmp.eq.s32.totalorder %s29, 0
      %p161 = por %p159, %p160
      %s163 = sadd.s32 %s162, 1
      %p166 = scmp.eq.s32.totalorder %s23, 1
      %p167 = scmp.ne.s32.totalorder %s162, %s164
      %p168 = scmp.eq.s32.totalorder %s23, 0
      %p169 = por %p167, %p168
      %p170 = scmp.ne.s32.totalorder %s162, %s164
      %p171 = scmp.eq.s32.totalorder %s28, 1
      %p172 = por %p170, %p171
      %p173 = scmp.ne.s32.totalorder %s164, %s165
      %p174 = scmp.eq.s32.totalorder %s28, 0
      %p175 = por %p173, %p174
      %p176 = scmp.ne.s32.totalorder %s164, %s165
      %p177 = scmp.eq.s32.totalorder %s29, 1
      %p178 = por %p176, %p177
      %p180 = scmp.ne.s32.totalorder %s165, %s179
      %p181 = scmp.eq.s32.totalorder %s29, 0
      %p182 = por %p180, %p181
      %s184 = sadd.s32 %s183, 1
      %p187 = scmp.eq.s32.totalorder %s23, 1
      %p188 = scmp.ne.s32.totalorder %s183, %s185
      %p189 = scmp.eq.s32.totalorder %s23, 0
      %p190 = por %p188, %p189
      %p191 = scmp.ne.s32.totalorder %s183, %s185
      %p192 = scmp.eq.s32.totalorder %s28, 1
      %p193 = por %p191, %p192
      %p194 = scmp.ne.s32.totalorder %s185, %s186
      %p195 = scmp.eq.s32.totalorder %s28, 0
      %p196 = por %p194, %p195
      %p197 = scmp.ne.s32.totalorder %s185, %s186
      %p198 = scmp.eq.s32.totalorder %s29, 1
      %p199 = por %p197, %p198
      %p201 = scmp.ne.s32.totalorder %s186, %s200
      %p202 = scmp.eq.s32.totalorder %s29, 0
      %p203 = por %p201, %p202
      %s205 = sadd.s32 %s204, 1
      %p208 = scmp.eq.s32.totalorder %s23, 1
      %p209 = scmp.ne.s32.totalorder %s204, %s206
      %p210 = scmp.eq.s32.totalorder %s23, 0
      %p211 = por %p209, %p210
      %p212 = scmp.ne.s32.totalorder %s204, %s206
      %p213 = scmp.eq.s32.totalorder %s28, 1
      %p214 = por %p212, %p213
      %p215 = scmp.ne.s32.totalorder %s206, %s207
      %p216 = scmp.eq.s32.totalorder %s28, 0
      %p217 = por %p215, %p216
      %p218 = scmp.ne.s32.totalorder %s206, %s207
      %p219 = scmp.eq.s32.totalorder %s29, 1
      %p220 = por %p218, %p219
      %p222 = scmp.ne.s32.totalorder %s207, %s221
      %p223 = scmp.eq.s32.totalorder %s29, 0
      %p224 = por %p222, %p223
      %s225 = ssub.s32 %s23, %s30
      %p226 = scmp.eq.s32.totalorder %s225, 0
      %s228 = sadd.s32 %s227, 1
      %s229 = scalar_select %p226, %s227, %s228
      %p232 = pneg %p226
      %p233 = scmp.eq.s32.totalorder %s23, 1
      %p234 = por %p232, %p233
      %p235 = scmp.ne.s32.totalorder %s227, %s230
      %p236 = scmp.eq.s32.totalorder %s23, 0
      %p237 = por %p235, %p236
      %p238 = scmp.ne.s32.totalorder %s227, %s230
      %p239 = scmp.eq.s32.totalorder %s28, 1
      %p240 = por %p238, %p239
      %p241 = scmp.ne.s32.totalorder %s230, %s231
      %p242 = scmp.eq.s32.totalorder %s28, 0
      %p243 = por %p241, %p242
      %p244 = scmp.ne.s32.totalorder %s230, %s231
      %p245 = scmp.eq.s32.totalorder %s29, 1
      %p246 = por %p244, %p245
      %p248 = scmp.ne.s32.totalorder %s231, %s247
      %p249 = scmp.eq.s32.totalorder %s29, 0
      %p250 = por %p248, %p249
      %p251 = scmp.le.s32.totalorder 1, %s23
      %p252 = scmp.lt.s32.totalorder %s23, 3
      %p253 = pnand %p251, %p252
      %p254 = pneg %p253
      // Predicated region
      $region9: #{tpu_custom_call.1} parent=5 // pred_check
        _
      $region10: #{tpu_custom_call.1} parent=5 // pred_check_branch
        %256 = sbr.rel (%p253) target = $region12
      $region11: #{tpu_custom_call.1} parent=5 // pred_region
        %s257 = ssub.s32 %s23, 1
        // Predicated region
        $region13: #{tpu_custom_call.1} parent=11 // pred_check
          %p258 = pneg %p70
        $region14: #{tpu_custom_call.1} parent=11 // pred_check_branch
          %260 = sbr.rel (%p258) target = $region16
        $region15: #{tpu_custom_call.1} parent=11 // pred_region
          %s262 = ssub.s32 1024, 1024
          %263 = vsyncadd [#allocation6], %s262
          %s264 = sshll.u32 [#allocation5], 4
          %s265 = int_to_ptr.vmem [resolvable:$true] %s264
          %270 = dma.hbm_to_vmem [thread:$0]  %s1, 1024, %s265, [#allocation6], 64, 64, 4
        $region16: #{tpu_custom_call.1} parent=11 // pred_fallthru
          _
        // Predicated region
        $region17: #{tpu_custom_call.1} parent=11 // pred_check
          %p271 = pneg %p91
        $region18: #{tpu_custom_call.1} parent=11 // pred_check_branch
          %273 = sbr.rel (%p271) target = $region20
        $region19: #{tpu_custom_call.1} parent=11 // pred_region
          _
        $region20: #{tpu_custom_call.1} parent=11 // pred_fallthru
          _
        // Predicated region
        $region21: #{tpu_custom_call.1} parent=11 // pred_check
          %p274 = pneg %p112
        $region22: #{tpu_custom_call.1} parent=11 // pred_check_branch
          %276 = sbr.rel (%p274) target = $region24
        $region23: #{tpu_custom_call.1} parent=11 // pred_region
          %s278 = ssub.s32 1024, 1024
          %279 = vsyncadd [#allocation6], %s278
          %s280 = sshll.u32 [#allocation7], 4
          %s281 = int_to_ptr.vmem [resolvable:$true] %s280
          %286 = dma.hbm_to_vmem [thread:$0]  %s3, 1024, %s281, [#allocation6], 64, 64, 4
        $region24: #{tpu_custom_call.1} parent=11 // pred_fallthru
          _
        // Predicated region
        $region25: #{tpu_custom_call.1} parent=11 // pred_check
          %p287 = pneg %p133
        $region26: #{tpu_custom_call.1} parent=11 // pred_check_branch
          %289 = sbr.rel (%p287) target = $region28
        $region27: #{tpu_custom_call.1} parent=11 // pred_region
          _
        $region28: #{tpu_custom_call.1} parent=11 // pred_fallthru
          _
        // Predicated region
        $region29: #{tpu_custom_call.1} parent=11 // pred_check
          %p290 = pneg %p154
        $region30: #{tpu_custom_call.1} parent=11 // pred_check_branch
          %292 = sbr.rel (%p290) target = $region32
        $region31: #{tpu_custom_call.1} parent=11 // pred_region
          %s294 = ssub.s32 16384, 16384
          %295 = vsyncadd [#allocation9], %s294
          %s296 = sshll.u32 [#allocation8], 4
          %s297 = int_to_ptr.vmem [resolvable:$true] %s296
          %302 = dma.hbm_to_vmem [thread:$0]  %s5, 16384, %s297, [#allocation9], 1024, 1024, 64
        $region32: #{tpu_custom_call.1} parent=11 // pred_fallthru
          _
        // Predicated region
        $region33: #{tpu_custom_call.1} parent=11 // pred_check
          %p303 = pneg %p175
        $region34: #{tpu_custom_call.1} parent=11 // pred_check_branch
          %305 = sbr.rel (%p303) target = $region36
        $region35: #{tpu_custom_call.1} parent=11 // pred_region
          _
        $region36: #{tpu_custom_call.1} parent=11 // pred_fallthru
          _
        // Predicated region
        $region37: #{tpu_custom_call.1} parent=11 // pred_check
          %p306 = pneg %p196
        $region38: #{tpu_custom_call.1} parent=11 // pred_check_branch
          %308 = sbr.rel (%p306) target = $region40
        $region39: #{tpu_custom_call.1} parent=11 // pred_region
          %s310 = ssub.s32 16384, 16384
          %311 = vsyncadd [#allocation9], %s310
          %s312 = sshll.u32 [#allocation10], 4
          %s313 = int_to_ptr.vmem [resolvable:$true] %s312
          %318 = dma.hbm_to_vmem [thread:$0]  %s7, 16384, %s313, [#allocation9], 64, 64, 4
        $region40: #{tpu_custom_call.1} parent=11 // pred_fallthru
          _
        // Predicated region
        $region41: #{tpu_custom_call.1} parent=11 // pred_check
          %p319 = pneg %p217
        $region42: #{tpu_custom_call.1} parent=11 // pred_check_branch
          %321 = sbr.rel (%p319) target = $region44
        $region43: #{tpu_custom_call.1} parent=11 // pred_region
          _
        $region44: #{tpu_custom_call.1} parent=11 // pred_fallthru
          _
      $region12: #{tpu_custom_call.1} parent=5 // pred_fallthru
        _
      %p322 = scmp.lt.s32.totalorder %s23, 2
      // Predicated region
      $region45: #{tpu_custom_call.1} parent=5 // pred_check
        %p323 = pneg %p322
      $region46: #{tpu_custom_call.1} parent=5 // pred_check_branch
        %325 = sbr.rel (%p323) target = $region48
      $region47: #{tpu_custom_call.1} parent=5 // pred_region
        // Predicated region
        $region49: #{tpu_custom_call.1} parent=47 // pred_check
          %p326 = pneg %p43
        $region50: #{tpu_custom_call.1} parent=47 // pred_check_branch
          %328 = sbr.rel (%p326) target = $region52
        $region51: #{tpu_custom_call.1} parent=47 // pred_region
          %s329 = sand.u32 %s33, 1
          %s330 = scalar_lea.sflag [#allocation3], %s329
          %s331 = sand.u32 %s33, 1
          %s332 = smul.addr %s331, 128
          %s333 = scalar_lea.vmem [#allocation2], %s332
          %s334 = smul.u32 16, %s23
          %s336 = ssub.s32 2048, 2048
          %337 = vsyncadd %s330, %s336
          %s338 = smul.addr %s334, 128
          %s339 = scalar_lea.hbm %s0, %s338
          %s340 = sshll.u32 %s333, 4
          %s341 = int_to_ptr.vmem [resolvable:$true] %s340
          %346 = dma.hbm_to_vmem [thread:$0]  %s339, 2048, %s341, %s330, 128, 128, 8
        $region52: #{tpu_custom_call.1} parent=47 // pred_fallthru
          _
      $region48: #{tpu_custom_call.1} parent=5 // pred_fallthru
        _
      %p347 = scmp.le.s32.totalorder 1, %s23
      %p348 = scmp.lt.s32.totalorder %s23, 3
      %p349 = pnand %p347, %p348
      %p350 = pneg %p349
      // Predicated region
      $region53: #{tpu_custom_call.1} parent=5 // pred_check
        _
      $region54: #{tpu_custom_call.1} parent=5 // pred_check_branch
        %352 = sbr.rel (%p349) target = $region56
      $region55: #{tpu_custom_call.1} parent=5 // pred_region
        %s353 = ssub.s32 %s23, 1
        %s354 = sand.u32 %s36, 1
        %s355 = scalar_lea.sflag [#allocation3], %s354
        %s356 = sand.u32 %s36, 1
        %s357 = smul.addr %s356, 128
        %s358 = scalar_lea.vmem [#allocation2], %s357
        // Predicated region
        $region57: #{tpu_custom_call.1} parent=55 // pred_check
          %p359 = pneg %p49
        $region58: #{tpu_custom_call.1} parent=55 // pred_check_branch
          %361 = sbr.rel (%p359) target = $region60
        $region59: #{tpu_custom_call.1} parent=55 // pred_region
          %362 = dma.done %s355, 2048
        $region60: #{tpu_custom_call.1} parent=55 // pred_fallthru
          _
        // Predicated region
        $region61: #{tpu_custom_call.1} parent=55 // pred_check
          %p363 = pneg %p70
        $region62: #{tpu_custom_call.1} parent=55 // pred_check_branch
          %365 = sbr.rel (%p363) target = $region64
        $region63: #{tpu_custom_call.1} parent=55 // pred_region
          %366 = dma.done [#allocation6], 1024
        $region64: #{tpu_custom_call.1} parent=55 // pred_fallthru
          _
        // Predicated region
        $region65: #{tpu_custom_call.1} parent=55 // pred_check
          %p367 = pneg %p112
        $region66: #{tpu_custom_call.1} parent=55 // pred_check_branch
          %369 = sbr.rel (%p367) target = $region68
        $region67: #{tpu_custom_call.1} parent=55 // pred_region
          %370 = dma.done [#allocation6], 1024
        $region68: #{tpu_custom_call.1} parent=55 // pred_fallthru
          _
        // Predicated region
        $region69: #{tpu_custom_call.1} parent=55 // pred_check
          %p371 = pneg %p154
        $region70: #{tpu_custom_call.1} parent=55 // pred_check_branch
          %373 = sbr.rel (%p371) target = $region72
        $region71: #{tpu_custom_call.1} parent=55 // pred_region
          %374 = dma.done [#allocation9], 16384
        $region72: #{tpu_custom_call.1} parent=55 // pred_fallthru
          _
        // Predicated region
        $region73: #{tpu_custom_call.1} parent=55 // pred_check
          %p375 = pneg %p196
        $region74: #{tpu_custom_call.1} parent=55 // pred_check_branch
          %377 = sbr.rel (%p375) target = $region76
        $region75: #{tpu_custom_call.1} parent=55 // pred_region
          %378 = dma.done [#allocation9], 16384
        $region76: #{tpu_custom_call.1} parent=55 // pred_fallthru
          _
        %s379 = sand.u32 %s36, 1
        %s380 = scalar_lea.sflag [#allocation3], %s379
        %s381 = sand.u32 %s36, 1
        %s382 = smul.addr %s381, 128
        %s383 = scalar_lea.vmem [#allocation2], %s382
        %p384 = pneg %p49
        %p385 = pneg %p46
        %p386 = pneg %p70
        %p387 = pneg %p67
        %p388 = pneg %p91
        %p389 = pneg %p88
        %p390 = pneg %p112
        %p391 = pneg %p109
        %p392 = pneg %p133
        %p393 = pneg %p130
        %p394 = pneg %p154
        %p395 = pneg %p151
        %p396 = pneg %p175
        %p397 = pneg %p172
        %p398 = pneg %p196
        %p399 = pneg %p193
        %p400 = pneg %p217
        %p401 = pneg %p214
        %p402 = pneg %p243
        %p403 = pneg %p240
        %s404 = sand.u32 %s230, 1
        %s405 = scalar_lea.sflag [#allocation4], %s404
        %s406 = sand.u32 %s230, 1
        %s407 = smul.addr %s406, 128
        %s408 = scalar_lea.vmem [#allocation11], %s407
        %s409 = smul.u32 16, %s28
        %s410 = smul.u32 16, %s28
        %v412 = vlaneseq
        %v413 = vand.u32 %v412, 127
        %vm414 = vcmp.lt.s32.totalorder %v413, 64
        %v415 = vld [vmem:[%s358] sm:$0xff]
        %v416 = vld [vmem:[%s358 + $0x8] sm:$0xff]
        %v417 = vld [vmem:[%s358 + $0x10] sm:$0xff]
        %v418 = vld [vmem:[%s358 + $0x18] sm:$0xff]
        %v419 = vld [vmem:[%s358 + $0x20] sm:$0xff]
        %v420 = vld [vmem:[%s358 + $0x28] sm:$0xff]
        %v421 = vld [vmem:[%s358 + $0x30] sm:$0xff]
        %v422 = vld [vmem:[%s358 + $0x38] sm:$0xff]
        %v423 = vld [vmem:[%s358 + $0x40] sm:$0xff]
        %v424 = vld [vmem:[%s358 + $0x48] sm:$0xff]
        %v425 = vld [vmem:[%s358 + $0x50] sm:$0xff]
        %v426 = vld [vmem:[%s358 + $0x58] sm:$0xff]
        %v427 = vld [vmem:[%s358 + $0x60] sm:$0xff]
        %v428 = vld [vmem:[%s358 + $0x68] sm:$0xff]
        %v429 = vld [vmem:[%s358 + $0x70] sm:$0xff]
        %v430 = vld [vmem:[%s358 + $0x78] sm:$0xff]
        %v431 = vpack.c.bf16 %v416, %v415
        %v432 = vpack.c.bf16 %v418, %v417
        %v433 = vpack.c.bf16 %v420, %v419
        %v434 = vpack.c.bf16 %v422, %v421
        %v435 = vpack.c.bf16 %v424, %v423
        %v436 = vpack.c.bf16 %v426, %v425
        %v437 = vpack.c.bf16 %v428, %v427
        %v438 = vpack.c.bf16 %v430, %v429
        %v439 = vld [vmem:[#allocation5] sm:$0xf]
        %v440 = vld [vmem:[#allocation5 + $0x4] sm:$0xf]
        %v441 = vld [vmem:[#allocation5 + $0x8] sm:$0xf]
        %v442 = vld [vmem:[#allocation5 + $0xc] sm:$0xf]
        %v443 = vld [vmem:[#allocation5 + $0x10] sm:$0xf]
        %v444 = vld [vmem:[#allocation5 + $0x14] sm:$0xf]
        %v445 = vld [vmem:[#allocation5 + $0x18] sm:$0xf]
        %v446 = vld [vmem:[#allocation5 + $0x1c] sm:$0xf]
        %v447 = vld [vmem:[#allocation5 + $0x20] sm:$0xf]
        %v448 = vld [vmem:[#allocation5 + $0x24] sm:$0xf]
        %v449 = vld [vmem:[#allocation5 + $0x28] sm:$0xf]
        %v450 = vld [vmem:[#allocation5 + $0x2c] sm:$0xf]
        %v451 = vld [vmem:[#allocation5 + $0x30] sm:$0xf]
        %v452 = vld [vmem:[#allocation5 + $0x34] sm:$0xf]
        %v453 = vld [vmem:[#allocation5 + $0x38] sm:$0xf]
        %v454 = vld [vmem:[#allocation5 + $0x3c] sm:$0xf]
        %v455 = vld [vmem:[%s2] sm:$0x1]
        %v457 = vlaneseq
        %v458 = vshrl.u32 %v457, 7
        %v459 = vsub.s32 0, %v458
        %v460 = vrot.slane %v455, %v459
        %v478 = vunpack.c.l.b16 %v439
        %v479 = vunpack.c.l.b16 %v440
        %v480 = vunpack.c.l.b16 %v441
        %v481 = vunpack.c.l.b16 %v442
        %v482 = vunpack.c.l.b16 %v443
        %v483 = vunpack.c.l.b16 %v444
        %v484 = vunpack.c.l.b16 %v445
        %v485 = vunpack.c.l.b16 %v446
        %v486 = vunpack.c.l.b16 %v447
        %v487 = vunpack.c.l.b16 %v448
        %v488 = vunpack.c.l.b16 %v449
        %v489 = vunpack.c.l.b16 %v450
        %v490 = vunpack.c.l.b16 %v451
        %v491 = vunpack.c.l.b16 %v452
        %v492 = vunpack.c.l.b16 %v453
        %v493 = vunpack.c.l.b16 %v454
        %v494 = vpack.c.b16 %v479, %v478
        %v495 = vpack.c.b16 %v481, %v480
        %v496 = vpack.c.b16 %v483, %v482
        %v497 = vpack.c.b16 %v485, %v484
        %v498 = vpack.c.b16 %v487, %v486
        %v499 = vpack.c.b16 %v489, %v488
        %v500 = vpack.c.b16 %v491, %v490
        %v501 = vpack.c.b16 %v493, %v492
        %510 = vmatprep.subr.bf16.mxu0 0
        %511 = vmatpush1.bf16.msra.mxu0 %v494
        %512 = vmatprep.subr.bf16.mxu0 0
        %513 = vmatpush1.bf16.msra.mxu0 %v495
        %514 = vmatprep.subr.bf16.mxu0 0
        %515 = vmatpush1.bf16.msra.mxu0 %v496
        %516 = vmatprep.subr.bf16.mxu0 0
        %517 = vmatpush1.bf16.msra.mxu0 %v497
        %518 = vmatprep.subr.bf16.mxu0 0
        %519 = vmatpush1.bf16.msra.mxu0 %v498
        %520 = vmatprep.subr.bf16.mxu0 0
        %521 = vmatpush1.bf16.msra.mxu0 %v499
        %522 = vmatprep.subr.bf16.mxu0 0
        %523 = vmatpush1.bf16.msra.mxu0 %v500
        %524 = vmatprep.subr.bf16.mxu0 0
        %525 = vmatpush1.bf16.msra.mxu0 %v501
        %526 = vmatprep.subr.bf16.mxu0 0
        %527 = vmatpush1.bf16.msra.mxu0 0
        %528 = vmatprep.subr.bf16.mxu0 0
        %529 = vmatpush1.bf16.msra.mxu0 0
        %530 = vmatprep.subr.bf16.mxu0 0
        %531 = vmatpush1.bf16.msra.mxu0 0
        %532 = vmatprep.subr.bf16.mxu0 0
        %533 = vmatpush1.bf16.msra.mxu0 0
        %534 = vmatprep.subr.bf16.mxu0 0
        %535 = vmatpush1.bf16.msra.mxu0 0
        %536 = vmatprep.subr.bf16.mxu0 0
        %537 = vmatpush1.bf16.msra.mxu0 0
        %538 = vmatprep.subr.bf16.mxu0 0
        %539 = vmatpush1.bf16.msra.mxu0 0
        %540 = vmatprep.subr.bf16.mxu0 0
        %541 = vmatpush1.bf16.msra.mxu0 0
        %542 = vmatprep.mubr.bf16.mxu0 0
        %543 = vmatmul.mubr.bf16.gmra.mrb[0].mxu0 %v431
        %v544 = vpop.f32.mrb[0].mxu0
        %v545 = vadd.f32 %v460, %v544
        %v546 = vpop.f32.mrb[0].mxu0
        %v547 = vpop.f32.mrb[0].mxu0
        %v548 = vadd.f32 %v460, %v547
        %v549 = vpop.f32.mrb[0].mxu0
        %550 = vmatprep.mubr.bf16.mxu0 0
        %551 = vmatmul.mubr.bf16.gmra.mrb[0].mxu0 %v432
        %v552 = vpop.f32.mrb[0].mxu0
        %v553 = vadd.f32 %v460, %v552
        %v554 = vpop.f32.mrb[0].mxu0
        %v555 = vpop.f32.mrb[0].mxu0
        %v556 = vadd.f32 %v460, %v555
        %v557 = vpop.f32.mrb[0].mxu0
        %558 = vmatprep.mubr.bf16.mxu0 0
        %559 = vmatmul.mubr.bf16.gmra.mrb[0].mxu0 %v433
        %v560 = vpop.f32.mrb[0].mxu0
        %v561 = vadd.f32 %v460, %v560
        %v562 = vpop.f32.mrb[0].mxu0
        %v563 = vpop.f32.mrb[0].mxu0
        %v564 = vadd.f32 %v460, %v563
        %v565 = vpop.f32.mrb[0].mxu0
        %566 = vmatprep.mubr.bf16.mxu0 0
        %567 = vmatmul.mubr.bf16.gmra.mrb[0].mxu0 %v434
        %v568 = vpop.f32.mrb[0].mxu0
        %v569 = vadd.f32 %v460, %v568
        %v570 = vpop.f32.mrb[0].mxu0
        %v571 = vpop.f32.mrb[0].mxu0
        %v572 = vadd.f32 %v460, %v571
        %v573 = vpop.f32.mrb[0].mxu0
        %574 = vmatprep.mubr.bf16.mxu0 0
        %575 = vmatmul.mubr.bf16.gmra.mrb[0].mxu0 %v435
        %v576 = vpop.f32.mrb[0].mxu0
        %v577 = vadd.f32 %v460, %v576
        %v578 = vpop.f32.mrb[0].mxu0
        %v579 = vpop.f32.mrb[0].mxu0
        %v580 = vadd.f32 %v460, %v579
        %v581 = vpop.f32.mrb[0].mxu0
        %582 = vmatprep.mubr.bf16.mxu0 0
        %583 = vmatmul.mubr.bf16.gmra.mrb[0].mxu0 %v436
        %v584 = vpop.f32.mrb[0].mxu0
        %v585 = vadd.f32 %v460, %v584
        %v586 = vpop.f32.mrb[0].mxu0
        %v587 = vpop.f32.mrb[0].mxu0
        %v588 = vadd.f32 %v460, %v587
        %v589 = vpop.f32.mrb[0].mxu0
        %590 = vmatprep.mubr.bf16.mxu0 0
        %591 = vmatmul.mubr.bf16.gmra.mrb[0].mxu0 %v437
        %v592 = vpop.f32.mrb[0].mxu0
        %v593 = vadd.f32 %v460, %v592
        %v594 = vpop.f32.mrb[0].mxu0
        %v595 = vpop.f32.mrb[0].mxu0
        %v596 = vadd.f32 %v460, %v595
        %v597 = vpop.f32.mrb[0].mxu0
        %598 = vmatprep.mubr.bf16.mxu0 0
        %599 = vmatmul.mubr.bf16.gmra.mrb[0].mxu0 %v438
        %v600 = vpop.f32.mrb[0].mxu0
        %v601 = vadd.f32 %v460, %v600
        %v602 = vpop.f32.mrb[0].mxu0
        %v603 = vpop.f32.mrb[0].mxu0
        %v604 = vadd.f32 %v460, %v603
        %v605 = vpop.f32.mrb[0].mxu0
        %606 = vdwg.mxu0
        %607 = vadd.xlane.f32.xlu0 %v545
        %v608 = vpop.xlane.xlu0 %607
        %609 = vadd.xlane.f32.xlu0 %v548
        %v610 = vpop.xlane.xlu0 %609
        %611 = vadd.xlane.f32.xlu0 %v553
        %v612 = vpop.xlane.xlu0 %611
        %613 = vadd.xlane.f32.xlu0 %v556
        %v614 = vpop.xlane.xlu0 %613
        %615 = vadd.xlane.f32.xlu0 %v561
        %v616 = vpop.xlane.xlu0 %615
        %617 = vadd.xlane.f32.xlu0 %v564
        %v618 = vpop.xlane.xlu0 %617
        %619 = vadd.xlane.f32.xlu0 %v569
        %v620 = vpop.xlane.xlu0 %619
        %621 = vadd.xlane.f32.xlu0 %v572
        %v622 = vpop.xlane.xlu0 %621
        %623 = vadd.xlane.f32.xlu0 %v577
        %v624 = vpop.xlane.xlu0 %623
        %625 = vadd.xlane.f32.xlu0 %v580
        %v626 = vpop.xlane.xlu0 %625
        %627 = vadd.xlane.f32.xlu0 %v585
        %v628 = vpop.xlane.xlu0 %627
        %629 = vadd.xlane.f32.xlu0 %v588
        %v630 = vpop.xlane.xlu0 %629
        %631 = vadd.xlane.f32.xlu0 %v593
        %v632 = vpop.xlane.xlu0 %631
        %633 = vadd.xlane.f32.xlu0 %v596
        %v634 = vpop.xlane.xlu0 %633
        %635 = vadd.xlane.f32.xlu0 %v601
        %v636 = vpop.xlane.xlu0 %635
        %637 = vadd.xlane.f32.xlu0 %v604
        %v638 = vpop.xlane.xlu0 %637
        %v639 = vmul.f32 %v608, 0.015625
        %v640 = vmul.f32 %v610, 0.015625
        %v641 = vmul.f32 %v612, 0.015625
        %v642 = vmul.f32 %v614, 0.015625
        %v643 = vmul.f32 %v616, 0.015625
        %v644 = vmul.f32 %v618, 0.015625
        %v645 = vmul.f32 %v620, 0.015625
        %v646 = vmul.f32 %v622, 0.015625
        %v647 = vmul.f32 %v624, 0.015625
        %v648 = vmul.f32 %v626, 0.015625
        %v649 = vmul.f32 %v628, 0.015625
        %v650 = vmul.f32 %v630, 0.015625
        %v651 = vmul.f32 %v632, 0.015625
        %v652 = vmul.f32 %v634, 0.015625
        %v653 = vmul.f32 %v636, 0.015625
        %v654 = vmul.f32 %v638, 0.015625
        %v655 = vsub.f32 %v545, %v639
        %v656 = vsub.f32 %v548, %v640
        %v657 = vsub.f32 %v553, %v641
        %v658 = vsub.f32 %v556, %v642
        %v659 = vsub.f32 %v561, %v643
        %v660 = vsub.f32 %v564, %v644
        %v661 = vsub.f32 %v569, %v645
        %v662 = vsub.f32 %v572, %v646
        %v663 = vsub.f32 %v577, %v647
        %v664 = vsub.f32 %v580, %v648
        %v665 = vsub.f32 %v585, %v649
        %v666 = vsub.f32 %v588, %v650
        %v667 = vsub.f32 %v593, %v651
        %v668 = vsub.f32 %v596, %v652
        %v669 = vsub.f32 %v601, %v653
        %v670 = vsub.f32 %v604, %v654
        %v671 = vsel %vm414, 1, 0
        %vm672 = vcmp.eq.s32.totalorder %v671, 1
        %v673 = vsel %vm672, %v655, 0.0
        %v674 = vsel %vm672, %v656, 0.0
        %v675 = vsel %vm672, %v657, 0.0
        %v676 = vsel %vm672, %v658, 0.0
        %v677 = vsel %vm672, %v659, 0.0
        %v678 = vsel %vm672, %v660, 0.0
        %v679 = vsel %vm672, %v661, 0.0
        %v680 = vsel %vm672, %v662, 0.0
        %v681 = vsel %vm672, %v663, 0.0
        %v682 = vsel %vm672, %v664, 0.0
        %v683 = vsel %vm672, %v665, 0.0
        %v684 = vsel %vm672, %v666, 0.0
        %v685 = vsel %vm672, %v667, 0.0
        %v686 = vsel %vm672, %v668, 0.0
        %v687 = vsel %vm672, %v669, 0.0
        %v688 = vsel %vm672, %v670, 0.0
        %v689 = vmul.f32 %v673, %v673
        %v690 = vmul.f32 %v674, %v674
        %v691 = vmul.f32 %v675, %v675
        %v692 = vmul.f32 %v676, %v676
        %v693 = vmul.f32 %v677, %v677
        %v694 = vmul.f32 %v678, %v678
        %v695 = vmul.f32 %v679, %v679
        %v696 = vmul.f32 %v680, %v680
        %v697 = vmul.f32 %v681, %v681
        %v698 = vmul.f32 %v682, %v682
        %v699 = vmul.f32 %v683, %v683
        %v700 = vmul.f32 %v684, %v684
        %v701 = vmul.f32 %v685, %v685
        %v702 = vmul.f32 %v686, %v686
        %v703 = vmul.f32 %v687, %v687
        %v704 = vmul.f32 %v688, %v688
        %705 = vadd.xlane.f32.xlu0 %v689
        %v706 = vpop.xlane.xlu0 %705
        %707 = vadd.xlane.f32.xlu0 %v690
        %v708 = vpop.xlane.xlu0 %707
        %709 = vadd.xlane.f32.xlu0 %v691
        %v710 = vpop.xlane.xlu0 %709
        %711 = vadd.xlane.f32.xlu0 %v692
        %v712 = vpop.xlane.xlu0 %711
        %713 = vadd.xlane.f32.xlu0 %v693
        %v714 = vpop.xlane.xlu0 %713
        %715 = vadd.xlane.f32.xlu0 %v694
        %v716 = vpop.xlane.xlu0 %715
        %717 = vadd.xlane.f32.xlu0 %v695
        %v718 = vpop.xlane.xlu0 %717
        %719 = vadd.xlane.f32.xlu0 %v696
        %v720 = vpop.xlane.xlu0 %719
        %721 = vadd.xlane.f32.xlu0 %v697
        %v722 = vpop.xlane.xlu0 %721
        %723 = vadd.xlane.f32.xlu0 %v698
        %v724 = vpop.xlane.xlu0 %723
        %725 = vadd.xlane.f32.xlu0 %v699
        %v726 = vpop.xlane.xlu0 %725
        %727 = vadd.xlane.f32.xlu0 %v700
        %v728 = vpop.xlane.xlu0 %727
        %729 = vadd.xlane.f32.xlu0 %v701
        %v730 = vpop.xlane.xlu0 %729
        %731 = vadd.xlane.f32.xlu0 %v702
        %v732 = vpop.xlane.xlu0 %731
        %733 = vadd.xlane.f32.xlu0 %v703
        %v734 = vpop.xlane.xlu0 %733
        %735 = vadd.xlane.f32.xlu0 %v704
        %v736 = vpop.xlane.xlu0 %735
        %v737 = vmul.f32 %v706, 0.015625
        %v738 = vmul.f32 %v708, 0.015625
        %v739 = vmul.f32 %v710, 0.015625
        %v740 = vmul.f32 %v712, 0.015625
        %v741 = vmul.f32 %v714, 0.015625
        %v742 = vmul.f32 %v716, 0.015625
        %v743 = vmul.f32 %v718, 0.015625
        %v744 = vmul.f32 %v720, 0.015625
        %v745 = vmul.f32 %v722, 0.015625
        %v746 = vmul.f32 %v724, 0.015625
        %v747 = vmul.f32 %v726, 0.015625
        %v748 = vmul.f32 %v728, 0.015625
        %v749 = vmul.f32 %v730, 0.015625
        %v750 = vmul.f32 %v732, 0.015625
        %v751 = vmul.f32 %v734, 0.015625
        %v752 = vmul.f32 %v736, 0.015625
        %v753 = vadd.f32 %v737, 1e-05
        %v754 = vadd.f32 %v738, 1e-05
        %v755 = vadd.f32 %v739, 1e-05
        %v756 = vadd.f32 %v740, 1e-05
        %v757 = vadd.f32 %v741, 1e-05
        %v758 = vadd.f32 %v742, 1e-05
        %v759 = vadd.f32 %v743, 1e-05
        %v760 = vadd.f32 %v744, 1e-05
        %v761 = vadd.f32 %v745, 1e-05
        %v762 = vadd.f32 %v746, 1e-05
        %v763 = vadd.f32 %v747, 1e-05
        %v764 = vadd.f32 %v748, 1e-05
        %v765 = vadd.f32 %v749, 1e-05
        %v766 = vadd.f32 %v750, 1e-05
        %v767 = vadd.f32 %v751, 1e-05
        %v768 = vadd.f32 %v752, 1e-05
        %v769 = vrsqrt.pop %v753
        %v770 = vrsqrt.pop %v754
        %v771 = vrsqrt.pop %v755
        %v772 = vrsqrt.pop %v756
        %v773 = vrsqrt.pop %v757
        %v774 = vrsqrt.pop %v758
        %v775 = vrsqrt.pop %v759
        %v776 = vrsqrt.pop %v760
        %v777 = vrsqrt.pop %v761
        %v778 = vrsqrt.pop %v762
        %v779 = vrsqrt.pop %v763
        %v780 = vrsqrt.pop %v764
        %v781 = vrsqrt.pop %v765
        %v782 = vrsqrt.pop %v766
        %v783 = vrsqrt.pop %v767
        %v784 = vrsqrt.pop %v768
        %v785 = vmul.f32 %v673, %v769
        %v786 = vmul.f32 %v674, %v770
        %v787 = vmul.f32 %v675, %v771
        %v788 = vmul.f32 %v676, %v772
        %v789 = vmul.f32 %v677, %v773
        %v790 = vmul.f32 %v678, %v774
        %v791 = vmul.f32 %v679, %v775
        %v792 = vmul.f32 %v680, %v776
        %v793 = vmul.f32 %v681, %v777
        %v794 = vmul.f32 %v682, %v778
        %v795 = vmul.f32 %v683, %v779
        %v796 = vmul.f32 %v684, %v780
        %v797 = vmul.f32 %v685, %v781
        %v798 = vmul.f32 %v686, %v782
        %v799 = vmul.f32 %v687, %v783
        %v800 = vmul.f32 %v688, %v784
        %v801 = vmax.f32 %v785, 0.0
        %v802 = vmax.f32 %v786, 0.0
        %v803 = vmax.f32 %v787, 0.0
        %v804 = vmax.f32 %v788, 0.0
        %v805 = vmax.f32 %v789, 0.0
        %v806 = vmax.f32 %v790, 0.0
        %v807 = vmax.f32 %v791, 0.0
        %v808 = vmax.f32 %v792, 0.0
        %v809 = vmax.f32 %v793, 0.0
        %v810 = vmax.f32 %v794, 0.0
        %v811 = vmax.f32 %v795, 0.0
        %v812 = vmax.f32 %v796, 0.0
        %v813 = vmax.f32 %v797, 0.0
        %v814 = vmax.f32 %v798, 0.0
        %v815 = vmax.f32 %v799, 0.0
        %v816 = vmax.f32 %v800, 0.0
        %v817 = vpack.c.bf16 %v802, %v801
        %v818 = vpack.c.bf16 %v804, %v803
        %v819 = vpack.c.bf16 %v806, %v805
        %v820 = vpack.c.bf16 %v808, %v807
        %v821 = vpack.c.bf16 %v810, %v809
        %v822 = vpack.c.bf16 %v812, %v811
        %v823 = vpack.c.bf16 %v814, %v813
        %v824 = vpack.c.bf16 %v816, %v815
        %v825 = vld [vmem:[#allocation7] sm:$0xf]
        %v826 = vld [vmem:[#allocation7 + $0x4] sm:$0xf]
        %v827 = vld [vmem:[#allocation7 + $0x8] sm:$0xf]
        %v828 = vld [vmem:[#allocation7 + $0xc] sm:$0xf]
        %v829 = vld [vmem:[#allocation7 + $0x10] sm:$0xf]
        %v830 = vld [vmem:[#allocation7 + $0x14] sm:$0xf]
        %v831 = vld [vmem:[#allocation7 + $0x18] sm:$0xf]
        %v832 = vld [vmem:[#allocation7 + $0x1c] sm:$0xf]
        %v833 = vld [vmem:[#allocation7 + $0x20] sm:$0xf]
        %v834 = vld [vmem:[#allocation7 + $0x24] sm:$0xf]
        %v835 = vld [vmem:[#allocation7 + $0x28] sm:$0xf]
        %v836 = vld [vmem:[#allocation7 + $0x2c] sm:$0xf]
        %v837 = vld [vmem:[#allocation7 + $0x30] sm:$0xf]
        %v838 = vld [vmem:[#allocation7 + $0x34] sm:$0xf]
        %v839 = vld [vmem:[#allocation7 + $0x38] sm:$0xf]
        %v840 = vld [vmem:[#allocation7 + $0x3c] sm:$0xf]
        %v841 = vld [vmem:[%s4] sm:$0x1]
        %v843 = vlaneseq
        %v844 = vshrl.u32 %v843, 7
        %v845 = vsub.s32 0, %v844
        %v846 = vrot.slane %v841, %v845
        %v864 = vunpack.c.l.b16 %v825
        %v865 = vunpack.c.l.b16 %v826
        %v866 = vunpack.c.l.b16 %v827
        %v867 = vunpack.c.l.b16 %v828
        %v868 = vunpack.c.l.b16 %v829
        %v869 = vunpack.c.l.b16 %v830
        %v870 = vunpack.c.l.b16 %v831
        %v871 = vunpack.c.l.b16 %v832
        %v872 = vunpack.c.l.b16 %v833
        %v873 = vunpack.c.l.b16 %v834
        %v874 = vunpack.c.l.b16 %v835
        %v875 = vunpack.c.l.b16 %v836
        %v876 = vunpack.c.l.b16 %v837
        %v877 = vunpack.c.l.b16 %v838
        %v878 = vunpack.c.l.b16 %v839
        %v879 = vunpack.c.l.b16 %v840
        %v880 = vpack.c.b16 %v865, %v864
        %v881 = vpack.c.b16 %v867, %v866
        %v882 = vpack.c.b16 %v869, %v868
        %v883 = vpack.c.b16 %v871, %v870
        %v884 = vpack.c.b16 %v873, %v872
        %v885 = vpack.c.b16 %v875, %v874
        %v886 = vpack.c.b16 %v877, %v876
        %v887 = vpack.c.b16 %v879, %v878
        %896 = vmatprep.subr.bf16.mxu0 0
        %897 = vmatpush1.bf16.msra.mxu0 %v880
        %898 = vmatprep.subr.bf16.mxu0 0
        %899 = vmatpush1.bf16.msra.mxu0 %v881
        %900 = vmatprep.subr.bf16.mxu0 0
        %901 = vmatpush1.bf16.msra.mxu0 %v882
        %902 = vmatprep.subr.bf16.mxu0 0
        %903 = vmatpush1.bf16.msra.mxu0 %v883
        %904 = vmatprep.subr.bf16.mxu0 0
        %905 = vmatpush1.bf16.msra.mxu0 %v884
        %906 = vmatprep.subr.bf16.mxu0 0
        %907 = vmatpush1.bf16.msra.mxu0 %v885
        %908 = vmatprep.subr.bf16.mxu0 0
        %909 = vmatpush1.bf16.msra.mxu0 %v886
        %910 = vmatprep.subr.bf16.mxu0 0
        %911 = vmatpush1.bf16.msra.mxu0 %v887
        %912 = vmatprep.subr.bf16.mxu0 0
        %913 = vmatpush1.bf16.msra.mxu0 0
        %914 = vmatprep.subr.bf16.mxu0 0
        %915 = vmatpush1.bf16.msra.mxu0 0
        %916 = vmatprep.subr.bf16.mxu0 0
        %917 = vmatpush1.bf16.msra.mxu0 0
        %918 = vmatprep.subr.bf16.mxu0 0
        %919 = vmatpush1.bf16.msra.mxu0 0
        %920 = vmatprep.subr.bf16.mxu0 0
        %921 = vmatpush1.bf16.msra.mxu0 0
        %922 = vmatprep.subr.bf16.mxu0 0
        %923 = vmatpush1.bf16.msra.mxu0 0
        %924 = vmatprep.subr.bf16.mxu0 0
        %925 = vmatpush1.bf16.msra.mxu0 0
        %926 = vmatprep.subr.bf16.mxu0 0
        %927 = vmatpush1.bf16.msra.mxu0 0
        %928 = vmatprep.mubr.bf16.mxu0 0
        %929 = vmatmul.mubr.bf16.gmra.mrb[0].mxu0 %v817
        %v930 = vpop.f32.mrb[0].mxu0
        %v931 = vadd.f32 %v846, %v930
        %v932 = vpop.f32.mrb[0].mxu0
        %v933 = vpop.f32.mrb[0].mxu0
        %v934 = vadd.f32 %v846, %v933
        %v935 = vpop.f32.mrb[0].mxu0
        %936 = vmatprep.mubr.bf16.mxu0 0
        %937 = vmatmul.mubr.bf16.gmra.mrb[0].mxu0 %v818
        %v938 = vpop.f32.mrb[0].mxu0
        %v939 = vadd.f32 %v846, %v938
        %v940 = vpop.f32.mrb[0].mxu0
        %v941 = vpop.f32.mrb[0].mxu0
        %v942 = vadd.f32 %v846, %v941
        %v943 = vpop.f32.mrb[0].mxu0
        %944 = vmatprep.mubr.bf16.mxu0 0
        %945 = vmatmul.mubr.bf16.gmra.mrb[0].mxu0 %v819
        %v946 = vpop.f32.mrb[0].mxu0
        %v947 = vadd.f32 %v846, %v946
        %v948 = vpop.f32.mrb[0].mxu0
        %v949 = vpop.f32.mrb[0].mxu0
        %v950 = vadd.f32 %v846, %v949
        %v951 = vpop.f32.mrb[0].mxu0
        %952 = vmatprep.mubr.bf16.mxu0 0
        %953 = vmatmul.mubr.bf16.gmra.mrb[0].mxu0 %v820
        %v954 = vpop.f32.mrb[0].mxu0
        %v955 = vadd.f32 %v846, %v954
        %v956 = vpop.f32.mrb[0].mxu0
        %v957 = vpop.f32.mrb[0].mxu0
        %v958 = vadd.f32 %v846, %v957
        %v959 = vpop.f32.mrb[0].mxu0
        %960 = vmatprep.mubr.bf16.mxu0 0
        %961 = vmatmul.mubr.bf16.gmra.mrb[0].mxu0 %v821
        %v962 = vpop.f32.mrb[0].mxu0
        %v963 = vadd.f32 %v846, %v962
        %v964 = vpop.f32.mrb[0].mxu0
        %v965 = vpop.f32.mrb[0].mxu0
        %v966 = vadd.f32 %v846, %v965
        %v967 = vpop.f32.mrb[0].mxu0
        %968 = vmatprep.mubr.bf16.mxu0 0
        %969 = vmatmul.mubr.bf16.gmra.mrb[0].mxu0 %v822
        %v970 = vpop.f32.mrb[0].mxu0
        %v971 = vadd.f32 %v846, %v970
        %v972 = vpop.f32.mrb[0].mxu0
        %v973 = vpop.f32.mrb[0].mxu0
        %v974 = vadd.f32 %v846, %v973
        %v975 = vpop.f32.mrb[0].mxu0
        %976 = vmatprep.mubr.bf16.mxu0 0
        %977 = vmatmul.mubr.bf16.gmra.mrb[0].mxu0 %v823
        %v978 = vpop.f32.mrb[0].mxu0
        %v979 = vadd.f32 %v846, %v978
        %v980 = vpop.f32.mrb[0].mxu0
        %v981 = vpop.f32.mrb[0].mxu0
        %v982 = vadd.f32 %v846, %v981
        %v983 = vpop.f32.mrb[0].mxu0
        %984 = vmatprep.mubr.bf16.mxu0 0
        %985 = vmatmul.mubr.bf16.gmra.mrb[0].mxu0 %v824
        %v986 = vpop.f32.mrb[0].mxu0
        %v987 = vadd.f32 %v846, %v986
        %v988 = vpop.f32.mrb[0].mxu0
        %v989 = vpop.f32.mrb[0].mxu0
        %v990 = vadd.f32 %v846, %v989
        %v991 = vpop.f32.mrb[0].mxu0
        %992 = vdwg.mxu0
        %993 = vadd.xlane.f32.xlu0 %v931
        %v994 = vpop.xlane.xlu0 %993
        %995 = vadd.xlane.f32.xlu0 %v934
        %v996 = vpop.xlane.xlu0 %995
        %997 = vadd.xlane.f32.xlu0 %v939
        %v998 = vpop.xlane.xlu0 %997
        %999 = vadd.xlane.f32.xlu0 %v942
        %v1000 = vpop.xlane.xlu0 %999
        %1001 = vadd.xlane.f32.xlu0 %v947
        %v1002 = vpop.xlane.xlu0 %1001
        %1003 = vadd.xlane.f32.xlu0 %v950
        %v1004 = vpop.xlane.xlu0 %1003
        %1005 = vadd.xlane.f32.xlu0 %v955
        %v1006 = vpop.xlane.xlu0 %1005
        %1007 = vadd.xlane.f32.xlu0 %v958
        %v1008 = vpop.xlane.xlu0 %1007
        %1009 = vadd.xlane.f32.xlu0 %v963
        %v1010 = vpop.xlane.xlu0 %1009
        %1011 = vadd.xlane.f32.xlu0 %v966
        %v1012 = vpop.xlane.xlu0 %1011
        %1013 = vadd.xlane.f32.xlu0 %v971
        %v1014 = vpop.xlane.xlu0 %1013
        %1015 = vadd.xlane.f32.xlu0 %v974
        %v1016 = vpop.xlane.xlu0 %1015
        %1017 = vadd.xlane.f32.xlu0 %v979
        %v1018 = vpop.xlane.xlu0 %1017
        %1019 = vadd.xlane.f32.xlu0 %v982
        %v1020 = vpop.xlane.xlu0 %1019
        %1021 = vadd.xlane.f32.xlu0 %v987
        %v1022 = vpop.xlane.xlu0 %1021
        %1023 = vadd.xlane.f32.xlu0 %v990
        %v1024 = vpop.xlane.xlu0 %1023
        %v1025 = vmul.f32 %v994, 0.015625
        %v1026 = vmul.f32 %v996, 0.015625
        %v1027 = vmul.f32 %v998, 0.015625
        %v1028 = vmul.f32 %v1000, 0.015625
        %v1029 = vmul.f32 %v1002, 0.015625
        %v1030 = vmul.f32 %v1004, 0.015625
        %v1031 = vmul.f32 %v1006, 0.015625
        %v1032 = vmul.f32 %v1008, 0.015625
        %v1033 = vmul.f32 %v1010, 0.015625
        %v1034 = vmul.f32 %v1012, 0.015625
        %v1035 = vmul.f32 %v1014, 0.015625
        %v1036 = vmul.f32 %v1016, 0.015625
        %v1037 = vmul.f32 %v1018, 0.015625
        %v1038 = vmul.f32 %v1020, 0.015625
        %v1039 = vmul.f32 %v1022, 0.015625
        %v1040 = vmul.f32 %v1024, 0.015625
        %v1041 = vsub.f32 %v931, %v1025
        %v1042 = vsub.f32 %v934, %v1026
        %v1043 = vsub.f32 %v939, %v1027
        %v1044 = vsub.f32 %v942, %v1028
        %v1045 = vsub.f32 %v947, %v1029
        %v1046 = vsub.f32 %v950, %v1030
        %v1047 = vsub.f32 %v955, %v1031
        %v1048 = vsub.f32 %v958, %v1032
        %v1049 = vsub.f32 %v963, %v1033
        %v1050 = vsub.f32 %v966, %v1034
        %v1051 = vsub.f32 %v971, %v1035
        %v1052 = vsub.f32 %v974, %v1036
        %v1053 = vsub.f32 %v979, %v1037
        %v1054 = vsub.f32 %v982, %v1038
        %v1055 = vsub.f32 %v987, %v1039
        %v1056 = vsub.f32 %v990, %v1040
        %v1057 = vsel %vm672, %v1041, 0.0
        %v1058 = vsel %vm672, %v1042, 0.0
        %v1059 = vsel %vm672, %v1043, 0.0
        %v1060 = vsel %vm672, %v1044, 0.0
        %v1061 = vsel %vm672, %v1045, 0.0
        %v1062 = vsel %vm672, %v1046, 0.0
        %v1063 = vsel %vm672, %v1047, 0.0
        %v1064 = vsel %vm672, %v1048, 0.0
        %v1065 = vsel %vm672, %v1049, 0.0
        %v1066 = vsel %vm672, %v1050, 0.0
        %v1067 = vsel %vm672, %v1051, 0.0
        %v1068 = vsel %vm672, %v1052, 0.0
        %v1069 = vsel %vm672, %v1053, 0.0
        %v1070 = vsel %vm672, %v1054, 0.0
        %v1071 = vsel %vm672, %v1055, 0.0
        %v1072 = vsel %vm672, %v1056, 0.0
        %v1073 = vmul.f32 %v1057, %v1057
        %v1074 = vmul.f32 %v1058, %v1058
        %v1075 = vmul.f32 %v1059, %v1059
        %v1076 = vmul.f32 %v1060, %v1060
        %v1077 = vmul.f32 %v1061, %v1061
        %v1078 = vmul.f32 %v1062, %v1062
        %v1079 = vmul.f32 %v1063, %v1063
        %v1080 = vmul.f32 %v1064, %v1064
        %v1081 = vmul.f32 %v1065, %v1065
        %v1082 = vmul.f32 %v1066, %v1066
        %v1083 = vmul.f32 %v1067, %v1067
        %v1084 = vmul.f32 %v1068, %v1068
        %v1085 = vmul.f32 %v1069, %v1069
        %v1086 = vmul.f32 %v1070, %v1070
        %v1087 = vmul.f32 %v1071, %v1071
        %v1088 = vmul.f32 %v1072, %v1072
        %1089 = vadd.xlane.f32.xlu0 %v1073
        %v1090 = vpop.xlane.xlu0 %1089
        %1091 = vadd.xlane.f32.xlu0 %v1074
        %v1092 = vpop.xlane.xlu0 %1091
        %1093 = vadd.xlane.f32.xlu0 %v1075
        %v1094 = vpop.xlane.xlu0 %1093
        %1095 = vadd.xlane.f32.xlu0 %v1076
        %v1096 = vpop.xlane.xlu0 %1095
        %1097 = vadd.xlane.f32.xlu0 %v1077
        %v1098 = vpop.xlane.xlu0 %1097
        %1099 = vadd.xlane.f32.xlu0 %v1078
        %v1100 = vpop.xlane.xlu0 %1099
        %1101 = vadd.xlane.f32.xlu0 %v1079
        %v1102 = vpop.xlane.xlu0 %1101
        %1103 = vadd.xlane.f32.xlu0 %v1080
        %v1104 = vpop.xlane.xlu0 %1103
        %1105 = vadd.xlane.f32.xlu0 %v1081
        %v1106 = vpop.xlane.xlu0 %1105
        %1107 = vadd.xlane.f32.xlu0 %v1082
        %v1108 = vpop.xlane.xlu0 %1107
        %1109 = vadd.xlane.f32.xlu0 %v1083
        %v1110 = vpop.xlane.xlu0 %1109
        %1111 = vadd.xlane.f32.xlu0 %v1084
        %v1112 = vpop.xlane.xlu0 %1111
        %1113 = vadd.xlane.f32.xlu0 %v1085
        %v1114 = vpop.xlane.xlu0 %1113
        %1115 = vadd.xlane.f32.xlu0 %v1086
        %v1116 = vpop.xlane.xlu0 %1115
        %1117 = vadd.xlane.f32.xlu0 %v1087
        %v1118 = vpop.xlane.xlu0 %1117
        %1119 = vadd.xlane.f32.xlu0 %v1088
        %v1120 = vpop.xlane.xlu0 %1119
        %v1121 = vmul.f32 %v1090, 0.015625
        %v1122 = vmul.f32 %v1092, 0.015625
        %v1123 = vmul.f32 %v1094, 0.015625
        %v1124 = vmul.f32 %v1096, 0.015625
        %v1125 = vmul.f32 %v1098, 0.015625
        %v1126 = vmul.f32 %v1100, 0.015625
        %v1127 = vmul.f32 %v1102, 0.015625
        %v1128 = vmul.f32 %v1104, 0.015625
        %v1129 = vmul.f32 %v1106, 0.015625
        %v1130 = vmul.f32 %v1108, 0.015625
        %v1131 = vmul.f32 %v1110, 0.015625
        %v1132 = vmul.f32 %v1112, 0.015625
        %v1133 = vmul.f32 %v1114, 0.015625
        %v1134 = vmul.f32 %v1116, 0.015625
        %v1135 = vmul.f32 %v1118, 0.015625
        %v1136 = vmul.f32 %v1120, 0.015625
        %v1137 = vadd.f32 %v1121, 1e-05
        %v1138 = vadd.f32 %v1122, 1e-05
        %v1139 = vadd.f32 %v1123, 1e-05
        %v1140 = vadd.f32 %v1124, 1e-05
        %v1141 = vadd.f32 %v1125, 1e-05
        %v1142 = vadd.f32 %v1126, 1e-05
        %v1143 = vadd.f32 %v1127, 1e-05
        %v1144 = vadd.f32 %v1128, 1e-05
        %v1145 = vadd.f32 %v1129, 1e-05
        %v1146 = vadd.f32 %v1130, 1e-05
        %v1147 = vadd.f32 %v1131, 1e-05
        %v1148 = vadd.f32 %v1132, 1e-05
        %v1149 = vadd.f32 %v1133, 1e-05
        %v1150 = vadd.f32 %v1134, 1e-05
        %v1151 = vadd.f32 %v1135, 1e-05
        %v1152 = vadd.f32 %v1136, 1e-05
        %v1153 = vrsqrt.pop %v1137
        %v1154 = vrsqrt.pop %v1138
        %v1155 = vrsqrt.pop %v1139
        %v1156 = vrsqrt.pop %v1140
        %v1157 = vrsqrt.pop %v1141
        %v1158 = vrsqrt.pop %v1142
        %v1159 = vrsqrt.pop %v1143
        %v1160 = vrsqrt.pop %v1144
        %v1161 = vrsqrt.pop %v1145
        %v1162 = vrsqrt.pop %v1146
        %v1163 = vrsqrt.pop %v1147
        %v1164 = vrsqrt.pop %v1148
        %v1165 = vrsqrt.pop %v1149
        %v1166 = vrsqrt.pop %v1150
        %v1167 = vrsqrt.pop %v1151
        %v1168 = vrsqrt.pop %v1152
        %v1169 = vmul.f32 %v1057, %v1153
        %v1170 = vmul.f32 %v1058, %v1154
        %v1171 = vmul.f32 %v1059, %v1155
        %v1172 = vmul.f32 %v1060, %v1156
        %v1173 = vmul.f32 %v1061, %v1157
        %v1174 = vmul.f32 %v1062, %v1158
        %v1175 = vmul.f32 %v1063, %v1159
        %v1176 = vmul.f32 %v1064, %v1160
        %v1177 = vmul.f32 %v1065, %v1161
        %v1178 = vmul.f32 %v1066, %v1162
        %v1179 = vmul.f32 %v1067, %v1163
        %v1180 = vmul.f32 %v1068, %v1164
        %v1181 = vmul.f32 %v1069, %v1165
        %v1182 = vmul.f32 %v1070, %v1166
        %v1183 = vmul.f32 %v1071, %v1167
        %v1184 = vmul.f32 %v1072, %v1168
        %v1185 = vmax.f32 %v1169, 0.0
        %v1186 = vmax.f32 %v1170, 0.0
        %v1187 = vmax.f32 %v1171, 0.0
        %v1188 = vmax.f32 %v1172, 0.0
        %v1189 = vmax.f32 %v1173, 0.0
        %v1190 = vmax.f32 %v1174, 0.0
        %v1191 = vmax.f32 %v1175, 0.0
        %v1192 = vmax.f32 %v1176, 0.0
        %v1193 = vmax.f32 %v1177, 0.0
        %v1194 = vmax.f32 %v1178, 0.0
        %v1195 = vmax.f32 %v1179, 0.0
        %v1196 = vmax.f32 %v1180, 0.0
        %v1197 = vmax.f32 %v1181, 0.0
        %v1198 = vmax.f32 %v1182, 0.0
        %v1199 = vmax.f32 %v1183, 0.0
        %v1200 = vmax.f32 %v1184, 0.0
        %v1201 = vpack.c.bf16 %v1186, %v1185
        %v1202 = vpack.c.bf16 %v1188, %v1187
        %v1203 = vpack.c.bf16 %v1190, %v1189
        %v1204 = vpack.c.bf16 %v1192, %v1191
        %v1205 = vpack.c.bf16 %v1194, %v1193
        %v1206 = vpack.c.bf16 %v1196, %v1195
        %v1207 = vpack.c.bf16 %v1198, %v1197
        %v1208 = vpack.c.bf16 %v1200, %v1199
        %v1209 = vld [vmem:[#allocation8] sm:$0xff]
        %v1210 = vld [vmem:[#allocation8 + $0x8] sm:$0xff]
        %v1211 = vld [vmem:[#allocation8 + $0x10] sm:$0xff]
        %v1212 = vld [vmem:[#allocation8 + $0x18] sm:$0xff]
        %v1213 = vld [vmem:[#allocation8 + $0x20] sm:$0xff]
        %v1214 = vld [vmem:[#allocation8 + $0x28] sm:$0xff]
        %v1215 = vld [vmem:[#allocation8 + $0x30] sm:$0xff]
        %v1216 = vld [vmem:[#allocation8 + $0x38] sm:$0xff]
        %v1217 = vld [vmem:[#allocation8 + $0x40] sm:$0xff]
        %v1218 = vld [vmem:[#allocation8 + $0x48] sm:$0xff]
        %v1219 = vld [vmem:[#allocation8 + $0x50] sm:$0xff]
        %v1220 = vld [vmem:[#allocation8 + $0x58] sm:$0xff]
        %v1221 = vld [vmem:[#allocation8 + $0x60] sm:$0xff]
        %v1222 = vld [vmem:[#allocation8 + $0x68] sm:$0xff]
        %v1223 = vld [vmem:[#allocation8 + $0x70] sm:$0xff]
        %v1224 = vld [vmem:[#allocation8 + $0x78] sm:$0xff]
        %v1225 = vld [vmem:[#allocation8 + $0x80] sm:$0xff]
        %v1226 = vld [vmem:[#allocation8 + $0x88] sm:$0xff]
        %v1227 = vld [vmem:[#allocation8 + $0x90] sm:$0xff]
        %v1228 = vld [vmem:[#allocation8 + $0x98] sm:$0xff]
        %v1229 = vld [vmem:[#allocation8 + $0xa0] sm:$0xff]
        %v1230 = vld [vmem:[#allocation8 + $0xa8] sm:$0xff]
        %v1231 = vld [vmem:[#allocation8 + $0xb0] sm:$0xff]
        %v1232 = vld [vmem:[#allocation8 + $0xb8] sm:$0xff]
        %v1233 = vld [vmem:[#allocation8 + $0xc0] sm:$0xff]
        %v1234 = vld [vmem:[#allocation8 + $0xc8] sm:$0xff]
        %v1235 = vld [vmem:[#allocation8 + $0xd0] sm:$0xff]
        %v1236 = vld [vmem:[#allocation8 + $0xd8] sm:$0xff]
        %v1237 = vld [vmem:[#allocation8 + $0xe0] sm:$0xff]
        %v1238 = vld [vmem:[#allocation8 + $0xe8] sm:$0xff]
        %v1239 = vld [vmem:[#allocation8 + $0xf0] sm:$0xff]
        %v1240 = vld [vmem:[#allocation8 + $0xf8] sm:$0xff]
        %v1241 = vld [vmem:[#allocation8 + $0x100] sm:$0xff]
        %v1242 = vld [vmem:[#allocation8 + $0x108] sm:$0xff]
        %v1243 = vld [vmem:[#allocation8 + $0x110] sm:$0xff]
        %v1244 = vld [vmem:[#allocation8 + $0x118] sm:$0xff]
        %v1245 = vld [vmem:[#allocation8 + $0x120] sm:$0xff]
        %v1246 = vld [vmem:[#allocation8 + $0x128] sm:$0xff]
        %v1247 = vld [vmem:[#allocation8 + $0x130] sm:$0xff]
        %v1248 = vld [vmem:[#allocation8 + $0x138] sm:$0xff]
        %v1249 = vld [vmem:[#allocation8 + $0x140] sm:$0xff]
        %v1250 = vld [vmem:[#allocation8 + $0x148] sm:$0xff]
        %v1251 = vld [vmem:[#allocation8 + $0x150] sm:$0xff]
        %v1252 = vld [vmem:[#allocation8 + $0x158] sm:$0xff]
        %v1253 = vld [vmem:[#allocation8 + $0x160] sm:$0xff]
        %v1254 = vld [vmem:[#allocation8 + $0x168] sm:$0xff]
        %v1255 = vld [vmem:[#allocation8 + $0x170] sm:$0xff]
        %v1256 = vld [vmem:[#allocation8 + $0x178] sm:$0xff]
        %v1257 = vld [vmem:[#allocation8 + $0x180] sm:$0xff]
        %v1258 = vld [vmem:[#allocation8 + $0x188] sm:$0xff]
        %v1259 = vld [vmem:[#allocation8 + $0x190] sm:$0xff]
        %v1260 = vld [vmem:[#allocation8 + $0x198] sm:$0xff]
        %v1261 = vld [vmem:[#allocation8 + $0x1a0] sm:$0xff]
        %v1262 = vld [vmem:[#allocation8 + $0x1a8] sm:$0xff]
        %v1263 = vld [vmem:[#allocation8 + $0x1b0] sm:$0xff]
        %v1264 = vld [vmem:[#allocation8 + $0x1b8] sm:$0xff]
        %v1265 = vld [vmem:[#allocation8 + $0x1c0] sm:$0xff]
        %v1266 = vld [vmem:[#allocation8 + $0x1c8] sm:$0xff]
        %v1267 = vld [vmem:[#allocation8 + $0x1d0] sm:$0xff]
        %v1268 = vld [vmem:[#allocation8 + $0x1d8] sm:$0xff]
        %v1269 = vld [vmem:[#allocation8 + $0x1e0] sm:$0xff]
        %v1270 = vld [vmem:[#allocation8 + $0x1e8] sm:$0xff]
        %v1271 = vld [vmem:[#allocation8 + $0x1f0] sm:$0xff]
        %v1272 = vld [vmem:[#allocation8 + $0x1f8] sm:$0xff]
        %v1273 = vld [vmem:[#allocation8 + $0x200] sm:$0xff]
        %v1274 = vld [vmem:[#allocation8 + $0x208] sm:$0xff]
        %v1275 = vld [vmem:[#allocation8 + $0x210] sm:$0xff]
        %v1276 = vld [vmem:[#allocation8 + $0x218] sm:$0xff]
        %v1277 = vld [vmem:[#allocation8 + $0x220] sm:$0xff]
        %v1278 = vld [vmem:[#allocation8 + $0x228] sm:$0xff]
        %v1279 = vld [vmem:[#allocation8 + $0x230] sm:$0xff]
        %v1280 = vld [vmem:[#allocation8 + $0x238] sm:$0xff]
        %v1281 = vld [vmem:[#allocation8 + $0x240] sm:$0xff]
        %v1282 = vld [vmem:[#allocation8 + $0x248] sm:$0xff]
        %v1283 = vld [vmem:[#allocation8 + $0x250] sm:$0xff]
        %v1284 = vld [vmem:[#allocation8 + $0x258] sm:$0xff]
        %v1285 = vld [vmem:[#allocation8 + $0x260] sm:$0xff]
        %v1286 = vld [vmem:[#allocation8 + $0x268] sm:$0xff]
        %v1287 = vld [vmem:[#allocation8 + $0x270] sm:$0xff]
        %v1288 = vld [vmem:[#allocation8 + $0x278] sm:$0xff]
        %v1289 = vld [vmem:[#allocation8 + $0x280] sm:$0xff]
        %v1290 = vld [vmem:[#allocation8 + $0x288] sm:$0xff]
        %v1291 = vld [vmem:[#allocation8 + $0x290] sm:$0xff]
        %v1292 = vld [vmem:[#allocation8 + $0x298] sm:$0xff]
        %v1293 = vld [vmem:[#allocation8 + $0x2a0] sm:$0xff]
        %v1294 = vld [vmem:[#allocation8 + $0x2a8] sm:$0xff]
        %v1295 = vld [vmem:[#allocation8 + $0x2b0] sm:$0xff]
        %v1296 = vld [vmem:[#allocation8 + $0x2b8] sm:$0xff]
        %v1297 = vld [vmem:[#allocation8 + $0x2c0] sm:$0xff]
        %v1298 = vld [vmem:[#allocation8 + $0x2c8] sm:$0xff]
        %v1299 = vld [vmem:[#allocation8 + $0x2d0] sm:$0xff]
        %v1300 = vld [vmem:[#allocation8 + $0x2d8] sm:$0xff]
        %v1301 = vld [vmem:[#allocation8 + $0x2e0] sm:$0xff]
        %v1302 = vld [vmem:[#allocation8 + $0x2e8] sm:$0xff]
        %v1303 = vld [vmem:[#allocation8 + $0x2f0] sm:$0xff]
        %v1304 = vld [vmem:[#allocation8 + $0x2f8] sm:$0xff]
        %v1305 = vld [vmem:[#allocation8 + $0x300] sm:$0xff]
        %v1306 = vld [vmem:[#allocation8 + $0x308] sm:$0xff]
        %v1307 = vld [vmem:[#allocation8 + $0x310] sm:$0xff]
        %v1308 = vld [vmem:[#allocation8 + $0x318] sm:$0xff]
        %v1309 = vld [vmem:[#allocation8 + $0x320] sm:$0xff]
        %v1310 = vld [vmem:[#allocation8 + $0x328] sm:$0xff]
        %v1311 = vld [vmem:[#allocation8 + $0x330] sm:$0xff]
        %v1312 = vld [vmem:[#allocation8 + $0x338] sm:$0xff]
        %v1313 = vld [vmem:[#allocation8 + $0x340] sm:$0xff]
        %v1314 = vld [vmem:[#allocation8 + $0x348] sm:$0xff]
        %v1315 = vld [vmem:[#allocation8 + $0x350] sm:$0xff]
        %v1316 = vld [vmem:[#allocation8 + $0x358] sm:$0xff]
        %v1317 = vld [vmem:[#allocation8 + $0x360] sm:$0xff]
        %v1318 = vld [vmem:[#allocation8 + $0x368] sm:$0xff]
        %v1319 = vld [vmem:[#allocation8 + $0x370] sm:$0xff]
        %v1320 = vld [vmem:[#allocation8 + $0x378] sm:$0xff]
        %v1321 = vld [vmem:[#allocation8 + $0x380] sm:$0xff]
        %v1322 = vld [vmem:[#allocation8 + $0x388] sm:$0xff]
        %v1323 = vld [vmem:[#allocation8 + $0x390] sm:$0xff]
        %v1324 = vld [vmem:[#allocation8 + $0x398] sm:$0xff]
        %v1325 = vld [vmem:[#allocation8 + $0x3a0] sm:$0xff]
        %v1326 = vld [vmem:[#allocation8 + $0x3a8] sm:$0xff]
        %v1327 = vld [vmem:[#allocation8 + $0x3b0] sm:$0xff]
        %v1328 = vld [vmem:[#allocation8 + $0x3b8] sm:$0xff]
        %v1329 = vld [vmem:[#allocation8 + $0x3c0] sm:$0xff]
        %v1330 = vld [vmem:[#allocation8 + $0x3c8] sm:$0xff]
        %v1331 = vld [vmem:[#allocation8 + $0x3d0] sm:$0xff]
        %v1332 = vld [vmem:[#allocation8 + $0x3d8] sm:$0xff]
        %v1333 = vld [vmem:[#allocation8 + $0x3e0] sm:$0xff]
        %v1334 = vld [vmem:[#allocation8 + $0x3e8] sm:$0xff]
        %v1335 = vld [vmem:[#allocation8 + $0x3f0] sm:$0xff]
        %v1336 = vld [vmem:[#allocation8 + $0x3f8] sm:$0xff]
        %v1337 = vld [vmem:[%s6] sm:$0xff]
        %v1338 = vld [vmem:[%s6 + $0x8] sm:$0xff]
        %v1341 = vlaneseq
        %v1342 = vshrl.u32 %v1341, 7
        %v1343 = vsub.s32 0, %v1342
        %v1344 = vrot.slane %v1337, %v1343
        %v1345 = vlaneseq
        %v1346 = vshrl.u32 %v1345, 7
        %v1347 = vsub.s32 1, %v1346
        %v1348 = vrot.slane %v1337, %v1347
        %v1349 = vlaneseq
        %v1350 = vshrl.u32 %v1349, 7
        %v1351 = vsub.s32 2, %v1350
        %v1352 = vrot.slane %v1337, %v1351
        %v1353 = vlaneseq
        %v1354 = vshrl.u32 %v1353, 7
        %v1355 = vsub.s32 3, %v1354
        %v1356 = vrot.slane %v1337, %v1355
        %v1357 = vlaneseq
        %v1358 = vshrl.u32 %v1357, 7
        %v1359 = vsub.s32 4, %v1358
        %v1360 = vrot.slane %v1337, %v1359
        %v1361 = vlaneseq
        %v1362 = vshrl.u32 %v1361, 7
        %v1363 = vsub.s32 5, %v1362
        %v1364 = vrot.slane %v1337, %v1363
        %v1365 = vlaneseq
        %v1366 = vshrl.u32 %v1365, 7
        %v1367 = vsub.s32 6, %v1366
        %v1368 = vrot.slane %v1337, %v1367
        %v1369 = vlaneseq
        %v1370 = vshrl.u32 %v1369, 7
        %v1371 = vsub.s32 7, %v1370
        %v1372 = vrot.slane %v1337, %v1371
        %v1373 = vlaneseq
        %v1374 = vshrl.u32 %v1373, 7
        %v1375 = vsub.s32 0, %v1374
        %v1376 = vrot.slane %v1338, %v1375
        %v1377 = vlaneseq
        %v1378 = vshrl.u32 %v1377, 7
        %v1379 = vsub.s32 1, %v1378
        %v1380 = vrot.slane %v1338, %v1379
        %v1381 = vlaneseq
        %v1382 = vshrl.u32 %v1381, 7
        %v1383 = vsub.s32 2, %v1382
        %v1384 = vrot.slane %v1338, %v1383
        %v1385 = vlaneseq
        %v1386 = vshrl.u32 %v1385, 7
        %v1387 = vsub.s32 3, %v1386
        %v1388 = vrot.slane %v1338, %v1387
        %v1389 = vlaneseq
        %v1390 = vshrl.u32 %v1389, 7
        %v1391 = vsub.s32 4, %v1390
        %v1392 = vrot.slane %v1338, %v1391
        %v1393 = vlaneseq
        %v1394 = vshrl.u32 %v1393, 7
        %v1395 = vsub.s32 5, %v1394
        %v1396 = vrot.slane %v1338, %v1395
        %v1397 = vlaneseq
        %v1398 = vshrl.u32 %v1397, 7
        %v1399 = vsub.s32 6, %v1398
        %v1400 = vrot.slane %v1338, %v1399
        %v1401 = vlaneseq
        %v1402 = vshrl.u32 %v1401, 7
        %v1403 = vsub.s32 7, %v1402
        %v1404 = vrot.slane %v1338, %v1403
        %v1549 = vunpack.c.l.b16 %v1209
        %v1550 = vunpack.c.h.b16 %v1209
        %v1551 = vunpack.c.l.b16 %v1210
        %v1552 = vunpack.c.h.b16 %v1210
        %v1553 = vunpack.c.l.b16 %v1211
        %v1554 = vunpack.c.h.b16 %v1211
        %v1555 = vunpack.c.l.b16 %v1212
        %v1556 = vunpack.c.h.b16 %v1212
        %v1557 = vunpack.c.l.b16 %v1213
        %v1558 = vunpack.c.h.b16 %v1213
        %v1559 = vunpack.c.l.b16 %v1214
        %v1560 = vunpack.c.h.b16 %v1214
        %v1561 = vunpack.c.l.b16 %v1215
        %v1562 = vunpack.c.h.b16 %v1215
        %v1563 = vunpack.c.l.b16 %v1216
        %v1564 = vunpack.c.h.b16 %v1216
        %v1565 = vunpack.c.l.b16 %v1217
        %v1566 = vunpack.c.h.b16 %v1217
        %v1567 = vunpack.c.l.b16 %v1218
        %v1568 = vunpack.c.h.b16 %v1218
        %v1569 = vunpack.c.l.b16 %v1219
        %v1570 = vunpack.c.h.b16 %v1219
        %v1571 = vunpack.c.l.b16 %v1220
        %v1572 = vunpack.c.h.b16 %v1220
        %v1573 = vunpack.c.l.b16 %v1221
        %v1574 = vunpack.c.h.b16 %v1221
        %v1575 = vunpack.c.l.b16 %v1222
        %v1576 = vunpack.c.h.b16 %v1222
        %v1577 = vunpack.c.l.b16 %v1223
        %v1578 = vunpack.c.h.b16 %v1223
        %v1579 = vunpack.c.l.b16 %v1224
        %v1580 = vunpack.c.h.b16 %v1224
        %v1581 = vunpack.c.l.b16 %v1225
        %v1582 = vunpack.c.h.b16 %v1225
        %v1583 = vunpack.c.l.b16 %v1226
        %v1584 = vunpack.c.h.b16 %v1226
        %v1585 = vunpack.c.l.b16 %v1227
        %v1586 = vunpack.c.h.b16 %v1227
        %v1587 = vunpack.c.l.b16 %v1228
        %v1588 = vunpack.c.h.b16 %v1228
        %v1589 = vunpack.c.l.b16 %v1229
        %v1590 = vunpack.c.h.b16 %v1229
        %v1591 = vunpack.c.l.b16 %v1230
        %v1592 = vunpack.c.h.b16 %v1230
        %v1593 = vunpack.c.l.b16 %v1231
        %v1594 = vunpack.c.h.b16 %v1231
        %v1595 = vunpack.c.l.b16 %v1232
        %v1596 = vunpack.c.h.b16 %v1232
        %v1597 = vunpack.c.l.b16 %v1233
        %v1598 = vunpack.c.h.b16 %v1233
        %v1599 = vunpack.c.l.b16 %v1234
        %v1600 = vunpack.c.h.b16 %v1234
        %v1601 = vunpack.c.l.b16 %v1235
        %v1602 = vunpack.c.h.b16 %v1235
        %v1603 = vunpack.c.l.b16 %v1236
        %v1604 = vunpack.c.h.b16 %v1236
        %v1605 = vunpack.c.l.b16 %v1237
        %v1606 = vunpack.c.h.b16 %v1237
        %v1607 = vunpack.c.l.b16 %v1238
        %v1608 = vunpack.c.h.b16 %v1238
        %v1609 = vunpack.c.l.b16 %v1239
        %v1610 = vunpack.c.h.b16 %v1239
        %v1611 = vunpack.c.l.b16 %v1240
        %v1612 = vunpack.c.h.b16 %v1240
        %v1613 = vunpack.c.l.b16 %v1241
        %v1614 = vunpack.c.h.b16 %v1241
        %v1615 = vunpack.c.l.b16 %v1242
        %v1616 = vunpack.c.h.b16 %v1242
        %v1617 = vunpack.c.l.b16 %v1243
        %v1618 = vunpack.c.h.b16 %v1243
        %v1619 = vunpack.c.l.b16 %v1244
        %v1620 = vunpack.c.h.b16 %v1244
        %v1621 = vunpack.c.l.b16 %v1245
        %v1622 = vunpack.c.h.b16 %v1245
        %v1623 = vunpack.c.l.b16 %v1246
        %v1624 = vunpack.c.h.b16 %v1246
        %v1625 = vunpack.c.l.b16 %v1247
        %v1626 = vunpack.c.h.b16 %v1247
        %v1627 = vunpack.c.l.b16 %v1248
        %v1628 = vunpack.c.h.b16 %v1248
        %v1629 = vunpack.c.l.b16 %v1249
        %v1630 = vunpack.c.h.b16 %v1249
        %v1631 = vunpack.c.l.b16 %v1250
        %v1632 = vunpack.c.h.b16 %v1250
        %v1633 = vunpack.c.l.b16 %v1251
        %v1634 = vunpack.c.h.b16 %v1251
        %v1635 = vunpack.c.l.b16 %v1252
        %v1636 = vunpack.c.h.b16 %v1252
        %v1637 = vunpack.c.l.b16 %v1253
        %v1638 = vunpack.c.h.b16 %v1253
        %v1639 = vunpack.c.l.b16 %v1254
        %v1640 = vunpack.c.h.b16 %v1254
        %v1641 = vunpack.c.l.b16 %v1255
        %v1642 = vunpack.c.h.b16 %v1255
        %v1643 = vunpack.c.l.b16 %v1256
        %v1644 = vunpack.c.h.b16 %v1256
        %v1645 = vunpack.c.l.b16 %v1257
        %v1646 = vunpack.c.h.b16 %v1257
        %v1647 = vunpack.c.l.b16 %v1258
        %v1648 = vunpack.c.h.b16 %v1258
        %v1649 = vunpack.c.l.b16 %v1259
        %v1650 = vunpack.c.h.b16 %v1259
        %v1651 = vunpack.c.l.b16 %v1260
        %v1652 = vunpack.c.h.b16 %v1260
        %v1653 = vunpack.c.l.b16 %v1261
        %v1654 = vunpack.c.h.b16 %v1261
        %v1655 = vunpack.c.l.b16 %v1262
        %v1656 = vunpack.c.h.b16 %v1262
        %v1657 = vunpack.c.l.b16 %v1263
        %v1658 = vunpack.c.h.b16 %v1263
        %v1659 = vunpack.c.l.b16 %v1264
        %v1660 = vunpack.c.h.b16 %v1264
        %v1661 = vunpack.c.l.b16 %v1265
        %v1662 = vunpack.c.h.b16 %v1265
        %v1663 = vunpack.c.l.b16 %v1266
        %v1664 = vunpack.c.h.b16 %v1266
        %v1665 = vunpack.c.l.b16 %v1267
        %v1666 = vunpack.c.h.b16 %v1267
        %v1667 = vunpack.c.l.b16 %v1268
        %v1668 = vunpack.c.h.b16 %v1268
        %v1669 = vunpack.c.l.b16 %v1269
        %v1670 = vunpack.c.h.b16 %v1269
        %v1671 = vunpack.c.l.b16 %v1270
        %v1672 = vunpack.c.h.b16 %v1270
        %v1673 = vunpack.c.l.b16 %v1271
        %v1674 = vunpack.c.h.b16 %v1271
        %v1675 = vunpack.c.l.b16 %v1272
        %v1676 = vunpack.c.h.b16 %v1272
        %v1677 = vunpack.c.l.b16 %v1273
        %v1678 = vunpack.c.h.b16 %v1273
        %v1679 = vunpack.c.l.b16 %v1274
        %v1680 = vunpack.c.h.b16 %v1274
        %v1681 = vunpack.c.l.b16 %v1275
        %v1682 = vunpack.c.h.b16 %v1275
        %v1683 = vunpack.c.l.b16 %v1276
        %v1684 = vunpack.c.h.b16 %v1276
        %v1685 = vunpack.c.l.b16 %v1277
        %v1686 = vunpack.c.h.b16 %v1277
        %v1687 = vunpack.c.l.b16 %v1278
        %v1688 = vunpack.c.h.b16 %v1278
        %v1689 = vunpack.c.l.b16 %v1279
        %v1690 = vunpack.c.h.b16 %v1279
        %v1691 = vunpack.c.l.b16 %v1280
        %v1692 = vunpack.c.h.b16 %v1280
        %v1693 = vunpack.c.l.b16 %v1281
        %v1694 = vunpack.c.h.b16 %v1281
        %v1695 = vunpack.c.l.b16 %v1282
        %v1696 = vunpack.c.h.b16 %v1282
        %v1697 = vunpack.c.l.b16 %v1283
        %v1698 = vunpack.c.h.b16 %v1283
        %v1699 = vunpack.c.l.b16 %v1284
        %v1700 = vunpack.c.h.b16 %v1284
        %v1701 = vunpack.c.l.b16 %v1285
        %v1702 = vunpack.c.h.b16 %v1285
        %v1703 = vunpack.c.l.b16 %v1286
        %v1704 = vunpack.c.h.b16 %v1286
        %v1705 = vunpack.c.l.b16 %v1287
        %v1706 = vunpack.c.h.b16 %v1287
        %v1707 = vunpack.c.l.b16 %v1288
        %v1708 = vunpack.c.h.b16 %v1288
        %v1709 = vunpack.c.l.b16 %v1289
        %v1710 = vunpack.c.h.b16 %v1289
        %v1711 = vunpack.c.l.b16 %v1290
        %v1712 = vunpack.c.h.b16 %v1290
        %v1713 = vunpack.c.l.b16 %v1291
        %v1714 = vunpack.c.h.b16 %v1291
        %v1715 = vunpack.c.l.b16 %v1292
        %v1716 = vunpack.c.h.b16 %v1292
        %v1717 = vunpack.c.l.b16 %v1293
        %v1718 = vunpack.c.h.b16 %v1293
        %v1719 = vunpack.c.l.b16 %v1294
        %v1720 = vunpack.c.h.b16 %v1294
        %v1721 = vunpack.c.l.b16 %v1295
        %v1722 = vunpack.c.h.b16 %v1295
        %v1723 = vunpack.c.l.b16 %v1296
        %v1724 = vunpack.c.h.b16 %v1296
        %v1725 = vunpack.c.l.b16 %v1297
        %v1726 = vunpack.c.h.b16 %v1297
        %v1727 = vunpack.c.l.b16 %v1298
        %v1728 = vunpack.c.h.b16 %v1298
        %v1729 = vunpack.c.l.b16 %v1299
        %v1730 = vunpack.c.h.b16 %v1299
        %v1731 = vunpack.c.l.b16 %v1300
        %v1732 = vunpack.c.h.b16 %v1300
        %v1733 = vunpack.c.l.b16 %v1301
        %v1734 = vunpack.c.h.b16 %v1301
        %v1735 = vunpack.c.l.b16 %v1302
        %v1736 = vunpack.c.h.b16 %v1302
        %v1737 = vunpack.c.l.b16 %v1303
        %v1738 = vunpack.c.h.b16 %v1303
        %v1739 = vunpack.c.l.b16 %v1304
        %v1740 = vunpack.c.h.b16 %v1304
        %v1741 = vunpack.c.l.b16 %v1305
        %v1742 = vunpack.c.h.b16 %v1305
        %v1743 = vunpack.c.l.b16 %v1306
        %v1744 = vunpack.c.h.b16 %v1306
        %v1745 = vunpack.c.l.b16 %v1307
        %v1746 = vunpack.c.h.b16 %v1307
        %v1747 = vunpack.c.l.b16 %v1308
        %v1748 = vunpack.c.h.b16 %v1308
        %v1749 = vunpack.c.l.b16 %v1309
        %v1750 = vunpack.c.h.b16 %v1309
        %v1751 = vunpack.c.l.b16 %v1310
        %v1752 = vunpack.c.h.b16 %v1310
        %v1753 = vunpack.c.l.b16 %v1311
        %v1754 = vunpack.c.h.b16 %v1311
        %v1755 = vunpack.c.l.b16 %v1312
        %v1756 = vunpack.c.h.b16 %v1312
        %v1757 = vunpack.c.l.b16 %v1313
        %v1758 = vunpack.c.h.b16 %v1313
        %v1759 = vunpack.c.l.b16 %v1314
        %v1760 = vunpack.c.h.b16 %v1314
        %v1761 = vunpack.c.l.b16 %v1315
        %v1762 = vunpack.c.h.b16 %v1315
        %v1763 = vunpack.c.l.b16 %v1316
        %v1764 = vunpack.c.h.b16 %v1316
        %v1765 = vunpack.c.l.b16 %v1317
        %v1766 = vunpack.c.h.b16 %v1317
        %v1767 = vunpack.c.l.b16 %v1318
        %v1768 = vunpack.c.h.b16 %v1318
        %v1769 = vunpack.c.l.b16 %v1319
        %v1770 = vunpack.c.h.b16 %v1319
        %v1771 = vunpack.c.l.b16 %v1320
        %v1772 = vunpack.c.h.b16 %v1320
        %v1773 = vunpack.c.l.b16 %v1321
        %v1774 = vunpack.c.h.b16 %v1321
        %v1775 = vunpack.c.l.b16 %v1322
        %v1776 = vunpack.c.h.b16 %v1322
        %v1777 = vunpack.c.l.b16 %v1323
        %v1778 = vunpack.c.h.b16 %v1323
        %v1779 = vunpack.c.l.b16 %v1324
        %v1780 = vunpack.c.h.b16 %v1324
        %v1781 = vunpack.c.l.b16 %v1325
        %v1782 = vunpack.c.h.b16 %v1325
        %v1783 = vunpack.c.l.b16 %v1326
        %v1784 = vunpack.c.h.b16 %v1326
        %v1785 = vunpack.c.l.b16 %v1327
        %v1786 = vunpack.c.h.b16 %v1327
        %v1787 = vunpack.c.l.b16 %v1328
        %v1788 = vunpack.c.h.b16 %v1328
        %v1789 = vunpack.c.l.b16 %v1329
        %v1790 = vunpack.c.h.b16 %v1329
        %v1791 = vunpack.c.l.b16 %v1330
        %v1792 = vunpack.c.h.b16 %v1330
        %v1793 = vunpack.c.l.b16 %v1331
        %v1794 = vunpack.c.h.b16 %v1331
        %v1795 = vunpack.c.l.b16 %v1332
        %v1796 = vunpack.c.h.b16 %v1332
        %v1797 = vunpack.c.l.b16 %v1333
        %v1798 = vunpack.c.h.b16 %v1333
        %v1799 = vunpack.c.l.b16 %v1334
        %v1800 = vunpack.c.h.b16 %v1334
        %v1801 = vunpack.c.l.b16 %v1335
        %v1802 = vunpack.c.h.b16 %v1335
        %v1803 = vunpack.c.l.b16 %v1336
        %v1804 = vunpack.c.h.b16 %v1336
        %v1805 = vpack.c.b16 %v1565, %v1549
        %v1806 = vpack.c.b16 %v1566, %v1550
        %v1807 = vpack.c.b16 %v1567, %v1551
        %v1808 = vpack.c.b16 %v1568, %v1552
        %v1809 = vpack.c.b16 %v1569, %v1553
        %v1810 = vpack.c.b16 %v1570, %v1554
        %v1811 = vpack.c.b16 %v1571, %v1555
        %v1812 = vpack.c.b16 %v1572, %v1556
        %v1813 = vpack.c.b16 %v1573, %v1557
        %v1814 = vpack.c.b16 %v1574, %v1558
        %v1815 = vpack.c.b16 %v1575, %v1559
        %v1816 = vpack.c.b16 %v1576, %v1560
        %v1817 = vpack.c.b16 %v1577, %v1561
        %v1818 = vpack.c.b16 %v1578, %v1562
        %v1819 = vpack.c.b16 %v1579, %v1563
        %v1820 = vpack.c.b16 %v1580, %v1564
        %v1821 = vpack.c.b16 %v1597, %v1581
        %v1822 = vpack.c.b16 %v1598, %v1582
        %v1823 = vpack.c.b16 %v1599, %v1583
        %v1824 = vpack.c.b16 %v1600, %v1584
        %v1825 = vpack.c.b16 %v1601, %v1585
        %v1826 = vpack.c.b16 %v1602, %v1586
        %v1827 = vpack.c.b16 %v1603, %v1587
        %v1828 = vpack.c.b16 %v1604, %v1588
        %v1829 = vpack.c.b16 %v1605, %v1589
        %v1830 = vpack.c.b16 %v1606, %v1590
        %v1831 = vpack.c.b16 %v1607, %v1591
        %v1832 = vpack.c.b16 %v1608, %v1592
        %v1833 = vpack.c.b16 %v1609, %v1593
        %v1834 = vpack.c.b16 %v1610, %v1594
        %v1835 = vpack.c.b16 %v1611, %v1595
        %v1836 = vpack.c.b16 %v1612, %v1596
        %v1837 = vpack.c.b16 %v1629, %v1613
        %v1838 = vpack.c.b16 %v1630, %v1614
        %v1839 = vpack.c.b16 %v1631, %v1615
        %v1840 = vpack.c.b16 %v1632, %v1616
        %v1841 = vpack.c.b16 %v1633, %v1617
        %v1842 = vpack.c.b16 %v1634, %v1618
        %v1843 = vpack.c.b16 %v1635, %v1619
        %v1844 = vpack.c.b16 %v1636, %v1620
        %v1845 = vpack.c.b16 %v1637, %v1621
        %v1846 = vpack.c.b16 %v1638, %v1622
        %v1847 = vpack.c.b16 %v1639, %v1623
        %v1848 = vpack.c.b16 %v1640, %v1624
        %v1849 = vpack.c.b16 %v1641, %v1625
        %v1850 = vpack.c.b16 %v1642, %v1626
        %v1851 = vpack.c.b16 %v1643, %v1627
        %v1852 = vpack.c.b16 %v1644, %v1628
        %v1853 = vpack.c.b16 %v1661, %v1645
        %v1854 = vpack.c.b16 %v1662, %v1646
        %v1855 = vpack.c.b16 %v1663, %v1647
        %v1856 = vpack.c.b16 %v1664, %v1648
        %v1857 = vpack.c.b16 %v1665, %v1649
        %v1858 = vpack.c.b16 %v1666, %v1650
        %v1859 = vpack.c.b16 %v1667, %v1651
        %v1860 = vpack.c.b16 %v1668, %v1652
        %v1861 = vpack.c.b16 %v1669, %v1653
        %v1862 = vpack.c.b16 %v1670, %v1654
        %v1863 = vpack.c.b16 %v1671, %v1655
        %v1864 = vpack.c.b16 %v1672, %v1656
        %v1865 = vpack.c.b16 %v1673, %v1657
        %v1866 = vpack.c.b16 %v1674, %v1658
        %v1867 = vpack.c.b16 %v1675, %v1659
        %v1868 = vpack.c.b16 %v1676, %v1660
        %v1869 = vpack.c.b16 %v1693, %v1677
        %v1870 = vpack.c.b16 %v1694, %v1678
        %v1871 = vpack.c.b16 %v1695, %v1679
        %v1872 = vpack.c.b16 %v1696, %v1680
        %v1873 = vpack.c.b16 %v1697, %v1681
        %v1874 = vpack.c.b16 %v1698, %v1682
        %v1875 = vpack.c.b16 %v1699, %v1683
        %v1876 = vpack.c.b16 %v1700, %v1684
        %v1877 = vpack.c.b16 %v1701, %v1685
        %v1878 = vpack.c.b16 %v1702, %v1686
        %v1879 = vpack.c.b16 %v1703, %v1687
        %v1880 = vpack.c.b16 %v1704, %v1688
        %v1881 = vpack.c.b16 %v1705, %v1689
        %v1882 = vpack.c.b16 %v1706, %v1690
        %v1883 = vpack.c.b16 %v1707, %v1691
        %v1884 = vpack.c.b16 %v1708, %v1692
        %v1885 = vpack.c.b16 %v1725, %v1709
        %v1886 = vpack.c.b16 %v1726, %v1710
        %v1887 = vpack.c.b16 %v1727, %v1711
        %v1888 = vpack.c.b16 %v1728, %v1712
        %v1889 = vpack.c.b16 %v1729, %v1713
        %v1890 = vpack.c.b16 %v1730, %v1714
        %v1891 = vpack.c.b16 %v1731, %v1715
        %v1892 = vpack.c.b16 %v1732, %v1716
        %v1893 = vpack.c.b16 %v1733, %v1717
        %v1894 = vpack.c.b16 %v1734, %v1718
        %v1895 = vpack.c.b16 %v1735, %v1719
        %v1896 = vpack.c.b16 %v1736, %v1720
        %v1897 = vpack.c.b16 %v1737, %v1721
        %v1898 = vpack.c.b16 %v1738, %v1722
        %v1899 = vpack.c.b16 %v1739, %v1723
        %v1900 = vpack.c.b16 %v1740, %v1724
        %v1901 = vpack.c.b16 %v1757, %v1741
        %v1902 = vpack.c.b16 %v1758, %v1742
        %v1903 = vpack.c.b16 %v1759, %v1743
        %v1904 = vpack.c.b16 %v1760, %v1744
        %v1905 = vpack.c.b16 %v1761, %v1745
        %v1906 = vpack.c.b16 %v1762, %v1746
        %v1907 = vpack.c.b16 %v1763, %v1747
        %v1908 = vpack.c.b16 %v1764, %v1748
        %v1909 = vpack.c.b16 %v1765, %v1749
        %v1910 = vpack.c.b16 %v1766, %v1750
        %v1911 = vpack.c.b16 %v1767, %v1751
        %v1912 = vpack.c.b16 %v1768, %v1752
        %v1913 = vpack.c.b16 %v1769, %v1753
        %v1914 = vpack.c.b16 %v1770, %v1754
        %v1915 = vpack.c.b16 %v1771, %v1755
        %v1916 = vpack.c.b16 %v1772, %v1756
        %v1917 = vpack.c.b16 %v1789, %v1773
        %v1918 = vpack.c.b16 %v1790, %v1774
        %v1919 = vpack.c.b16 %v1791, %v1775
        %v1920 = vpack.c.b16 %v1792, %v1776
        %v1921 = vpack.c.b16 %v1793, %v1777
        %v1922 = vpack.c.b16 %v1794, %v1778
        %v1923 = vpack.c.b16 %v1795, %v1779
        %v1924 = vpack.c.b16 %v1796, %v1780
        %v1925 = vpack.c.b16 %v1797, %v1781
        %v1926 = vpack.c.b16 %v1798, %v1782
        %v1927 = vpack.c.b16 %v1799, %v1783
        %v1928 = vpack.c.b16 %v1800, %v1784
        %v1929 = vpack.c.b16 %v1801, %v1785
        %v1930 = vpack.c.b16 %v1802, %v1786
        %v1931 = vpack.c.b16 %v1803, %v1787
        %v1932 = vpack.c.b16 %v1804, %v1788
        %2061 = vmatprep.subr.bf16.mxu0 %v1806
        %2062 = vmatpush1.bf16.msra.mxu0 %v1805
        %2063 = vmatprep.subr.bf16.mxu0 %v1822
        %2064 = vmatpush1.bf16.msra.mxu0 %v1821
        %2065 = vmatprep.subr.bf16.mxu0 %v1838
        %2066 = vmatpush1.bf16.msra.mxu0 %v1837
        %2067 = vmatprep.subr.bf16.mxu0 %v1854
        %2068 = vmatpush1.bf16.msra.mxu0 %v1853
        %2069 = vmatprep.subr.bf16.mxu0 %v1870
        %2070 = vmatpush1.bf16.msra.mxu0 %v1869
        %2071 = vmatprep.subr.bf16.mxu0 %v1886
        %2072 = vmatpush1.bf16.msra.mxu0 %v1885
        %2073 = vmatprep.subr.bf16.mxu0 %v1902
        %2074 = vmatpush1.bf16.msra.mxu0 %v1901
        %2075 = vmatprep.subr.bf16.mxu0 %v1918
        %2076 = vmatpush1.bf16.msra.mxu0 %v1917
        %2077 = vmatprep.subr.bf16.mxu0 0
        %2078 = vmatpush1.bf16.msra.mxu0 0
        %2079 = vmatprep.subr.bf16.mxu0 0
        %2080 = vmatpush1.bf16.msra.mxu0 0
        %2081 = vmatprep.subr.bf16.mxu0 0
        %2082 = vmatpush1.bf16.msra.mxu0 0
        %2083 = vmatprep.subr.bf16.mxu0 0
        %2084 = vmatpush1.bf16.msra.mxu0 0
        %2085 = vmatprep.subr.bf16.mxu0 0
        %2086 = vmatpush1.bf16.msra.mxu0 0
        %2087 = vmatprep.subr.bf16.mxu0 0
        %2088 = vmatpush1.bf16.msra.mxu0 0
        %2089 = vmatprep.subr.bf16.mxu0 0
        %2090 = vmatpush1.bf16.msra.mxu0 0
        %2091 = vmatprep.subr.bf16.mxu0 0
        %2092 = vmatpush1.bf16.msra.mxu0 0
        %2093 = vmatprep.mubr.bf16.mxu0 0
        %2094 = vmatmul.mubr.bf16.gmra.mrb[0].mxu0 %v1201
        %v2095 = vpop.f32.mrb[0].mxu0
        %v2096 = vadd.f32 %v1344, %v2095
        %v2097 = vpop.f32.mrb[0].mxu0
        %v2098 = vadd.f32 %v1348, %v2097
        %v2099 = vpop.f32.mrb[0].mxu0
        %v2100 = vadd.f32 %v1344, %v2099
        %v2101 = vpop.f32.mrb[0].mxu0
        %v2102 = vadd.f32 %v1348, %v2101
        %2103 = vmatprep.mubr.bf16.mxu0 0
        %2104 = vmatmul.mubr.bf16.gmra.mrb[0].mxu0 %v1202
        %v2105 = vpop.f32.mrb[0].mxu0
        %v2106 = vadd.f32 %v1344, %v2105
        %v2107 = vpop.f32.mrb[0].mxu0
        %v2108 = vadd.f32 %v1348, %v2107
        %v2109 = vpop.f32.mrb[0].mxu0
        %v2110 = vadd.f32 %v1344, %v2109
        %v2111 = vpop.f32.mrb[0].mxu0
        %v2112 = vadd.f32 %v1348, %v2111
        %2113 = vmatprep.mubr.bf16.mxu0 0
        %2114 = vmatmul.mubr.bf16.gmra.mrb[0].mxu0 %v1203
        %v2115 = vpop.f32.mrb[0].mxu0
        %v2116 = vadd.f32 %v1344, %v2115
        %v2117 = vpop.f32.mrb[0].mxu0
        %v2118 = vadd.f32 %v1348, %v2117
        %v2119 = vpop.f32.mrb[0].mxu0
        %v2120 = vadd.f32 %v1344, %v2119
        %v2121 = vpop.f32.mrb[0].mxu0
        %v2122 = vadd.f32 %v1348, %v2121
        %2123 = vmatprep.mubr.bf16.mxu0 0
        %2124 = vmatmul.mubr.bf16.gmra.mrb[0].mxu0 %v1204
        %v2125 = vpop.f32.mrb[0].mxu0
        %v2126 = vadd.f32 %v1344, %v2125
        %v2127 = vpop.f32.mrb[0].mxu0
        %v2128 = vadd.f32 %v1348, %v2127
        %v2129 = vpop.f32.mrb[0].mxu0
        %v2130 = vadd.f32 %v1344, %v2129
        %v2131 = vpop.f32.mrb[0].mxu0
        %v2132 = vadd.f32 %v1348, %v2131
        %2133 = vmatprep.mubr.bf16.mxu0 0
        %2134 = vmatmul.mubr.bf16.gmra.mrb[0].mxu0 %v1205
        %v2135 = vpop.f32.mrb[0].mxu0
        %v2136 = vadd.f32 %v1344, %v2135
        %v2137 = vpop.f32.mrb[0].mxu0
        %v2138 = vadd.f32 %v1348, %v2137
        %v2139 = vpop.f32.mrb[0].mxu0
        %v2140 = vadd.f32 %v1344, %v2139
        %v2141 = vpop.f32.mrb[0].mxu0
        %v2142 = vadd.f32 %v1348, %v2141
        %2143 = vmatprep.mubr.bf16.mxu0 0
        %2144 = vmatmul.mubr.bf16.gmra.mrb[0].mxu0 %v1206
        %v2145 = vpop.f32.mrb[0].mxu0
        %v2146 = vadd.f32 %v1344, %v2145
        %v2147 = vpop.f32.mrb[0].mxu0
        %v2148 = vadd.f32 %v1348, %v2147
        %v2149 = vpop.f32.mrb[0].mxu0
        %v2150 = vadd.f32 %v1344, %v2149
        %v2151 = vpop.f32.mrb[0].mxu0
        %v2152 = vadd.f32 %v1348, %v2151
        %2153 = vmatprep.mubr.bf16.mxu0 0
        %2154 = vmatmul.mubr.bf16.gmra.mrb[0].mxu0 %v1207
        %v2155 = vpop.f32.mrb[0].mxu0
        %v2156 = vadd.f32 %v1344, %v2155
        %v2157 = vpop.f32.mrb[0].mxu0
        %v2158 = vadd.f32 %v1348, %v2157
        %v2159 = vpop.f32.mrb[0].mxu0
        %v2160 = vadd.f32 %v1344, %v2159
        %v2161 = vpop.f32.mrb[0].mxu0
        %v2162 = vadd.f32 %v1348, %v2161
        %2163 = vmatprep.mubr.bf16.mxu0 0
        %2164 = vmatmul.mubr.bf16.gmra.mrb[0].mxu0 %v1208
        %v2165 = vpop.f32.mrb[0].mxu0
        %v2166 = vadd.f32 %v1344, %v2165
        %v2167 = vpop.f32.mrb[0].mxu0
        %v2168 = vadd.f32 %v1348, %v2167
        %v2169 = vpop.f32.mrb[0].mxu0
        %v2170 = vadd.f32 %v1344, %v2169
        %v2171 = vpop.f32.mrb[0].mxu0
        %v2172 = vadd.f32 %v1348, %v2171
        %2173 = vdwg.mxu0
        %2174 = vmatprep.subr.bf16.mxu0 %v1808
        %2175 = vmatpush1.bf16.msra.mxu0 %v1807
        %2176 = vmatprep.subr.bf16.mxu0 %v1824
        %2177 = vmatpush1.bf16.msra.mxu0 %v1823
        %2178 = vmatprep.subr.bf16.mxu0 %v1840
        %2179 = vmatpush1.bf16.msra.mxu0 %v1839
        %2180 = vmatprep.subr.bf16.mxu0 %v1856
        %2181 = vmatpush1.bf16.msra.mxu0 %v1855
        %2182 = vmatprep.subr.bf16.mxu0 %v1872
        %2183 = vmatpush1.bf16.msra.mxu0 %v1871
        %2184 = vmatprep.subr.bf16.mxu0 %v1888
        %2185 = vmatpush1.bf16.msra.mxu0 %v1887
        %2186 = vmatprep.subr.bf16.mxu0 %v1904
        %2187 = vmatpush1.bf16.msra.mxu0 %v1903
        %2188 = vmatprep.subr.bf16.mxu0 %v1920
        %2189 = vmatpush1.bf16.msra.mxu0 %v1919
        %2190 = vmatprep.subr.bf16.mxu0 0
        %2191 = vmatpush1.bf16.msra.mxu0 0
        %2192 = vmatprep.subr.bf16.mxu0 0
        %2193 = vmatpush1.bf16.msra.mxu0 0
        %2194 = vmatprep.subr.bf16.mxu0 0
        %2195 = vmatpush1.bf16.msra.mxu0 0
        %2196 = vmatprep.subr.bf16.mxu0 0
        %2197 = vmatpush1.bf16.msra.mxu0 0
        %2198 = vmatprep.subr.bf16.mxu0 0
        %2199 = vmatpush1.bf16.msra.mxu0 0
        %2200 = vmatprep.subr.bf16.mxu0 0
        %2201 = vmatpush1.bf16.msra.mxu0 0
        %2202 = vmatprep.subr.bf16.mxu0 0
        %2203 = vmatpush1.bf16.msra.mxu0 0
        %2204 = vmatprep.subr.bf16.mxu0 0
        %2205 = vmatpush1.bf16.msra.mxu0 0
        %2206 = vmatprep.mubr.bf16.mxu0 0
        %2207 = vmatmul.mubr.bf16.gmra.mrb[0].mxu0 %v1201
        %v2208 = vpop.f32.mrb[0].mxu0
        %v2209 = vadd.f32 %v1352, %v2208
        %v2210 = vpop.f32.mrb[0].mxu0
        %v2211 = vadd.f32 %v1356, %v2210
        %v2212 = vpop.f32.mrb[0].mxu0
        %v2213 = vadd.f32 %v1352, %v2212
        %v2214 = vpop.f32.mrb[0].mxu0
        %v2215 = vadd.f32 %v1356, %v2214
        %2216 = vmatprep.mubr.bf16.mxu0 0
        %2217 = vmatmul.mubr.bf16.gmra.mrb[0].mxu0 %v1202
        %v2218 = vpop.f32.mrb[0].mxu0
        %v2219 = vadd.f32 %v1352, %v2218
        %v2220 = vpop.f32.mrb[0].mxu0
        %v2221 = vadd.f32 %v1356, %v2220
        %v2222 = vpop.f32.mrb[0].mxu0
        %v2223 = vadd.f32 %v1352, %v2222
        %v2224 = vpop.f32.mrb[0].mxu0
        %v2225 = vadd.f32 %v1356, %v2224
        %2226 = vmatprep.mubr.bf16.mxu0 0
        %2227 = vmatmul.mubr.bf16.gmra.mrb[0].mxu0 %v1203
        %v2228 = vpop.f32.mrb[0].mxu0
        %v2229 = vadd.f32 %v1352, %v2228
        %v2230 = vpop.f32.mrb[0].mxu0
        %v2231 = vadd.f32 %v1356, %v2230
        %v2232 = vpop.f32.mrb[0].mxu0
        %v2233 = vadd.f32 %v1352, %v2232
        %v2234 = vpop.f32.mrb[0].mxu0
        %v2235 = vadd.f32 %v1356, %v2234
        %2236 = vmatprep.mubr.bf16.mxu0 0
        %2237 = vmatmul.mubr.bf16.gmra.mrb[0].mxu0 %v1204
        %v2238 = vpop.f32.mrb[0].mxu0
        %v2239 = vadd.f32 %v1352, %v2238
        %v2240 = vpop.f32.mrb[0].mxu0
        %v2241 = vadd.f32 %v1356, %v2240
        %v2242 = vpop.f32.mrb[0].mxu0
        %v2243 = vadd.f32 %v1352, %v2242
        %v2244 = vpop.f32.mrb[0].mxu0
        %v2245 = vadd.f32 %v1356, %v2244
        %2246 = vmatprep.mubr.bf16.mxu0 0
        %2247 = vmatmul.mubr.bf16.gmra.mrb[0].mxu0 %v1205
        %v2248 = vpop.f32.mrb[0].mxu0
        %v2249 = vadd.f32 %v1352, %v2248
        %v2250 = vpop.f32.mrb[0].mxu0
        %v2251 = vadd.f32 %v1356, %v2250
        %v2252 = vpop.f32.mrb[0].mxu0
        %v2253 = vadd.f32 %v1352, %v2252
        %v2254 = vpop.f32.mrb[0].mxu0
        %v2255 = vadd.f32 %v1356, %v2254
        %2256 = vmatprep.mubr.bf16.mxu0 0
        %2257 = vmatmul.mubr.bf16.gmra.mrb[0].mxu0 %v1206
        %v2258 = vpop.f32.mrb[0].mxu0
        %v2259 = vadd.f32 %v1352, %v2258
        %v2260 = vpop.f32.mrb[0].mxu0
        %v2261 = vadd.f32 %v1356, %v2260
        %v2262 = vpop.f32.mrb[0].mxu0
        %v2263 = vadd.f32 %v1352, %v2262
        %v2264 = vpop.f32.mrb[0].mxu0
        %v2265 = vadd.f32 %v1356, %v2264
        %2266 = vmatprep.mubr.bf16.mxu0 0
        %2267 = vmatmul.mubr.bf16.gmra.mrb[0].mxu0 %v1207
        %v2268 = vpop.f32.mrb[0].mxu0
        %v2269 = vadd.f32 %v1352, %v2268
        %v2270 = vpop.f32.mrb[0].mxu0
        %v2271 = vadd.f32 %v1356, %v2270
        %v2272 = vpop.f32.mrb[0].mxu0
        %v2273 = vadd.f32 %v1352, %v2272
        %v2274 = vpop.f32.mrb[0].mxu0
        %v2275 = vadd.f32 %v1356, %v2274
        %2276 = vmatprep.mubr.bf16.mxu0 0
        %2277 = vmatmul.mubr.bf16.gmra.mrb[0].mxu0 %v1208
        %v2278 = vpop.f32.mrb[0].mxu0
        %v2279 = vadd.f32 %v1352, %v2278
        %v2280 = vpop.f32.mrb[0].mxu0
        %v2281 = vadd.f32 %v1356, %v2280
        %v2282 = vpop.f32.mrb[0].mxu0
        %v2283 = vadd.f32 %v1352, %v2282
        %v2284 = vpop.f32.mrb[0].mxu0
        %v2285 = vadd.f32 %v1356, %v2284
        %2286 = vdwg.mxu0
        %2287 = vmatprep.subr.bf16.mxu0 %v1810
        %2288 = vmatpush1.bf16.msra.mxu0 %v1809
        %2289 = vmatprep.subr.bf16.mxu0 %v1826
        %2290 = vmatpush1.bf16.msra.mxu0 %v1825
        %2291 = vmatprep.subr.bf16.mxu0 %v1842
        %2292 = vmatpush1.bf16.msra.mxu0 %v1841
        %2293 = vmatprep.subr.bf16.mxu0 %v1858
        %2294 = vmatpush1.bf16.msra.mxu0 %v1857
        %2295 = vmatprep.subr.bf16.mxu0 %v1874
        %2296 = vmatpush1.bf16.msra.mxu0 %v1873
        %2297 = vmatprep.subr.bf16.mxu0 %v1890
        %2298 = vmatpush1.bf16.msra.mxu0 %v1889
        %2299 = vmatprep.subr.bf16.mxu0 %v1906
        %2300 = vmatpush1.bf16.msra.mxu0 %v1905
        %2301 = vmatprep.subr.bf16.mxu0 %v1922
        %2302 = vmatpush1.bf16.msra.mxu0 %v1921
        %2303 = vmatprep.subr.bf16.mxu0 0
        %2304 = vmatpush1.bf16.msra.mxu0 0
        %2305 = vmatprep.subr.bf16.mxu0 0
        %2306 = vmatpush1.bf16.msra.mxu0 0
        %2307 = vmatprep.subr.bf16.mxu0 0
        %2308 = vmatpush1.bf16.msra.mxu0 0
        %2309 = vmatprep.subr.bf16.mxu0 0
        %2310 = vmatpush1.bf16.msra.mxu0 0
        %2311 = vmatprep.subr.bf16.mxu0 0
        %2312 = vmatpush1.bf16.msra.mxu0 0
        %2313 = vmatprep.subr.bf16.mxu0 0
        %2314 = vmatpush1.bf16.msra.mxu0 0
        %2315 = vmatprep.subr.bf16.mxu0 0
        %2316 = vmatpush1.bf16.msra.mxu0 0
        %2317 = vmatprep.subr.bf16.mxu0 0
        %2318 = vmatpush1.bf16.msra.mxu0 0
        %2319 = vmatprep.mubr.bf16.mxu0 0
        %2320 = vmatmul.mubr.bf16.gmra.mrb[0].mxu0 %v1201
        %v2321 = vpop.f32.mrb[0].mxu0
        %v2322 = vadd.f32 %v1360, %v2321
        %v2323 = vpop.f32.mrb[0].mxu0
        %v2324 = vadd.f32 %v1364, %v2323
        %v2325 = vpop.f32.mrb[0].mxu0
        %v2326 = vadd.f32 %v1360, %v2325
        %v2327 = vpop.f32.mrb[0].mxu0
        %v2328 = vadd.f32 %v1364, %v2327
        %2329 = vmatprep.mubr.bf16.mxu0 0
        %2330 = vmatmul.mubr.bf16.gmra.mrb[0].mxu0 %v1202
        %v2331 = vpop.f32.mrb[0].mxu0
        %v2332 = vadd.f32 %v1360, %v2331
        %v2333 = vpop.f32.mrb[0].mxu0
        %v2334 = vadd.f32 %v1364, %v2333
        %v2335 = vpop.f32.mrb[0].mxu0
        %v2336 = vadd.f32 %v1360, %v2335
        %v2337 = vpop.f32.mrb[0].mxu0
        %v2338 = vadd.f32 %v1364, %v2337
        %2339 = vmatprep.mubr.bf16.mxu0 0
        %2340 = vmatmul.mubr.bf16.gmra.mrb[0].mxu0 %v1203
        %v2341 = vpop.f32.mrb[0].mxu0
        %v2342 = vadd.f32 %v1360, %v2341
        %v2343 = vpop.f32.mrb[0].mxu0
        %v2344 = vadd.f32 %v1364, %v2343
        %v2345 = vpop.f32.mrb[0].mxu0
        %v2346 = vadd.f32 %v1360, %v2345
        %v2347 = vpop.f32.mrb[0].mxu0
        %v2348 = vadd.f32 %v1364, %v2347
        %2349 = vmatprep.mubr.bf16.mxu0 0
        %2350 = vmatmul.mubr.bf16.gmra.mrb[0].mxu0 %v1204
        %v2351 = vpop.f32.mrb[0].mxu0
        %v2352 = vadd.f32 %v1360, %v2351
        %v2353 = vpop.f32.mrb[0].mxu0
        %v2354 = vadd.f32 %v1364, %v2353
        %v2355 = vpop.f32.mrb[0].mxu0
        %v2356 = vadd.f32 %v1360, %v2355
        %v2357 = vpop.f32.mrb[0].mxu0
        %v2358 = vadd.f32 %v1364, %v2357
        %2359 = vmatprep.mubr.bf16.mxu0 0
        %2360 = vmatmul.mubr.bf16.gmra.mrb[0].mxu0 %v1205
        %v2361 = vpop.f32.mrb[0].mxu0
        %v2362 = vadd.f32 %v1360, %v2361
        %v2363 = vpop.f32.mrb[0].mxu0
        %v2364 = vadd.f32 %v1364, %v2363
        %v2365 = vpop.f32.mrb[0].mxu0
        %v2366 = vadd.f32 %v1360, %v2365
        %v2367 = vpop.f32.mrb[0].mxu0
        %v2368 = vadd.f32 %v1364, %v2367
        %2369 = vmatprep.mubr.bf16.mxu0 0
        %2370 = vmatmul.mubr.bf16.gmra.mrb[0].mxu0 %v1206
        %v2371 = vpop.f32.mrb[0].mxu0
        %v2372 = vadd.f32 %v1360, %v2371
        %v2373 = vpop.f32.mrb[0].mxu0
        %v2374 = vadd.f32 %v1364, %v2373
        %v2375 = vpop.f32.mrb[0].mxu0
        %v2376 = vadd.f32 %v1360, %v2375
        %v2377 = vpop.f32.mrb[0].mxu0
        %v2378 = vadd.f32 %v1364, %v2377
        %2379 = vmatprep.mubr.bf16.mxu0 0
        %2380 = vmatmul.mubr.bf16.gmra.mrb[0].mxu0 %v1207
        %v2381 = vpop.f32.mrb[0].mxu0
        %v2382 = vadd.f32 %v1360, %v2381
        %v2383 = vpop.f32.mrb[0].mxu0
        %v2384 = vadd.f32 %v1364, %v2383
        %v2385 = vpop.f32.mrb[0].mxu0
        %v2386 = vadd.f32 %v1360, %v2385
        %v2387 = vpop.f32.mrb[0].mxu0
        %v2388 = vadd.f32 %v1364, %v2387
        %2389 = vmatprep.mubr.bf16.mxu0 0
        %2390 = vmatmul.mubr.bf16.gmra.mrb[0].mxu0 %v1208
        %v2391 = vpop.f32.mrb[0].mxu0
        %v2392 = vadd.f32 %v1360, %v2391
        %v2393 = vpop.f32.mrb[0].mxu0
        %v2394 = vadd.f32 %v1364, %v2393
        %v2395 = vpop.f32.mrb[0].mxu0
        %v2396 = vadd.f32 %v1360, %v2395
        %v2397 = vpop.f32.mrb[0].mxu0
        %v2398 = vadd.f32 %v1364, %v2397
        %2399 = vdwg.mxu0
        %2400 = vmatprep.subr.bf16.mxu0 %v1812
        %2401 = vmatpush1.bf16.msra.mxu0 %v1811
        %2402 = vmatprep.subr.bf16.mxu0 %v1828
        %2403 = vmatpush1.bf16.msra.mxu0 %v1827
        %2404 = vmatprep.subr.bf16.mxu0 %v1844
        %2405 = vmatpush1.bf16.msra.mxu0 %v1843
        %2406 = vmatprep.subr.bf16.mxu0 %v1860
        %2407 = vmatpush1.bf16.msra.mxu0 %v1859
        %2408 = vmatprep.subr.bf16.mxu0 %v1876
        %2409 = vmatpush1.bf16.msra.mxu0 %v1875
        %2410 = vmatprep.subr.bf16.mxu0 %v1892
        %2411 = vmatpush1.bf16.msra.mxu0 %v1891
        %2412 = vmatprep.subr.bf16.mxu0 %v1908
        %2413 = vmatpush1.bf16.msra.mxu0 %v1907
        %2414 = vmatprep.subr.bf16.mxu0 %v1924
        %2415 = vmatpush1.bf16.msra.mxu0 %v1923
        %2416 = vmatprep.subr.bf16.mxu0 0
        %2417 = vmatpush1.bf16.msra.mxu0 0
        %2418 = vmatprep.subr.bf16.mxu0 0
        %2419 = vmatpush1.bf16.msra.mxu0 0
        %2420 = vmatprep.subr.bf16.mxu0 0
        %2421 = vmatpush1.bf16.msra.mxu0 0
        %2422 = vmatprep.subr.bf16.mxu0 0
        %2423 = vmatpush1.bf16.msra.mxu0 0
        %2424 = vmatprep.subr.bf16.mxu0 0
        %2425 = vmatpush1.bf16.msra.mxu0 0
        %2426 = vmatprep.subr.bf16.mxu0 0
        %2427 = vmatpush1.bf16.msra.mxu0 0
        %2428 = vmatprep.subr.bf16.mxu0 0
        %2429 = vmatpush1.bf16.msra.mxu0 0
        %2430 = vmatprep.subr.bf16.mxu0 0
        %2431 = vmatpush1.bf16.msra.mxu0 0
        %2432 = vmatprep.mubr.bf16.mxu0 0
        %2433 = vmatmul.mubr.bf16.gmra.mrb[0].mxu0 %v1201
        %v2434 = vpop.f32.mrb[0].mxu0
        %v2435 = vadd.f32 %v1368, %v2434
        %v2436 = vpop.f32.mrb[0].mxu0
        %v2437 = vadd.f32 %v1372, %v2436
        %v2438 = vpop.f32.mrb[0].mxu0
        %v2439 = vadd.f32 %v1368, %v2438
        %v2440 = vpop.f32.mrb[0].mxu0
        %v2441 = vadd.f32 %v1372, %v2440
        %2442 = vmatprep.mubr.bf16.mxu0 0
        %2443 = vmatmul.mubr.bf16.gmra.mrb[0].mxu0 %v1202
        %v2444 = vpop.f32.mrb[0].mxu0
        %v2445 = vadd.f32 %v1368, %v2444
        %v2446 = vpop.f32.mrb[0].mxu0
        %v2447 = vadd.f32 %v1372, %v2446
        %v2448 = vpop.f32.mrb[0].mxu0
        %v2449 = vadd.f32 %v1368, %v2448
        %v2450 = vpop.f32.mrb[0].mxu0
        %v2451 = vadd.f32 %v1372, %v2450
        %2452 = vmatprep.mubr.bf16.mxu0 0
        %2453 = vmatmul.mubr.bf16.gmra.mrb[0].mxu0 %v1203
        %v2454 = vpop.f32.mrb[0].mxu0
        %v2455 = vadd.f32 %v1368, %v2454
        %v2456 = vpop.f32.mrb[0].mxu0
        %v2457 = vadd.f32 %v1372, %v2456
        %v2458 = vpop.f32.mrb[0].mxu0
        %v2459 = vadd.f32 %v1368, %v2458
        %v2460 = vpop.f32.mrb[0].mxu0
        %v2461 = vadd.f32 %v1372, %v2460
        %2462 = vmatprep.mubr.bf16.mxu0 0
        %2463 = vmatmul.mubr.bf16.gmra.mrb[0].mxu0 %v1204
        %v2464 = vpop.f32.mrb[0].mxu0
        %v2465 = vadd.f32 %v1368, %v2464
        %v2466 = vpop.f32.mrb[0].mxu0
        %v2467 = vadd.f32 %v1372, %v2466
        %v2468 = vpop.f32.mrb[0].mxu0
        %v2469 = vadd.f32 %v1368, %v2468
        %v2470 = vpop.f32.mrb[0].mxu0
        %v2471 = vadd.f32 %v1372, %v2470
        %2472 = vmatprep.mubr.bf16.mxu0 0
        %2473 = vmatmul.mubr.bf16.gmra.mrb[0].mxu0 %v1205
        %v2474 = vpop.f32.mrb[0].mxu0
        %v2475 = vadd.f32 %v1368, %v2474
        %v2476 = vpop.f32.mrb[0].mxu0
        %v2477 = vadd.f32 %v1372, %v2476
        %v2478 = vpop.f32.mrb[0].mxu0
        %v2479 = vadd.f32 %v1368, %v2478
        %v2480 = vpop.f32.mrb[0].mxu0
        %v2481 = vadd.f32 %v1372, %v2480
        %2482 = vmatprep.mubr.bf16.mxu0 0
        %2483 = vmatmul.mubr.bf16.gmra.mrb[0].mxu0 %v1206
        %v2484 = vpop.f32.mrb[0].mxu0
        %v2485 = vadd.f32 %v1368, %v2484
        %v2486 = vpop.f32.mrb[0].mxu0
        %v2487 = vadd.f32 %v1372, %v2486
        %v2488 = vpop.f32.mrb[0].mxu0
        %v2489 = vadd.f32 %v1368, %v2488
        %v2490 = vpop.f32.mrb[0].mxu0
        %v2491 = vadd.f32 %v1372, %v2490
        %2492 = vmatprep.mubr.bf16.mxu0 0
        %2493 = vmatmul.mubr.bf16.gmra.mrb[0].mxu0 %v1207
        %v2494 = vpop.f32.mrb[0].mxu0
        %v2495 = vadd.f32 %v1368, %v2494
        %v2496 = vpop.f32.mrb[0].mxu0
        %v2497 = vadd.f32 %v1372, %v2496
        %v2498 = vpop.f32.mrb[0].mxu0
        %v2499 = vadd.f32 %v1368, %v2498
        %v2500 = vpop.f32.mrb[0].mxu0
        %v2501 = vadd.f32 %v1372, %v2500
        %2502 = vmatprep.mubr.bf16.mxu0 0
        %2503 = vmatmul.mubr.bf16.gmra.mrb[0].mxu0 %v1208
        %v2504 = vpop.f32.mrb[0].mxu0
        %v2505 = vadd.f32 %v1368, %v2504
        %v2506 = vpop.f32.mrb[0].mxu0
        %v2507 = vadd.f32 %v1372, %v2506
        %v2508 = vpop.f32.mrb[0].mxu0
        %v2509 = vadd.f32 %v1368, %v2508
        %v2510 = vpop.f32.mrb[0].mxu0
        %v2511 = vadd.f32 %v1372, %v2510
        %2512 = vdwg.mxu0
        %2513 = vmatprep.subr.bf16.mxu0 %v1814
        %2514 = vmatpush1.bf16.msra.mxu0 %v1813
        %2515 = vmatprep.subr.bf16.mxu0 %v1830
        %2516 = vmatpush1.bf16.msra.mxu0 %v1829
        %2517 = vmatprep.subr.bf16.mxu0 %v1846
        %2518 = vmatpush1.bf16.msra.mxu0 %v1845
        %2519 = vmatprep.subr.bf16.mxu0 %v1862
        %2520 = vmatpush1.bf16.msra.mxu0 %v1861
        %2521 = vmatprep.subr.bf16.mxu0 %v1878
        %2522 = vmatpush1.bf16.msra.mxu0 %v1877
        %2523 = vmatprep.subr.bf16.mxu0 %v1894
        %2524 = vmatpush1.bf16.msra.mxu0 %v1893
        %2525 = vmatprep.subr.bf16.mxu0 %v1910
        %2526 = vmatpush1.bf16.msra.mxu0 %v1909
        %2527 = vmatprep.subr.bf16.mxu0 %v1926
        %2528 = vmatpush1.bf16.msra.mxu0 %v1925
        %2529 = vmatprep.subr.bf16.mxu0 0
        %2530 = vmatpush1.bf16.msra.mxu0 0
        %2531 = vmatprep.subr.bf16.mxu0 0
        %2532 = vmatpush1.bf16.msra.mxu0 0
        %2533 = vmatprep.subr.bf16.mxu0 0
        %2534 = vmatpush1.bf16.msra.mxu0 0
        %2535 = vmatprep.subr.bf16.mxu0 0
        %2536 = vmatpush1.bf16.msra.mxu0 0
        %2537 = vmatprep.subr.bf16.mxu0 0
        %2538 = vmatpush1.bf16.msra.mxu0 0
        %2539 = vmatprep.subr.bf16.mxu0 0
        %2540 = vmatpush1.bf16.msra.mxu0 0
        %2541 = vmatprep.subr.bf16.mxu0 0
        %2542 = vmatpush1.bf16.msra.mxu0 0
        %2543 = vmatprep.subr.bf16.mxu0 0
        %2544 = vmatpush1.bf16.msra.mxu0 0
        %2545 = vmatprep.mubr.bf16.mxu0 0
        %2546 = vmatmul.mubr.bf16.gmra.mrb[0].mxu0 %v1201
        %v2547 = vpop.f32.mrb[0].mxu0
        %v2548 = vadd.f32 %v1376, %v2547
        %v2549 = vpop.f32.mrb[0].mxu0
        %v2550 = vadd.f32 %v1380, %v2549
        %v2551 = vpop.f32.mrb[0].mxu0
        %v2552 = vadd.f32 %v1376, %v2551
        %v2553 = vpop.f32.mrb[0].mxu0
        %v2554 = vadd.f32 %v1380, %v2553
        %2555 = vmatprep.mubr.bf16.mxu0 0
        %2556 = vmatmul.mubr.bf16.gmra.mrb[0].mxu0 %v1202
        %v2557 = vpop.f32.mrb[0].mxu0
        %v2558 = vadd.f32 %v1376, %v2557
        %v2559 = vpop.f32.mrb[0].mxu0
        %v2560 = vadd.f32 %v1380, %v2559
        %v2561 = vpop.f32.mrb[0].mxu0
        %v2562 = vadd.f32 %v1376, %v2561
        %v2563 = vpop.f32.mrb[0].mxu0
        %v2564 = vadd.f32 %v1380, %v2563
        %2565 = vmatprep.mubr.bf16.mxu0 0
        %2566 = vmatmul.mubr.bf16.gmra.mrb[0].mxu0 %v1203
        %v2567 = vpop.f32.mrb[0].mxu0
        %v2568 = vadd.f32 %v1376, %v2567
        %v2569 = vpop.f32.mrb[0].mxu0
        %v2570 = vadd.f32 %v1380, %v2569
        %v2571 = vpop.f32.mrb[0].mxu0
        %v2572 = vadd.f32 %v1376, %v2571
        %v2573 = vpop.f32.mrb[0].mxu0
        %v2574 = vadd.f32 %v1380, %v2573
        %2575 = vmatprep.mubr.bf16.mxu0 0
        %2576 = vmatmul.mubr.bf16.gmra.mrb[0].mxu0 %v1204
        %v2577 = vpop.f32.mrb[0].mxu0
        %v2578 = vadd.f32 %v1376, %v2577
        %v2579 = vpop.f32.mrb[0].mxu0
        %v2580 = vadd.f32 %v1380, %v2579
        %v2581 = vpop.f32.mrb[0].mxu0
        %v2582 = vadd.f32 %v1376, %v2581
        %v2583 = vpop.f32.mrb[0].mxu0
        %v2584 = vadd.f32 %v1380, %v2583
        %2585 = vmatprep.mubr.bf16.mxu0 0
        %2586 = vmatmul.mubr.bf16.gmra.mrb[0].mxu0 %v1205
        %v2587 = vpop.f32.mrb[0].mxu0
        %v2588 = vadd.f32 %v1376, %v2587
        %v2589 = vpop.f32.mrb[0].mxu0
        %v2590 = vadd.f32 %v1380, %v2589
        %v2591 = vpop.f32.mrb[0].mxu0
        %v2592 = vadd.f32 %v1376, %v2591
        %v2593 = vpop.f32.mrb[0].mxu0
        %v2594 = vadd.f32 %v1380, %v2593
        %2595 = vmatprep.mubr.bf16.mxu0 0
        %2596 = vmatmul.mubr.bf16.gmra.mrb[0].mxu0 %v1206
        %v2597 = vpop.f32.mrb[0].mxu0
        %v2598 = vadd.f32 %v1376, %v2597
        %v2599 = vpop.f32.mrb[0].mxu0
        %v2600 = vadd.f32 %v1380, %v2599
        %v2601 = vpop.f32.mrb[0].mxu0
        %v2602 = vadd.f32 %v1376, %v2601
        %v2603 = vpop.f32.mrb[0].mxu0
        %v2604 = vadd.f32 %v1380, %v2603
        %2605 = vmatprep.mubr.bf16.mxu0 0
        %2606 = vmatmul.mubr.bf16.gmra.mrb[0].mxu0 %v1207
        %v2607 = vpop.f32.mrb[0].mxu0
        %v2608 = vadd.f32 %v1376, %v2607
        %v2609 = vpop.f32.mrb[0].mxu0
        %v2610 = vadd.f32 %v1380, %v2609
        %v2611 = vpop.f32.mrb[0].mxu0
        %v2612 = vadd.f32 %v1376, %v2611
        %v2613 = vpop.f32.mrb[0].mxu0
        %v2614 = vadd.f32 %v1380, %v2613
        %2615 = vmatprep.mubr.bf16.mxu0 0
        %2616 = vmatmul.mubr.bf16.gmra.mrb[0].mxu0 %v1208
        %v2617 = vpop.f32.mrb[0].mxu0
        %v2618 = vadd.f32 %v1376, %v2617
        %v2619 = vpop.f32.mrb[0].mxu0
        %v2620 = vadd.f32 %v1380, %v2619
        %v2621 = vpop.f32.mrb[0].mxu0
        %v2622 = vadd.f32 %v1376, %v2621
        %v2623 = vpop.f32.mrb[0].mxu0
        %v2624 = vadd.f32 %v1380, %v2623
        %2625 = vdwg.mxu0
        %2626 = vmatprep.subr.bf16.mxu0 %v1816
        %2627 = vmatpush1.bf16.msra.mxu0 %v1815
        %2628 = vmatprep.subr.bf16.mxu0 %v1832
        %2629 = vmatpush1.bf16.msra.mxu0 %v1831
        %2630 = vmatprep.subr.bf16.mxu0 %v1848
        %2631 = vmatpush1.bf16.msra.mxu0 %v1847
        %2632 = vmatprep.subr.bf16.mxu0 %v1864
        %2633 = vmatpush1.bf16.msra.mxu0 %v1863
        %2634 = vmatprep.subr.bf16.mxu0 %v1880
        %2635 = vmatpush1.bf16.msra.mxu0 %v1879
        %2636 = vmatprep.subr.bf16.mxu0 %v1896
        %2637 = vmatpush1.bf16.msra.mxu0 %v1895
        %2638 = vmatprep.subr.bf16.mxu0 %v1912
        %2639 = vmatpush1.bf16.msra.mxu0 %v1911
        %2640 = vmatprep.subr.bf16.mxu0 %v1928
        %2641 = vmatpush1.bf16.msra.mxu0 %v1927
        %2642 = vmatprep.subr.bf16.mxu0 0
        %2643 = vmatpush1.bf16.msra.mxu0 0
        %2644 = vmatprep.subr.bf16.mxu0 0
        %2645 = vmatpush1.bf16.msra.mxu0 0
        %2646 = vmatprep.subr.bf16.mxu0 0
        %2647 = vmatpush1.bf16.msra.mxu0 0
        %2648 = vmatprep.subr.bf16.mxu0 0
        %2649 = vmatpush1.bf16.msra.mxu0 0
        %2650 = vmatprep.subr.bf16.mxu0 0
        %2651 = vmatpush1.bf16.msra.mxu0 0
        %2652 = vmatprep.subr.bf16.mxu0 0
        %2653 = vmatpush1.bf16.msra.mxu0 0
        %2654 = vmatprep.subr.bf16.mxu0 0
        %2655 = vmatpush1.bf16.msra.mxu0 0
        %2656 = vmatprep.subr.bf16.mxu0 0
        %2657 = vmatpush1.bf16.msra.mxu0 0
        %2658 = vmatprep.mubr.bf16.mxu0 0
        %2659 = vmatmul.mubr.bf16.gmra.mrb[0].mxu0 %v1201
        %v2660 = vpop.f32.mrb[0].mxu0
        %v2661 = vadd.f32 %v1384, %v2660
        %v2662 = vpop.f32.mrb[0].mxu0
        %v2663 = vadd.f32 %v1388, %v2662
        %v2664 = vpop.f32.mrb[0].mxu0
        %v2665 = vadd.f32 %v1384, %v2664
        %v2666 = vpop.f32.mrb[0].mxu0
        %v2667 = vadd.f32 %v1388, %v2666
        %2668 = vmatprep.mubr.bf16.mxu0 0
        %2669 = vmatmul.mubr.bf16.gmra.mrb[0].mxu0 %v1202
        %v2670 = vpop.f32.mrb[0].mxu0
        %v2671 = vadd.f32 %v1384, %v2670
        %v2672 = vpop.f32.mrb[0].mxu0
        %v2673 = vadd.f32 %v1388, %v2672
        %v2674 = vpop.f32.mrb[0].mxu0
        %v2675 = vadd.f32 %v1384, %v2674
        %v2676 = vpop.f32.mrb[0].mxu0
        %v2677 = vadd.f32 %v1388, %v2676
        %2678 = vmatprep.mubr.bf16.mxu0 0
        %2679 = vmatmul.mubr.bf16.gmra.mrb[0].mxu0 %v1203
        %v2680 = vpop.f32.mrb[0].mxu0
        %v2681 = vadd.f32 %v1384, %v2680
        %v2682 = vpop.f32.mrb[0].mxu0
        %v2683 = vadd.f32 %v1388, %v2682
        %v2684 = vpop.f32.mrb[0].mxu0
        %v2685 = vadd.f32 %v1384, %v2684
        %v2686 = vpop.f32.mrb[0].mxu0
        %v2687 = vadd.f32 %v1388, %v2686
        %2688 = vmatprep.mubr.bf16.mxu0 0
        %2689 = vmatmul.mubr.bf16.gmra.mrb[0].mxu0 %v1204
        %v2690 = vpop.f32.mrb[0].mxu0
        %v2691 = vadd.f32 %v1384, %v2690
        %v2692 = vpop.f32.mrb[0].mxu0
        %v2693 = vadd.f32 %v1388, %v2692
        %v2694 = vpop.f32.mrb[0].mxu0
        %v2695 = vadd.f32 %v1384, %v2694
        %v2696 = vpop.f32.mrb[0].mxu0
        %v2697 = vadd.f32 %v1388, %v2696
        %2698 = vmatprep.mubr.bf16.mxu0 0
        %2699 = vmatmul.mubr.bf16.gmra.mrb[0].mxu0 %v1205
        %v2700 = vpop.f32.mrb[0].mxu0
        %v2701 = vadd.f32 %v1384, %v2700
        %v2702 = vpop.f32.mrb[0].mxu0
        %v2703 = vadd.f32 %v1388, %v2702
        %v2704 = vpop.f32.mrb[0].mxu0
        %v2705 = vadd.f32 %v1384, %v2704
        %v2706 = vpop.f32.mrb[0].mxu0
        %v2707 = vadd.f32 %v1388, %v2706
        %2708 = vmatprep.mubr.bf16.mxu0 0
        %2709 = vmatmul.mubr.bf16.gmra.mrb[0].mxu0 %v1206
        %v2710 = vpop.f32.mrb[0].mxu0
        %v2711 = vadd.f32 %v1384, %v2710
        %v2712 = vpop.f32.mrb[0].mxu0
        %v2713 = vadd.f32 %v1388, %v2712
        %v2714 = vpop.f32.mrb[0].mxu0
        %v2715 = vadd.f32 %v1384, %v2714
        %v2716 = vpop.f32.mrb[0].mxu0
        %v2717 = vadd.f32 %v1388, %v2716
        %2718 = vmatprep.mubr.bf16.mxu0 0
        %2719 = vmatmul.mubr.bf16.gmra.mrb[0].mxu0 %v1207
        %v2720 = vpop.f32.mrb[0].mxu0
        %v2721 = vadd.f32 %v1384, %v2720
        %v2722 = vpop.f32.mrb[0].mxu0
        %v2723 = vadd.f32 %v1388, %v2722
        %v2724 = vpop.f32.mrb[0].mxu0
        %v2725 = vadd.f32 %v1384, %v2724
        %v2726 = vpop.f32.mrb[0].mxu0
        %v2727 = vadd.f32 %v1388, %v2726
        %2728 = vmatprep.mubr.bf16.mxu0 0
        %2729 = vmatmul.mubr.bf16.gmra.mrb[0].mxu0 %v1208
        %v2730 = vpop.f32.mrb[0].mxu0
        %v2731 = vadd.f32 %v1384, %v2730
        %v2732 = vpop.f32.mrb[0].mxu0
        %v2733 = vadd.f32 %v1388, %v2732
        %v2734 = vpop.f32.mrb[0].mxu0
        %v2735 = vadd.f32 %v1384, %v2734
        %v2736 = vpop.f32.mrb[0].mxu0
        %v2737 = vadd.f32 %v1388, %v2736
        %2738 = vdwg.mxu0
        %2739 = vmatprep.subr.bf16.mxu0 %v1818
        %2740 = vmatpush1.bf16.msra.mxu0 %v1817
        %2741 = vmatprep.subr.bf16.mxu0 %v1834
        %2742 = vmatpush1.bf16.msra.mxu0 %v1833
        %2743 = vmatprep.subr.bf16.mxu0 %v1850
        %2744 = vmatpush1.bf16.msra.mxu0 %v1849
        %2745 = vmatprep.subr.bf16.mxu0 %v1866
        %2746 = vmatpush1.bf16.msra.mxu0 %v1865
        %2747 = vmatprep.subr.bf16.mxu0 %v1882
        %2748 = vmatpush1.bf16.msra.mxu0 %v1881
        %2749 = vmatprep.subr.bf16.mxu0 %v1898
        %2750 = vmatpush1.bf16.msra.mxu0 %v1897
        %2751 = vmatprep.subr.bf16.mxu0 %v1914
        %2752 = vmatpush1.bf16.msra.mxu0 %v1913
        %2753 = vmatprep.subr.bf16.mxu0 %v1930
        %2754 = vmatpush1.bf16.msra.mxu0 %v1929
        %2755 = vmatprep.subr.bf16.mxu0 0
        %2756 = vmatpush1.bf16.msra.mxu0 0
        %2757 = vmatprep.subr.bf16.mxu0 0
        %2758 = vmatpush1.bf16.msra.mxu0 0
        %2759 = vmatprep.subr.bf16.mxu0 0
        %2760 = vmatpush1.bf16.msra.mxu0 0
        %2761 = vmatprep.subr.bf16.mxu0 0
        %2762 = vmatpush1.bf16.msra.mxu0 0
        %2763 = vmatprep.subr.bf16.mxu0 0
        %2764 = vmatpush1.bf16.msra.mxu0 0
        %2765 = vmatprep.subr.bf16.mxu0 0
        %2766 = vmatpush1.bf16.msra.mxu0 0
        %2767 = vmatprep.subr.bf16.mxu0 0
        %2768 = vmatpush1.bf16.msra.mxu0 0
        %2769 = vmatprep.subr.bf16.mxu0 0
        %2770 = vmatpush1.bf16.msra.mxu0 0
        %2771 = vmatprep.mubr.bf16.mxu0 0
        %2772 = vmatmul.mubr.bf16.gmra.mrb[0].mxu0 %v1201
        %v2773 = vpop.f32.mrb[0].mxu0
        %v2774 = vadd.f32 %v1392, %v2773
        %v2775 = vpop.f32.mrb[0].mxu0
        %v2776 = vadd.f32 %v1396, %v2775
        %v2777 = vpop.f32.mrb[0].mxu0
        %v2778 = vadd.f32 %v1392, %v2777
        %v2779 = vpop.f32.mrb[0].mxu0
        %v2780 = vadd.f32 %v1396, %v2779
        %2781 = vmatprep.mubr.bf16.mxu0 0
        %2782 = vmatmul.mubr.bf16.gmra.mrb[0].mxu0 %v1202
        %v2783 = vpop.f32.mrb[0].mxu0
        %v2784 = vadd.f32 %v1392, %v2783
        %v2785 = vpop.f32.mrb[0].mxu0
        %v2786 = vadd.f32 %v1396, %v2785
        %v2787 = vpop.f32.mrb[0].mxu0
        %v2788 = vadd.f32 %v1392, %v2787
        %v2789 = vpop.f32.mrb[0].mxu0
        %v2790 = vadd.f32 %v1396, %v2789
        %2791 = vmatprep.mubr.bf16.mxu0 0
        %2792 = vmatmul.mubr.bf16.gmra.mrb[0].mxu0 %v1203
        %v2793 = vpop.f32.mrb[0].mxu0
        %v2794 = vadd.f32 %v1392, %v2793
        %v2795 = vpop.f32.mrb[0].mxu0
        %v2796 = vadd.f32 %v1396, %v2795
        %v2797 = vpop.f32.mrb[0].mxu0
        %v2798 = vadd.f32 %v1392, %v2797
        %v2799 = vpop.f32.mrb[0].mxu0
        %v2800 = vadd.f32 %v1396, %v2799
        %2801 = vmatprep.mubr.bf16.mxu0 0
        %2802 = vmatmul.mubr.bf16.gmra.mrb[0].mxu0 %v1204
        %v2803 = vpop.f32.mrb[0].mxu0
        %v2804 = vadd.f32 %v1392, %v2803
        %v2805 = vpop.f32.mrb[0].mxu0
        %v2806 = vadd.f32 %v1396, %v2805
        %v2807 = vpop.f32.mrb[0].mxu0
        %v2808 = vadd.f32 %v1392, %v2807
        %v2809 = vpop.f32.mrb[0].mxu0
        %v2810 = vadd.f32 %v1396, %v2809
        %2811 = vmatprep.mubr.bf16.mxu0 0
        %2812 = vmatmul.mubr.bf16.gmra.mrb[0].mxu0 %v1205
        %v2813 = vpop.f32.mrb[0].mxu0
        %v2814 = vadd.f32 %v1392, %v2813
        %v2815 = vpop.f32.mrb[0].mxu0
        %v2816 = vadd.f32 %v1396, %v2815
        %v2817 = vpop.f32.mrb[0].mxu0
        %v2818 = vadd.f32 %v1392, %v2817
        %v2819 = vpop.f32.mrb[0].mxu0
        %v2820 = vadd.f32 %v1396, %v2819
        %2821 = vmatprep.mubr.bf16.mxu0 0
        %2822 = vmatmul.mubr.bf16.gmra.mrb[0].mxu0 %v1206
        %v2823 = vpop.f32.mrb[0].mxu0
        %v2824 = vadd.f32 %v1392, %v2823
        %v2825 = vpop.f32.mrb[0].mxu0
        %v2826 = vadd.f32 %v1396, %v2825
        %v2827 = vpop.f32.mrb[0].mxu0
        %v2828 = vadd.f32 %v1392, %v2827
        %v2829 = vpop.f32.mrb[0].mxu0
        %v2830 = vadd.f32 %v1396, %v2829
        %2831 = vmatprep.mubr.bf16.mxu0 0
        %2832 = vmatmul.mubr.bf16.gmra.mrb[0].mxu0 %v1207
        %v2833 = vpop.f32.mrb[0].mxu0
        %v2834 = vadd.f32 %v1392, %v2833
        %v2835 = vpop.f32.mrb[0].mxu0
        %v2836 = vadd.f32 %v1396, %v2835
        %v2837 = vpop.f32.mrb[0].mxu0
        %v2838 = vadd.f32 %v1392, %v2837
        %v2839 = vpop.f32.mrb[0].mxu0
        %v2840 = vadd.f32 %v1396, %v2839
        %2841 = vmatprep.mubr.bf16.mxu0 0
        %2842 = vmatmul.mubr.bf16.gmra.mrb[0].mxu0 %v1208
        %v2843 = vpop.f32.mrb[0].mxu0
        %v2844 = vadd.f32 %v1392, %v2843
        %v2845 = vpop.f32.mrb[0].mxu0
        %v2846 = vadd.f32 %v1396, %v2845
        %v2847 = vpop.f32.mrb[0].mxu0
        %v2848 = vadd.f32 %v1392, %v2847
        %v2849 = vpop.f32.mrb[0].mxu0
        %v2850 = vadd.f32 %v1396, %v2849
        %2851 = vdwg.mxu0
        %2852 = vmatprep.subr.bf16.mxu0 %v1820
        %2853 = vmatpush1.bf16.msra.mxu0 %v1819
        %2854 = vmatprep.subr.bf16.mxu0 %v1836
        %2855 = vmatpush1.bf16.msra.mxu0 %v1835
        %2856 = vmatprep.subr.bf16.mxu0 %v1852
        %2857 = vmatpush1.bf16.msra.mxu0 %v1851
        %2858 = vmatprep.subr.bf16.mxu0 %v1868
        %2859 = vmatpush1.bf16.msra.mxu0 %v1867
        %2860 = vmatprep.subr.bf16.mxu0 %v1884
        %2861 = vmatpush1.bf16.msra.mxu0 %v1883
        %2862 = vmatprep.subr.bf16.mxu0 %v1900
        %2863 = vmatpush1.bf16.msra.mxu0 %v1899
        %2864 = vmatprep.subr.bf16.mxu0 %v1916
        %2865 = vmatpush1.bf16.msra.mxu0 %v1915
        %2866 = vmatprep.subr.bf16.mxu0 %v1932
        %2867 = vmatpush1.bf16.msra.mxu0 %v1931
        %2868 = vmatprep.subr.bf16.mxu0 0
        %2869 = vmatpush1.bf16.msra.mxu0 0
        %2870 = vmatprep.subr.bf16.mxu0 0
        %2871 = vmatpush1.bf16.msra.mxu0 0
        %2872 = vmatprep.subr.bf16.mxu0 0
        %2873 = vmatpush1.bf16.msra.mxu0 0
        %2874 = vmatprep.subr.bf16.mxu0 0
        %2875 = vmatpush1.bf16.msra.mxu0 0
        %2876 = vmatprep.subr.bf16.mxu0 0
        %2877 = vmatpush1.bf16.msra.mxu0 0
        %2878 = vmatprep.subr.bf16.mxu0 0
        %2879 = vmatpush1.bf16.msra.mxu0 0
        %2880 = vmatprep.subr.bf16.mxu0 0
        %2881 = vmatpush1.bf16.msra.mxu0 0
        %2882 = vmatprep.subr.bf16.mxu0 0
        %2883 = vmatpush1.bf16.msra.mxu0 0
        %2884 = vmatprep.mubr.bf16.mxu0 0
        %2885 = vmatmul.mubr.bf16.gmra.mrb[0].mxu0 %v1201
        %v2886 = vpop.f32.mrb[0].mxu0
        %v2887 = vadd.f32 %v1400, %v2886
        %v2888 = vpop.f32.mrb[0].mxu0
        %v2889 = vadd.f32 %v1404, %v2888
        %v2890 = vpop.f32.mrb[0].mxu0
        %v2891 = vadd.f32 %v1400, %v2890
        %v2892 = vpop.f32.mrb[0].mxu0
        %v2893 = vadd.f32 %v1404, %v2892
        %2894 = vmatprep.mubr.bf16.mxu0 0
        %2895 = vmatmul.mubr.bf16.gmra.mrb[0].mxu0 %v1202
        %v2896 = vpop.f32.mrb[0].mxu0
        %v2897 = vadd.f32 %v1400, %v2896
        %v2898 = vpop.f32.mrb[0].mxu0
        %v2899 = vadd.f32 %v1404, %v2898
        %v2900 = vpop.f32.mrb[0].mxu0
        %v2901 = vadd.f32 %v1400, %v2900
        %v2902 = vpop.f32.mrb[0].mxu0
        %v2903 = vadd.f32 %v1404, %v2902
        %2904 = vmatprep.mubr.bf16.mxu0 0
        %2905 = vmatmul.mubr.bf16.gmra.mrb[0].mxu0 %v1203
        %v2906 = vpop.f32.mrb[0].mxu0
        %v2907 = vadd.f32 %v1400, %v2906
        %v2908 = vpop.f32.mrb[0].mxu0
        %v2909 = vadd.f32 %v1404, %v2908
        %v2910 = vpop.f32.mrb[0].mxu0
        %v2911 = vadd.f32 %v1400, %v2910
        %v2912 = vpop.f32.mrb[0].mxu0
        %v2913 = vadd.f32 %v1404, %v2912
        %2914 = vmatprep.mubr.bf16.mxu0 0
        %2915 = vmatmul.mubr.bf16.gmra.mrb[0].mxu0 %v1204
        %v2916 = vpop.f32.mrb[0].mxu0
        %v2917 = vadd.f32 %v1400, %v2916
        %v2918 = vpop.f32.mrb[0].mxu0
        %v2919 = vadd.f32 %v1404, %v2918
        %v2920 = vpop.f32.mrb[0].mxu0
        %v2921 = vadd.f32 %v1400, %v2920
        %v2922 = vpop.f32.mrb[0].mxu0
        %v2923 = vadd.f32 %v1404, %v2922
        %2924 = vmatprep.mubr.bf16.mxu0 0
        %2925 = vmatmul.mubr.bf16.gmra.mrb[0].mxu0 %v1205
        %v2926 = vpop.f32.mrb[0].mxu0
        %v2927 = vadd.f32 %v1400, %v2926
        %v2928 = vpop.f32.mrb[0].mxu0
        %v2929 = vadd.f32 %v1404, %v2928
        %v2930 = vpop.f32.mrb[0].mxu0
        %v2931 = vadd.f32 %v1400, %v2930
        %v2932 = vpop.f32.mrb[0].mxu0
        %v2933 = vadd.f32 %v1404, %v2932
        %2934 = vmatprep.mubr.bf16.mxu0 0
        %2935 = vmatmul.mubr.bf16.gmra.mrb[0].mxu0 %v1206
        %v2936 = vpop.f32.mrb[0].mxu0
        %v2937 = vadd.f32 %v1400, %v2936
        %v2938 = vpop.f32.mrb[0].mxu0
        %v2939 = vadd.f32 %v1404, %v2938
        %v2940 = vpop.f32.mrb[0].mxu0
        %v2941 = vadd.f32 %v1400, %v2940
        %v2942 = vpop.f32.mrb[0].mxu0
        %v2943 = vadd.f32 %v1404, %v2942
        %2944 = vmatprep.mubr.bf16.mxu0 0
        %2945 = vmatmul.mubr.bf16.gmra.mrb[0].mxu0 %v1207
        %v2946 = vpop.f32.mrb[0].mxu0
        %v2947 = vadd.f32 %v1400, %v2946
        %v2948 = vpop.f32.mrb[0].mxu0
        %v2949 = vadd.f32 %v1404, %v2948
        %v2950 = vpop.f32.mrb[0].mxu0
        %v2951 = vadd.f32 %v1400, %v2950
        %v2952 = vpop.f32.mrb[0].mxu0
        %v2953 = vadd.f32 %v1404, %v2952
        %2954 = vmatprep.mubr.bf16.mxu0 0
        %2955 = vmatmul.mubr.bf16.gmra.mrb[0].mxu0 %v1208
        %v2956 = vpop.f32.mrb[0].mxu0
        %v2957 = vadd.f32 %v1400, %v2956
        %v2958 = vpop.f32.mrb[0].mxu0
        %v2959 = vadd.f32 %v1404, %v2958
        %v2960 = vpop.f32.mrb[0].mxu0
        %v2961 = vadd.f32 %v1400, %v2960
        %v2962 = vpop.f32.mrb[0].mxu0
        %v2963 = vadd.f32 %v1404, %v2962
        %2964 = vdwg.mxu0
        %v2965 = vmax.f32 %v2096, 0.0
        %v2966 = vmax.f32 %v2098, 0.0
        %v2967 = vmax.f32 %v2209, 0.0
        %v2968 = vmax.f32 %v2211, 0.0
        %v2969 = vmax.f32 %v2322, 0.0
        %v2970 = vmax.f32 %v2324, 0.0
        %v2971 = vmax.f32 %v2435, 0.0
        %v2972 = vmax.f32 %v2437, 0.0
        %v2973 = vmax.f32 %v2548, 0.0
        %v2974 = vmax.f32 %v2550, 0.0
        %v2975 = vmax.f32 %v2661, 0.0
        %v2976 = vmax.f32 %v2663, 0.0
        %v2977 = vmax.f32 %v2774, 0.0
        %v2978 = vmax.f32 %v2776, 0.0
        %v2979 = vmax.f32 %v2887, 0.0
        %v2980 = vmax.f32 %v2889, 0.0
        %v2981 = vmax.f32 %v2100, 0.0
        %v2982 = vmax.f32 %v2102, 0.0
        %v2983 = vmax.f32 %v2213, 0.0
        %v2984 = vmax.f32 %v2215, 0.0
        %v2985 = vmax.f32 %v2326, 0.0
        %v2986 = vmax.f32 %v2328, 0.0
        %v2987 = vmax.f32 %v2439, 0.0
        %v2988 = vmax.f32 %v2441, 0.0
        %v2989 = vmax.f32 %v2552, 0.0
        %v2990 = vmax.f32 %v2554, 0.0
        %v2991 = vmax.f32 %v2665, 0.0
        %v2992 = vmax.f32 %v2667, 0.0
        %v2993 = vmax.f32 %v2778, 0.0
        %v2994 = vmax.f32 %v2780, 0.0
        %v2995 = vmax.f32 %v2891, 0.0
        %v2996 = vmax.f32 %v2893, 0.0
        %v2997 = vmax.f32 %v2106, 0.0
        %v2998 = vmax.f32 %v2108, 0.0
        %v2999 = vmax.f32 %v2219, 0.0
        %v3000 = vmax.f32 %v2221, 0.0
        %v3001 = vmax.f32 %v2332, 0.0
        %v3002 = vmax.f32 %v2334, 0.0
        %v3003 = vmax.f32 %v2445, 0.0
        %v3004 = vmax.f32 %v2447, 0.0
        %v3005 = vmax.f32 %v2558, 0.0
        %v3006 = vmax.f32 %v2560, 0.0
        %v3007 = vmax.f32 %v2671, 0.0
        %v3008 = vmax.f32 %v2673, 0.0
        %v3009 = vmax.f32 %v2784, 0.0
        %v3010 = vmax.f32 %v2786, 0.0
        %v3011 = vmax.f32 %v2897, 0.0
        %v3012 = vmax.f32 %v2899, 0.0
        %v3013 = vmax.f32 %v2110, 0.0
        %v3014 = vmax.f32 %v2112, 0.0
        %v3015 = vmax.f32 %v2223, 0.0
        %v3016 = vmax.f32 %v2225, 0.0
        %v3017 = vmax.f32 %v2336, 0.0
        %v3018 = vmax.f32 %v2338, 0.0
        %v3019 = vmax.f32 %v2449, 0.0
        %v3020 = vmax.f32 %v2451, 0.0
        %v3021 = vmax.f32 %v2562, 0.0
        %v3022 = vmax.f32 %v2564, 0.0
        %v3023 = vmax.f32 %v2675, 0.0
        %v3024 = vmax.f32 %v2677, 0.0
        %v3025 = vmax.f32 %v2788, 0.0
        %v3026 = vmax.f32 %v2790, 0.0
        %v3027 = vmax.f32 %v2901, 0.0
        %v3028 = vmax.f32 %v2903, 0.0
        %v3029 = vmax.f32 %v2116, 0.0
        %v3030 = vmax.f32 %v2118, 0.0
        %v3031 = vmax.f32 %v2229, 0.0
        %v3032 = vmax.f32 %v2231, 0.0
        %v3033 = vmax.f32 %v2342, 0.0
        %v3034 = vmax.f32 %v2344, 0.0
        %v3035 = vmax.f32 %v2455, 0.0
        %v3036 = vmax.f32 %v2457, 0.0
        %v3037 = vmax.f32 %v2568, 0.0
        %v3038 = vmax.f32 %v2570, 0.0
        %v3039 = vmax.f32 %v2681, 0.0
        %v3040 = vmax.f32 %v2683, 0.0
        %v3041 = vmax.f32 %v2794, 0.0
        %v3042 = vmax.f32 %v2796, 0.0
        %v3043 = vmax.f32 %v2907, 0.0
        %v3044 = vmax.f32 %v2909, 0.0
        %v3045 = vmax.f32 %v2120, 0.0
        %v3046 = vmax.f32 %v2122, 0.0
        %v3047 = vmax.f32 %v2233, 0.0
        %v3048 = vmax.f32 %v2235, 0.0
        %v3049 = vmax.f32 %v2346, 0.0
        %v3050 = vmax.f32 %v2348, 0.0
        %v3051 = vmax.f32 %v2459, 0.0
        %v3052 = vmax.f32 %v2461, 0.0
        %v3053 = vmax.f32 %v2572, 0.0
        %v3054 = vmax.f32 %v2574, 0.0
        %v3055 = vmax.f32 %v2685, 0.0
        %v3056 = vmax.f32 %v2687, 0.0
        %v3057 = vmax.f32 %v2798, 0.0
        %v3058 = vmax.f32 %v2800, 0.0
        %v3059 = vmax.f32 %v2911, 0.0
        %v3060 = vmax.f32 %v2913, 0.0
        %v3061 = vmax.f32 %v2126, 0.0
        %v3062 = vmax.f32 %v2128, 0.0
        %v3063 = vmax.f32 %v2239, 0.0
        %v3064 = vmax.f32 %v2241, 0.0
        %v3065 = vmax.f32 %v2352, 0.0
        %v3066 = vmax.f32 %v2354, 0.0
        %v3067 = vmax.f32 %v2465, 0.0
        %v3068 = vmax.f32 %v2467, 0.0
        %v3069 = vmax.f32 %v2578, 0.0
        %v3070 = vmax.f32 %v2580, 0.0
        %v3071 = vmax.f32 %v2691, 0.0
        %v3072 = vmax.f32 %v2693, 0.0
        %v3073 = vmax.f32 %v2804, 0.0
        %v3074 = vmax.f32 %v2806, 0.0
        %v3075 = vmax.f32 %v2917, 0.0
        %v3076 = vmax.f32 %v2919, 0.0
        %v3077 = vmax.f32 %v2130, 0.0
        %v3078 = vmax.f32 %v2132, 0.0
        %v3079 = vmax.f32 %v2243, 0.0
        %v3080 = vmax.f32 %v2245, 0.0
        %v3081 = vmax.f32 %v2356, 0.0
        %v3082 = vmax.f32 %v2358, 0.0
        %v3083 = vmax.f32 %v2469, 0.0
        %v3084 = vmax.f32 %v2471, 0.0
        %v3085 = vmax.f32 %v2582, 0.0
        %v3086 = vmax.f32 %v2584, 0.0
        %v3087 = vmax.f32 %v2695, 0.0
        %v3088 = vmax.f32 %v2697, 0.0
        %v3089 = vmax.f32 %v2808, 0.0
        %v3090 = vmax.f32 %v2810, 0.0
        %v3091 = vmax.f32 %v2921, 0.0
        %v3092 = vmax.f32 %v2923, 0.0
        %v3093 = vmax.f32 %v2136, 0.0
        %v3094 = vmax.f32 %v2138, 0.0
        %v3095 = vmax.f32 %v2249, 0.0
        %v3096 = vmax.f32 %v2251, 0.0
        %v3097 = vmax.f32 %v2362, 0.0
        %v3098 = vmax.f32 %v2364, 0.0
        %v3099 = vmax.f32 %v2475, 0.0
        %v3100 = vmax.f32 %v2477, 0.0
        %v3101 = vmax.f32 %v2588, 0.0
        %v3102 = vmax.f32 %v2590, 0.0
        %v3103 = vmax.f32 %v2701, 0.0
        %v3104 = vmax.f32 %v2703, 0.0
        %v3105 = vmax.f32 %v2814, 0.0
        %v3106 = vmax.f32 %v2816, 0.0
        %v3107 = vmax.f32 %v2927, 0.0
        %v3108 = vmax.f32 %v2929, 0.0
        %v3109 = vmax.f32 %v2140, 0.0
        %v3110 = vmax.f32 %v2142, 0.0
        %v3111 = vmax.f32 %v2253, 0.0
        %v3112 = vmax.f32 %v2255, 0.0
        %v3113 = vmax.f32 %v2366, 0.0
        %v3114 = vmax.f32 %v2368, 0.0
        %v3115 = vmax.f32 %v2479, 0.0
        %v3116 = vmax.f32 %v2481, 0.0
        %v3117 = vmax.f32 %v2592, 0.0
        %v3118 = vmax.f32 %v2594, 0.0
        %v3119 = vmax.f32 %v2705, 0.0
        %v3120 = vmax.f32 %v2707, 0.0
        %v3121 = vmax.f32 %v2818, 0.0
        %v3122 = vmax.f32 %v2820, 0.0
        %v3123 = vmax.f32 %v2931, 0.0
        %v3124 = vmax.f32 %v2933, 0.0
        %v3125 = vmax.f32 %v2146, 0.0
        %v3126 = vmax.f32 %v2148, 0.0
        %v3127 = vmax.f32 %v2259, 0.0
        %v3128 = vmax.f32 %v2261, 0.0
        %v3129 = vmax.f32 %v2372, 0.0
        %v3130 = vmax.f32 %v2374, 0.0
        %v3131 = vmax.f32 %v2485, 0.0
        %v3132 = vmax.f32 %v2487, 0.0
        %v3133 = vmax.f32 %v2598, 0.0
        %v3134 = vmax.f32 %v2600, 0.0
        %v3135 = vmax.f32 %v2711, 0.0
        %v3136 = vmax.f32 %v2713, 0.0
        %v3137 = vmax.f32 %v2824, 0.0
        %v3138 = vmax.f32 %v2826, 0.0
        %v3139 = vmax.f32 %v2937, 0.0
        %v3140 = vmax.f32 %v2939, 0.0
        %v3141 = vmax.f32 %v2150, 0.0
        %v3142 = vmax.f32 %v2152, 0.0
        %v3143 = vmax.f32 %v2263, 0.0
        %v3144 = vmax.f32 %v2265, 0.0
        %v3145 = vmax.f32 %v2376, 0.0
        %v3146 = vmax.f32 %v2378, 0.0
        %v3147 = vmax.f32 %v2489, 0.0
        %v3148 = vmax.f32 %v2491, 0.0
        %v3149 = vmax.f32 %v2602, 0.0
        %v3150 = vmax.f32 %v2604, 0.0
        %v3151 = vmax.f32 %v2715, 0.0
        %v3152 = vmax.f32 %v2717, 0.0
        %v3153 = vmax.f32 %v2828, 0.0
        %v3154 = vmax.f32 %v2830, 0.0
        %v3155 = vmax.f32 %v2941, 0.0
        %v3156 = vmax.f32 %v2943, 0.0
        %v3157 = vmax.f32 %v2156, 0.0
        %v3158 = vmax.f32 %v2158, 0.0
        %v3159 = vmax.f32 %v2269, 0.0
        %v3160 = vmax.f32 %v2271, 0.0
        %v3161 = vmax.f32 %v2382, 0.0
        %v3162 = vmax.f32 %v2384, 0.0
        %v3163 = vmax.f32 %v2495, 0.0
        %v3164 = vmax.f32 %v2497, 0.0
        %v3165 = vmax.f32 %v2608, 0.0
        %v3166 = vmax.f32 %v2610, 0.0
        %v3167 = vmax.f32 %v2721, 0.0
        %v3168 = vmax.f32 %v2723, 0.0
        %v3169 = vmax.f32 %v2834, 0.0
        %v3170 = vmax.f32 %v2836, 0.0
        %v3171 = vmax.f32 %v2947, 0.0
        %v3172 = vmax.f32 %v2949, 0.0
        %v3173 = vmax.f32 %v2160, 0.0
        %v3174 = vmax.f32 %v2162, 0.0
        %v3175 = vmax.f32 %v2273, 0.0
        %v3176 = vmax.f32 %v2275, 0.0
        %v3177 = vmax.f32 %v2386, 0.0
        %v3178 = vmax.f32 %v2388, 0.0
        %v3179 = vmax.f32 %v2499, 0.0
        %v3180 = vmax.f32 %v2501, 0.0
        %v3181 = vmax.f32 %v2612, 0.0
        %v3182 = vmax.f32 %v2614, 0.0
        %v3183 = vmax.f32 %v2725, 0.0
        %v3184 = vmax.f32 %v2727, 0.0
        %v3185 = vmax.f32 %v2838, 0.0
        %v3186 = vmax.f32 %v2840, 0.0
        %v3187 = vmax.f32 %v2951, 0.0
        %v3188 = vmax.f32 %v2953, 0.0
        %v3189 = vmax.f32 %v2166, 0.0
        %v3190 = vmax.f32 %v2168, 0.0
        %v3191 = vmax.f32 %v2279, 0.0
        %v3192 = vmax.f32 %v2281, 0.0
        %v3193 = vmax.f32 %v2392, 0.0
        %v3194 = vmax.f32 %v2394, 0.0
        %v3195 = vmax.f32 %v2505, 0.0
        %v3196 = vmax.f32 %v2507, 0.0
        %v3197 = vmax.f32 %v2618, 0.0
        %v3198 = vmax.f32 %v2620, 0.0
        %v3199 = vmax.f32 %v2731, 0.0
        %v3200 = vmax.f32 %v2733, 0.0
        %v3201 = vmax.f32 %v2844, 0.0
        %v3202 = vmax.f32 %v2846, 0.0
        %v3203 = vmax.f32 %v2957, 0.0
        %v3204 = vmax.f32 %v2959, 0.0
        %v3205 = vmax.f32 %v2170, 0.0
        %v3206 = vmax.f32 %v2172, 0.0
        %v3207 = vmax.f32 %v2283, 0.0
        %v3208 = vmax.f32 %v2285, 0.0
        %v3209 = vmax.f32 %v2396, 0.0
        %v3210 = vmax.f32 %v2398, 0.0
        %v3211 = vmax.f32 %v2509, 0.0
        %v3212 = vmax.f32 %v2511, 0.0
        %v3213 = vmax.f32 %v2622, 0.0
        %v3214 = vmax.f32 %v2624, 0.0
        %v3215 = vmax.f32 %v2735, 0.0
        %v3216 = vmax.f32 %v2737, 0.0
        %v3217 = vmax.f32 %v2848, 0.0
        %v3218 = vmax.f32 %v2850, 0.0
        %v3219 = vmax.f32 %v2961, 0.0
        %v3220 = vmax.f32 %v2963, 0.0
        %v3221 = vpack.c.bf16 %v2981, %v2965
        %v3222 = vpack.c.bf16 %v2982, %v2966
        %v3223 = vpack.c.bf16 %v2983, %v2967
        %v3224 = vpack.c.bf16 %v2984, %v2968
        %v3225 = vpack.c.bf16 %v2985, %v2969
        %v3226 = vpack.c.bf16 %v2986, %v2970
        %v3227 = vpack.c.bf16 %v2987, %v2971
        %v3228 = vpack.c.bf16 %v2988, %v2972
        %v3229 = vpack.c.bf16 %v2989, %v2973
        %v3230 = vpack.c.bf16 %v2990, %v2974
        %v3231 = vpack.c.bf16 %v2991, %v2975
        %v3232 = vpack.c.bf16 %v2992, %v2976
        %v3233 = vpack.c.bf16 %v2993, %v2977
        %v3234 = vpack.c.bf16 %v2994, %v2978
        %v3235 = vpack.c.bf16 %v2995, %v2979
        %v3236 = vpack.c.bf16 %v2996, %v2980
        %v3237 = vpack.c.bf16 %v3013, %v2997
        %v3238 = vpack.c.bf16 %v3014, %v2998
        %v3239 = vpack.c.bf16 %v3015, %v2999
        %v3240 = vpack.c.bf16 %v3016, %v3000
        %v3241 = vpack.c.bf16 %v3017, %v3001
        %v3242 = vpack.c.bf16 %v3018, %v3002
        %v3243 = vpack.c.bf16 %v3019, %v3003
        %v3244 = vpack.c.bf16 %v3020, %v3004
        %v3245 = vpack.c.bf16 %v3021, %v3005
        %v3246 = vpack.c.bf16 %v3022, %v3006
        %v3247 = vpack.c.bf16 %v3023, %v3007
        %v3248 = vpack.c.bf16 %v3024, %v3008
        %v3249 = vpack.c.bf16 %v3025, %v3009
        %v3250 = vpack.c.bf16 %v3026, %v3010
        %v3251 = vpack.c.bf16 %v3027, %v3011
        %v3252 = vpack.c.bf16 %v3028, %v3012
        %v3253 = vpack.c.bf16 %v3045, %v3029
        %v3254 = vpack.c.bf16 %v3046, %v3030
        %v3255 = vpack.c.bf16 %v3047, %v3031
        %v3256 = vpack.c.bf16 %v3048, %v3032
        %v3257 = vpack.c.bf16 %v3049, %v3033
        %v3258 = vpack.c.bf16 %v3050, %v3034
        %v3259 = vpack.c.bf16 %v3051, %v3035
        %v3260 = vpack.c.bf16 %v3052, %v3036
        %v3261 = vpack.c.bf16 %v3053, %v3037
        %v3262 = vpack.c.bf16 %v3054, %v3038
        %v3263 = vpack.c.bf16 %v3055, %v3039
        %v3264 = vpack.c.bf16 %v3056, %v3040
        %v3265 = vpack.c.bf16 %v3057, %v3041
        %v3266 = vpack.c.bf16 %v3058, %v3042
        %v3267 = vpack.c.bf16 %v3059, %v3043
        %v3268 = vpack.c.bf16 %v3060, %v3044
        %v3269 = vpack.c.bf16 %v3077, %v3061
        %v3270 = vpack.c.bf16 %v3078, %v3062
        %v3271 = vpack.c.bf16 %v3079, %v3063
        %v3272 = vpack.c.bf16 %v3080, %v3064
        %v3273 = vpack.c.bf16 %v3081, %v3065
        %v3274 = vpack.c.bf16 %v3082, %v3066
        %v3275 = vpack.c.bf16 %v3083, %v3067
        %v3276 = vpack.c.bf16 %v3084, %v3068
        %v3277 = vpack.c.bf16 %v3085, %v3069
        %v3278 = vpack.c.bf16 %v3086, %v3070
        %v3279 = vpack.c.bf16 %v3087, %v3071
        %v3280 = vpack.c.bf16 %v3088, %v3072
        %v3281 = vpack.c.bf16 %v3089, %v3073
        %v3282 = vpack.c.bf16 %v3090, %v3074
        %v3283 = vpack.c.bf16 %v3091, %v3075
        %v3284 = vpack.c.bf16 %v3092, %v3076
        %v3285 = vpack.c.bf16 %v3109, %v3093
        %v3286 = vpack.c.bf16 %v3110, %v3094
        %v3287 = vpack.c.bf16 %v3111, %v3095
        %v3288 = vpack.c.bf16 %v3112, %v3096
        %v3289 = vpack.c.bf16 %v3113, %v3097
        %v3290 = vpack.c.bf16 %v3114, %v3098
        %v3291 = vpack.c.bf16 %v3115, %v3099
        %v3292 = vpack.c.bf16 %v3116, %v3100
        %v3293 = vpack.c.bf16 %v3117, %v3101
        %v3294 = vpack.c.bf16 %v3118, %v3102
        %v3295 = vpack.c.bf16 %v3119, %v3103
        %v3296 = vpack.c.bf16 %v3120, %v3104
        %v3297 = vpack.c.bf16 %v3121, %v3105
        %v3298 = vpack.c.bf16 %v3122, %v3106
        %v3299 = vpack.c.bf16 %v3123, %v3107
        %v3300 = vpack.c.bf16 %v3124, %v3108
        %v3301 = vpack.c.bf16 %v3141, %v3125
        %v3302 = vpack.c.bf16 %v3142, %v3126
        %v3303 = vpack.c.bf16 %v3143, %v3127
        %v3304 = vpack.c.bf16 %v3144, %v3128
        %v3305 = vpack.c.bf16 %v3145, %v3129
        %v3306 = vpack.c.bf16 %v3146, %v3130
        %v3307 = vpack.c.bf16 %v3147, %v3131
        %v3308 = vpack.c.bf16 %v3148, %v3132
        %v3309 = vpack.c.bf16 %v3149, %v3133
        %v3310 = vpack.c.bf16 %v3150, %v3134
        %v3311 = vpack.c.bf16 %v3151, %v3135
        %v3312 = vpack.c.bf16 %v3152, %v3136
        %v3313 = vpack.c.bf16 %v3153, %v3137
        %v3314 = vpack.c.bf16 %v3154, %v3138
        %v3315 = vpack.c.bf16 %v3155, %v3139
        %v3316 = vpack.c.bf16 %v3156, %v3140
        %v3317 = vpack.c.bf16 %v3173, %v3157
        %v3318 = vpack.c.bf16 %v3174, %v3158
        %v3319 = vpack.c.bf16 %v3175, %v3159
        %v3320 = vpack.c.bf16 %v3176, %v3160
        %v3321 = vpack.c.bf16 %v3177, %v3161
        %v3322 = vpack.c.bf16 %v3178, %v3162
        %v3323 = vpack.c.bf16 %v3179, %v3163
        %v3324 = vpack.c.bf16 %v3180, %v3164
        %v3325 = vpack.c.bf16 %v3181, %v3165
        %v3326 = vpack.c.bf16 %v3182, %v3166
        %v3327 = vpack.c.bf16 %v3183, %v3167
        %v3328 = vpack.c.bf16 %v3184, %v3168
        %v3329 = vpack.c.bf16 %v3185, %v3169
        %v3330 = vpack.c.bf16 %v3186, %v3170
        %v3331 = vpack.c.bf16 %v3187, %v3171
        %v3332 = vpack.c.bf16 %v3188, %v3172
        %v3333 = vpack.c.bf16 %v3205, %v3189
        %v3334 = vpack.c.bf16 %v3206, %v3190
        %v3335 = vpack.c.bf16 %v3207, %v3191
        %v3336 = vpack.c.bf16 %v3208, %v3192
        %v3337 = vpack.c.bf16 %v3209, %v3193
        %v3338 = vpack.c.bf16 %v3210, %v3194
        %v3339 = vpack.c.bf16 %v3211, %v3195
        %v3340 = vpack.c.bf16 %v3212, %v3196
        %v3341 = vpack.c.bf16 %v3213, %v3197
        %v3342 = vpack.c.bf16 %v3214, %v3198
        %v3343 = vpack.c.bf16 %v3215, %v3199
        %v3344 = vpack.c.bf16 %v3216, %v3200
        %v3345 = vpack.c.bf16 %v3217, %v3201
        %v3346 = vpack.c.bf16 %v3218, %v3202
        %v3347 = vpack.c.bf16 %v3219, %v3203
        %v3348 = vpack.c.bf16 %v3220, %v3204
        %v3349 = vld [vmem:[#allocation10] sm:$0xf]
        %v3350 = vld [vmem:[#allocation10 + $0x4] sm:$0xf]
        %v3351 = vld [vmem:[#allocation10 + $0x8] sm:$0xf]
        %v3352 = vld [vmem:[#allocation10 + $0xc] sm:$0xf]
        %v3353 = vld [vmem:[#allocation10 + $0x10] sm:$0xf]
        %v3354 = vld [vmem:[#allocation10 + $0x14] sm:$0xf]
        %v3355 = vld [vmem:[#allocation10 + $0x18] sm:$0xf]
        %v3356 = vld [vmem:[#allocation10 + $0x1c] sm:$0xf]
        %v3357 = vld [vmem:[#allocation10 + $0x20] sm:$0xf]
        %v3358 = vld [vmem:[#allocation10 + $0x24] sm:$0xf]
        %v3359 = vld [vmem:[#allocation10 + $0x28] sm:$0xf]
        %v3360 = vld [vmem:[#allocation10 + $0x2c] sm:$0xf]
        %v3361 = vld [vmem:[#allocation10 + $0x30] sm:$0xf]
        %v3362 = vld [vmem:[#allocation10 + $0x34] sm:$0xf]
        %v3363 = vld [vmem:[#allocation10 + $0x38] sm:$0xf]
        %v3364 = vld [vmem:[#allocation10 + $0x3c] sm:$0xf]
        %v3365 = vld [vmem:[#allocation10 + $0x40] sm:$0xf]
        %v3366 = vld [vmem:[#allocation10 + $0x44] sm:$0xf]
        %v3367 = vld [vmem:[#allocation10 + $0x48] sm:$0xf]
        %v3368 = vld [vmem:[#allocation10 + $0x4c] sm:$0xf]
        %v3369 = vld [vmem:[#allocation10 + $0x50] sm:$0xf]
        %v3370 = vld [vmem:[#allocation10 + $0x54] sm:$0xf]
        %v3371 = vld [vmem:[#allocation10 + $0x58] sm:$0xf]
        %v3372 = vld [vmem:[#allocation10 + $0x5c] sm:$0xf]
        %v3373 = vld [vmem:[#allocation10 + $0x60] sm:$0xf]
        %v3374 = vld [vmem:[#allocation10 + $0x64] sm:$0xf]
        %v3375 = vld [vmem:[#allocation10 + $0x68] sm:$0xf]
        %v3376 = vld [vmem:[#allocation10 + $0x6c] sm:$0xf]
        %v3377 = vld [vmem:[#allocation10 + $0x70] sm:$0xf]
        %v3378 = vld [vmem:[#allocation10 + $0x74] sm:$0xf]
        %v3379 = vld [vmem:[#allocation10 + $0x78] sm:$0xf]
        %v3380 = vld [vmem:[#allocation10 + $0x7c] sm:$0xf]
        %v3381 = vld [vmem:[#allocation10 + $0x80] sm:$0xf]
        %v3382 = vld [vmem:[#allocation10 + $0x84] sm:$0xf]
        %v3383 = vld [vmem:[#allocation10 + $0x88] sm:$0xf]
        %v3384 = vld [vmem:[#allocation10 + $0x8c] sm:$0xf]
        %v3385 = vld [vmem:[#allocation10 + $0x90] sm:$0xf]
        %v3386 = vld [vmem:[#allocation10 + $0x94] sm:$0xf]
        %v3387 = vld [vmem:[#allocation10 + $0x98] sm:$0xf]
        %v3388 = vld [vmem:[#allocation10 + $0x9c] sm:$0xf]
        %v3389 = vld [vmem:[#allocation10 + $0xa0] sm:$0xf]
        %v3390 = vld [vmem:[#allocation10 + $0xa4] sm:$0xf]
        %v3391 = vld [vmem:[#allocation10 + $0xa8] sm:$0xf]
        %v3392 = vld [vmem:[#allocation10 + $0xac] sm:$0xf]
        %v3393 = vld [vmem:[#allocation10 + $0xb0] sm:$0xf]
        %v3394 = vld [vmem:[#allocation10 + $0xb4] sm:$0xf]
        %v3395 = vld [vmem:[#allocation10 + $0xb8] sm:$0xf]
        %v3396 = vld [vmem:[#allocation10 + $0xbc] sm:$0xf]
        %v3397 = vld [vmem:[#allocation10 + $0xc0] sm:$0xf]
        %v3398 = vld [vmem:[#allocation10 + $0xc4] sm:$0xf]
        %v3399 = vld [vmem:[#allocation10 + $0xc8] sm:$0xf]
        %v3400 = vld [vmem:[#allocation10 + $0xcc] sm:$0xf]
        %v3401 = vld [vmem:[#allocation10 + $0xd0] sm:$0xf]
        %v3402 = vld [vmem:[#allocation10 + $0xd4] sm:$0xf]
        %v3403 = vld [vmem:[#allocation10 + $0xd8] sm:$0xf]
        %v3404 = vld [vmem:[#allocation10 + $0xdc] sm:$0xf]
        %v3405 = vld [vmem:[#allocation10 + $0xe0] sm:$0xf]
        %v3406 = vld [vmem:[#allocation10 + $0xe4] sm:$0xf]
        %v3407 = vld [vmem:[#allocation10 + $0xe8] sm:$0xf]
        %v3408 = vld [vmem:[#allocation10 + $0xec] sm:$0xf]
        %v3409 = vld [vmem:[#allocation10 + $0xf0] sm:$0xf]
        %v3410 = vld [vmem:[#allocation10 + $0xf4] sm:$0xf]
        %v3411 = vld [vmem:[#allocation10 + $0xf8] sm:$0xf]
        %v3412 = vld [vmem:[#allocation10 + $0xfc] sm:$0xf]
        %v3413 = vld [vmem:[#allocation10 + $0x100] sm:$0xf]
        %v3414 = vld [vmem:[#allocation10 + $0x104] sm:$0xf]
        %v3415 = vld [vmem:[#allocation10 + $0x108] sm:$0xf]
        %v3416 = vld [vmem:[#allocation10 + $0x10c] sm:$0xf]
        %v3417 = vld [vmem:[#allocation10 + $0x110] sm:$0xf]
        %v3418 = vld [vmem:[#allocation10 + $0x114] sm:$0xf]
        %v3419 = vld [vmem:[#allocation10 + $0x118] sm:$0xf]
        %v3420 = vld [vmem:[#allocation10 + $0x11c] sm:$0xf]
        %v3421 = vld [vmem:[#allocation10 + $0x120] sm:$0xf]
        %v3422 = vld [vmem:[#allocation10 + $0x124] sm:$0xf]
        %v3423 = vld [vmem:[#allocation10 + $0x128] sm:$0xf]
        %v3424 = vld [vmem:[#allocation10 + $0x12c] sm:$0xf]
        %v3425 = vld [vmem:[#allocation10 + $0x130] sm:$0xf]
        %v3426 = vld [vmem:[#allocation10 + $0x134] sm:$0xf]
        %v3427 = vld [vmem:[#allocation10 + $0x138] sm:$0xf]
        %v3428 = vld [vmem:[#allocation10 + $0x13c] sm:$0xf]
        %v3429 = vld [vmem:[#allocation10 + $0x140] sm:$0xf]
        %v3430 = vld [vmem:[#allocation10 + $0x144] sm:$0xf]
        %v3431 = vld [vmem:[#allocation10 + $0x148] sm:$0xf]
        %v3432 = vld [vmem:[#allocation10 + $0x14c] sm:$0xf]
        %v3433 = vld [vmem:[#allocation10 + $0x150] sm:$0xf]
        %v3434 = vld [vmem:[#allocation10 + $0x154] sm:$0xf]
        %v3435 = vld [vmem:[#allocation10 + $0x158] sm:$0xf]
        %v3436 = vld [vmem:[#allocation10 + $0x15c] sm:$0xf]
        %v3437 = vld [vmem:[#allocation10 + $0x160] sm:$0xf]
        %v3438 = vld [vmem:[#allocation10 + $0x164] sm:$0xf]
        %v3439 = vld [vmem:[#allocation10 + $0x168] sm:$0xf]
        %v3440 = vld [vmem:[#allocation10 + $0x16c] sm:$0xf]
        %v3441 = vld [vmem:[#allocation10 + $0x170] sm:$0xf]
        %v3442 = vld [vmem:[#allocation10 + $0x174] sm:$0xf]
        %v3443 = vld [vmem:[#allocation10 + $0x178] sm:$0xf]
        %v3444 = vld [vmem:[#allocation10 + $0x17c] sm:$0xf]
        %v3445 = vld [vmem:[#allocation10 + $0x180] sm:$0xf]
        %v3446 = vld [vmem:[#allocation10 + $0x184] sm:$0xf]
        %v3447 = vld [vmem:[#allocation10 + $0x188] sm:$0xf]
        %v3448 = vld [vmem:[#allocation10 + $0x18c] sm:$0xf]
        %v3449 = vld [vmem:[#allocation10 + $0x190] sm:$0xf]
        %v3450 = vld [vmem:[#allocation10 + $0x194] sm:$0xf]
        %v3451 = vld [vmem:[#allocation10 + $0x198] sm:$0xf]
        %v3452 = vld [vmem:[#allocation10 + $0x19c] sm:$0xf]
        %v3453 = vld [vmem:[#allocation10 + $0x1a0] sm:$0xf]
        %v3454 = vld [vmem:[#allocation10 + $0x1a4] sm:$0xf]
        %v3455 = vld [vmem:[#allocation10 + $0x1a8] sm:$0xf]
        %v3456 = vld [vmem:[#allocation10 + $0x1ac] sm:$0xf]
        %v3457 = vld [vmem:[#allocation10 + $0x1b0] sm:$0xf]
        %v3458 = vld [vmem:[#allocation10 + $0x1b4] sm:$0xf]
        %v3459 = vld [vmem:[#allocation10 + $0x1b8] sm:$0xf]
        %v3460 = vld [vmem:[#allocation10 + $0x1bc] sm:$0xf]
        %v3461 = vld [vmem:[#allocation10 + $0x1c0] sm:$0xf]
        %v3462 = vld [vmem:[#allocation10 + $0x1c4] sm:$0xf]
        %v3463 = vld [vmem:[#allocation10 + $0x1c8] sm:$0xf]
        %v3464 = vld [vmem:[#allocation10 + $0x1cc] sm:$0xf]
        %v3465 = vld [vmem:[#allocation10 + $0x1d0] sm:$0xf]
        %v3466 = vld [vmem:[#allocation10 + $0x1d4] sm:$0xf]
        %v3467 = vld [vmem:[#allocation10 + $0x1d8] sm:$0xf]
        %v3468 = vld [vmem:[#allocation10 + $0x1dc] sm:$0xf]
        %v3469 = vld [vmem:[#allocation10 + $0x1e0] sm:$0xf]
        %v3470 = vld [vmem:[#allocation10 + $0x1e4] sm:$0xf]
        %v3471 = vld [vmem:[#allocation10 + $0x1e8] sm:$0xf]
        %v3472 = vld [vmem:[#allocation10 + $0x1ec] sm:$0xf]
        %v3473 = vld [vmem:[#allocation10 + $0x1f0] sm:$0xf]
        %v3474 = vld [vmem:[#allocation10 + $0x1f4] sm:$0xf]
        %v3475 = vld [vmem:[#allocation10 + $0x1f8] sm:$0xf]
        %v3476 = vld [vmem:[#allocation10 + $0x1fc] sm:$0xf]
        %v3477 = vld [vmem:[#allocation10 + $0x200] sm:$0xf]
        %v3478 = vld [vmem:[#allocation10 + $0x204] sm:$0xf]
        %v3479 = vld [vmem:[#allocation10 + $0x208] sm:$0xf]
        %v3480 = vld [vmem:[#allocation10 + $0x20c] sm:$0xf]
        %v3481 = vld [vmem:[#allocation10 + $0x210] sm:$0xf]
        %v3482 = vld [vmem:[#allocation10 + $0x214] sm:$0xf]
        %v3483 = vld [vmem:[#allocation10 + $0x218] sm:$0xf]
        %v3484 = vld [vmem:[#allocation10 + $0x21c] sm:$0xf]
        %v3485 = vld [vmem:[#allocation10 + $0x220] sm:$0xf]
        %v3486 = vld [vmem:[#allocation10 + $0x224] sm:$0xf]
        %v3487 = vld [vmem:[#allocation10 + $0x228] sm:$0xf]
        %v3488 = vld [vmem:[#allocation10 + $0x22c] sm:$0xf]
        %v3489 = vld [vmem:[#allocation10 + $0x230] sm:$0xf]
        %v3490 = vld [vmem:[#allocation10 + $0x234] sm:$0xf]
        %v3491 = vld [vmem:[#allocation10 + $0x238] sm:$0xf]
        %v3492 = vld [vmem:[#allocation10 + $0x23c] sm:$0xf]
        %v3493 = vld [vmem:[#allocation10 + $0x240] sm:$0xf]
        %v3494 = vld [vmem:[#allocation10 + $0x244] sm:$0xf]
        %v3495 = vld [vmem:[#allocation10 + $0x248] sm:$0xf]
        %v3496 = vld [vmem:[#allocation10 + $0x24c] sm:$0xf]
        %v3497 = vld [vmem:[#allocation10 + $0x250] sm:$0xf]
        %v3498 = vld [vmem:[#allocation10 + $0x254] sm:$0xf]
        %v3499 = vld [vmem:[#allocation10 + $0x258] sm:$0xf]
        %v3500 = vld [vmem:[#allocation10 + $0x25c] sm:$0xf]
        %v3501 = vld [vmem:[#allocation10 + $0x260] sm:$0xf]
        %v3502 = vld [vmem:[#allocation10 + $0x264] sm:$0xf]
        %v3503 = vld [vmem:[#allocation10 + $0x268] sm:$0xf]
        %v3504 = vld [vmem:[#allocation10 + $0x26c] sm:$0xf]
        %v3505 = vld [vmem:[#allocation10 + $0x270] sm:$0xf]
        %v3506 = vld [vmem:[#allocation10 + $0x274] sm:$0xf]
        %v3507 = vld [vmem:[#allocation10 + $0x278] sm:$0xf]
        %v3508 = vld [vmem:[#allocation10 + $0x27c] sm:$0xf]
        %v3509 = vld [vmem:[#allocation10 + $0x280] sm:$0xf]
        %v3510 = vld [vmem:[#allocation10 + $0x284] sm:$0xf]
        %v3511 = vld [vmem:[#allocation10 + $0x288] sm:$0xf]
        %v3512 = vld [vmem:[#allocation10 + $0x28c] sm:$0xf]
        %v3513 = vld [vmem:[#allocation10 + $0x290] sm:$0xf]
        %v3514 = vld [vmem:[#allocation10 + $0x294] sm:$0xf]
        %v3515 = vld [vmem:[#allocation10 + $0x298] sm:$0xf]
        %v3516 = vld [vmem:[#allocation10 + $0x29c] sm:$0xf]
        %v3517 = vld [vmem:[#allocation10 + $0x2a0] sm:$0xf]
        %v3518 = vld [vmem:[#allocation10 + $0x2a4] sm:$0xf]
        %v3519 = vld [vmem:[#allocation10 + $0x2a8] sm:$0xf]
        %v3520 = vld [vmem:[#allocation10 + $0x2ac] sm:$0xf]
        %v3521 = vld [vmem:[#allocation10 + $0x2b0] sm:$0xf]
        %v3522 = vld [vmem:[#allocation10 + $0x2b4] sm:$0xf]
        %v3523 = vld [vmem:[#allocation10 + $0x2b8] sm:$0xf]
        %v3524 = vld [vmem:[#allocation10 + $0x2bc] sm:$0xf]
        %v3525 = vld [vmem:[#allocation10 + $0x2c0] sm:$0xf]
        %v3526 = vld [vmem:[#allocation10 + $0x2c4] sm:$0xf]
        %v3527 = vld [vmem:[#allocation10 + $0x2c8] sm:$0xf]
        %v3528 = vld [vmem:[#allocation10 + $0x2cc] sm:$0xf]
        %v3529 = vld [vmem:[#allocation10 + $0x2d0] sm:$0xf]
        %v3530 = vld [vmem:[#allocation10 + $0x2d4] sm:$0xf]
        %v3531 = vld [vmem:[#allocation10 + $0x2d8] sm:$0xf]
        %v3532 = vld [vmem:[#allocation10 + $0x2dc] sm:$0xf]
        %v3533 = vld [vmem:[#allocation10 + $0x2e0] sm:$0xf]
        %v3534 = vld [vmem:[#allocation10 + $0x2e4] sm:$0xf]
        %v3535 = vld [vmem:[#allocation10 + $0x2e8] sm:$0xf]
        %v3536 = vld [vmem:[#allocation10 + $0x2ec] sm:$0xf]
        %v3537 = vld [vmem:[#allocation10 + $0x2f0] sm:$0xf]
        %v3538 = vld [vmem:[#allocation10 + $0x2f4] sm:$0xf]
        %v3539 = vld [vmem:[#allocation10 + $0x2f8] sm:$0xf]
        %v3540 = vld [vmem:[#allocation10 + $0x2fc] sm:$0xf]
        %v3541 = vld [vmem:[#allocation10 + $0x300] sm:$0xf]
        %v3542 = vld [vmem:[#allocation10 + $0x304] sm:$0xf]
        %v3543 = vld [vmem:[#allocation10 + $0x308] sm:$0xf]
        %v3544 = vld [vmem:[#allocation10 + $0x30c] sm:$0xf]
        %v3545 = vld [vmem:[#allocation10 + $0x310] sm:$0xf]
        %v3546 = vld [vmem:[#allocation10 + $0x314] sm:$0xf]
        %v3547 = vld [vmem:[#allocation10 + $0x318] sm:$0xf]
        %v3548 = vld [vmem:[#allocation10 + $0x31c] sm:$0xf]
        %v3549 = vld [vmem:[#allocation10 + $0x320] sm:$0xf]
        %v3550 = vld [vmem:[#allocation10 + $0x324] sm:$0xf]
        %v3551 = vld [vmem:[#allocation10 + $0x328] sm:$0xf]
        %v3552 = vld [vmem:[#allocation10 + $0x32c] sm:$0xf]
        %v3553 = vld [vmem:[#allocation10 + $0x330] sm:$0xf]
        %v3554 = vld [vmem:[#allocation10 + $0x334] sm:$0xf]
        %v3555 = vld [vmem:[#allocation10 + $0x338] sm:$0xf]
        %v3556 = vld [vmem:[#allocation10 + $0x33c] sm:$0xf]
        %v3557 = vld [vmem:[#allocation10 + $0x340] sm:$0xf]
        %v3558 = vld [vmem:[#allocation10 + $0x344] sm:$0xf]
        %v3559 = vld [vmem:[#allocation10 + $0x348] sm:$0xf]
        %v3560 = vld [vmem:[#allocation10 + $0x34c] sm:$0xf]
        %v3561 = vld [vmem:[#allocation10 + $0x350] sm:$0xf]
        %v3562 = vld [vmem:[#allocation10 + $0x354] sm:$0xf]
        %v3563 = vld [vmem:[#allocation10 + $0x358] sm:$0xf]
        %v3564 = vld [vmem:[#allocation10 + $0x35c] sm:$0xf]
        %v3565 = vld [vmem:[#allocation10 + $0x360] sm:$0xf]
        %v3566 = vld [vmem:[#allocation10 + $0x364] sm:$0xf]
        %v3567 = vld [vmem:[#allocation10 + $0x368] sm:$0xf]
        %v3568 = vld [vmem:[#allocation10 + $0x36c] sm:$0xf]
        %v3569 = vld [vmem:[#allocation10 + $0x370] sm:$0xf]
        %v3570 = vld [vmem:[#allocation10 + $0x374] sm:$0xf]
        %v3571 = vld [vmem:[#allocation10 + $0x378] sm:$0xf]
        %v3572 = vld [vmem:[#allocation10 + $0x37c] sm:$0xf]
        %v3573 = vld [vmem:[#allocation10 + $0x380] sm:$0xf]
        %v3574 = vld [vmem:[#allocation10 + $0x384] sm:$0xf]
        %v3575 = vld [vmem:[#allocation10 + $0x388] sm:$0xf]
        %v3576 = vld [vmem:[#allocation10 + $0x38c] sm:$0xf]
        %v3577 = vld [vmem:[#allocation10 + $0x390] sm:$0xf]
        %v3578 = vld [vmem:[#allocation10 + $0x394] sm:$0xf]
        %v3579 = vld [vmem:[#allocation10 + $0x398] sm:$0xf]
        %v3580 = vld [vmem:[#allocation10 + $0x39c] sm:$0xf]
        %v3581 = vld [vmem:[#allocation10 + $0x3a0] sm:$0xf]
        %v3582 = vld [vmem:[#allocation10 + $0x3a4] sm:$0xf]
        %v3583 = vld [vmem:[#allocation10 + $0x3a8] sm:$0xf]
        %v3584 = vld [vmem:[#allocation10 + $0x3ac] sm:$0xf]
        %v3585 = vld [vmem:[#allocation10 + $0x3b0] sm:$0xf]
        %v3586 = vld [vmem:[#allocation10 + $0x3b4] sm:$0xf]
        %v3587 = vld [vmem:[#allocation10 + $0x3b8] sm:$0xf]
        %v3588 = vld [vmem:[#allocation10 + $0x3bc] sm:$0xf]
        %v3589 = vld [vmem:[#allocation10 + $0x3c0] sm:$0xf]
        %v3590 = vld [vmem:[#allocation10 + $0x3c4] sm:$0xf]
        %v3591 = vld [vmem:[#allocation10 + $0x3c8] sm:$0xf]
        %v3592 = vld [vmem:[#allocation10 + $0x3cc] sm:$0xf]
        %v3593 = vld [vmem:[#allocation10 + $0x3d0] sm:$0xf]
        %v3594 = vld [vmem:[#allocation10 + $0x3d4] sm:$0xf]
        %v3595 = vld [vmem:[#allocation10 + $0x3d8] sm:$0xf]
        %v3596 = vld [vmem:[#allocation10 + $0x3dc] sm:$0xf]
        %v3597 = vld [vmem:[#allocation10 + $0x3e0] sm:$0xf]
        %v3598 = vld [vmem:[#allocation10 + $0x3e4] sm:$0xf]
        %v3599 = vld [vmem:[#allocation10 + $0x3e8] sm:$0xf]
        %v3600 = vld [vmem:[#allocation10 + $0x3ec] sm:$0xf]
        %v3601 = vld [vmem:[#allocation10 + $0x3f0] sm:$0xf]
        %v3602 = vld [vmem:[#allocation10 + $0x3f4] sm:$0xf]
        %v3603 = vld [vmem:[#allocation10 + $0x3f8] sm:$0xf]
        %v3604 = vld [vmem:[#allocation10 + $0x3fc] sm:$0xf]
        %v3605 = vld [vmem:[%s8] sm:$0x1]
        %v3607 = vlaneseq
        %v3608 = vshrl.u32 %v3607, 7
        %v3609 = vsub.s32 0, %v3608
        %v3610 = vrot.slane %v3605, %v3609
        %v3868 = vunpack.c.l.b16 %v3349
        %v3869 = vunpack.c.l.b16 %v3350
        %v3870 = vunpack.c.l.b16 %v3351
        %v3871 = vunpack.c.l.b16 %v3352
        %v3872 = vunpack.c.l.b16 %v3353
        %v3873 = vunpack.c.l.b16 %v3354
        %v3874 = vunpack.c.l.b16 %v3355
        %v3875 = vunpack.c.l.b16 %v3356
        %v3876 = vunpack.c.l.b16 %v3357
        %v3877 = vunpack.c.l.b16 %v3358
        %v3878 = vunpack.c.l.b16 %v3359
        %v3879 = vunpack.c.l.b16 %v3360
        %v3880 = vunpack.c.l.b16 %v3361
        %v3881 = vunpack.c.l.b16 %v3362
        %v3882 = vunpack.c.l.b16 %v3363
        %v3883 = vunpack.c.l.b16 %v3364
        %v3884 = vunpack.c.l.b16 %v3365
        %v3885 = vunpack.c.l.b16 %v3366
        %v3886 = vunpack.c.l.b16 %v3367
        %v3887 = vunpack.c.l.b16 %v3368
        %v3888 = vunpack.c.l.b16 %v3369
        %v3889 = vunpack.c.l.b16 %v3370
        %v3890 = vunpack.c.l.b16 %v3371
        %v3891 = vunpack.c.l.b16 %v3372
        %v3892 = vunpack.c.l.b16 %v3373
        %v3893 = vunpack.c.l.b16 %v3374
        %v3894 = vunpack.c.l.b16 %v3375
        %v3895 = vunpack.c.l.b16 %v3376
        %v3896 = vunpack.c.l.b16 %v3377
        %v3897 = vunpack.c.l.b16 %v3378
        %v3898 = vunpack.c.l.b16 %v3379
        %v3899 = vunpack.c.l.b16 %v3380
        %v3900 = vunpack.c.l.b16 %v3381
        %v3901 = vunpack.c.l.b16 %v3382
        %v3902 = vunpack.c.l.b16 %v3383
        %v3903 = vunpack.c.l.b16 %v3384
        %v3904 = vunpack.c.l.b16 %v3385
        %v3905 = vunpack.c.l.b16 %v3386
        %v3906 = vunpack.c.l.b16 %v3387
        %v3907 = vunpack.c.l.b16 %v3388
        %v3908 = vunpack.c.l.b16 %v3389
        %v3909 = vunpack.c.l.b16 %v3390
        %v3910 = vunpack.c.l.b16 %v3391
        %v3911 = vunpack.c.l.b16 %v3392
        %v3912 = vunpack.c.l.b16 %v3393
        %v3913 = vunpack.c.l.b16 %v3394
        %v3914 = vunpack.c.l.b16 %v3395
        %v3915 = vunpack.c.l.b16 %v3396
        %v3916 = vunpack.c.l.b16 %v3397
        %v3917 = vunpack.c.l.b16 %v3398
        %v3918 = vunpack.c.l.b16 %v3399
        %v3919 = vunpack.c.l.b16 %v3400
        %v3920 = vunpack.c.l.b16 %v3401
        %v3921 = vunpack.c.l.b16 %v3402
        %v3922 = vunpack.c.l.b16 %v3403
        %v3923 = vunpack.c.l.b16 %v3404
        %v3924 = vunpack.c.l.b16 %v3405
        %v3925 = vunpack.c.l.b16 %v3406
        %v3926 = vunpack.c.l.b16 %v3407
        %v3927 = vunpack.c.l.b16 %v3408
        %v3928 = vunpack.c.l.b16 %v3409
        %v3929 = vunpack.c.l.b16 %v3410
        %v3930 = vunpack.c.l.b16 %v3411
        %v3931 = vunpack.c.l.b16 %v3412
        %v3932 = vunpack.c.l.b16 %v3413
        %v3933 = vunpack.c.l.b16 %v3414
        %v3934 = vunpack.c.l.b16 %v3415
        %v3935 = vunpack.c.l.b16 %v3416
        %v3936 = vunpack.c.l.b16 %v3417
        %v3937 = vunpack.c.l.b16 %v3418
        %v3938 = vunpack.c.l.b16 %v3419
        %v3939 = vunpack.c.l.b16 %v3420
        %v3940 = vunpack.c.l.b16 %v3421
        %v3941 = vunpack.c.l.b16 %v3422
        %v3942 = vunpack.c.l.b16 %v3423
        %v3943 = vunpack.c.l.b16 %v3424
        %v3944 = vunpack.c.l.b16 %v3425
        %v3945 = vunpack.c.l.b16 %v3426
        %v3946 = vunpack.c.l.b16 %v3427
        %v3947 = vunpack.c.l.b16 %v3428
        %v3948 = vunpack.c.l.b16 %v3429
        %v3949 = vunpack.c.l.b16 %v3430
        %v3950 = vunpack.c.l.b16 %v3431
        %v3951 = vunpack.c.l.b16 %v3432
        %v3952 = vunpack.c.l.b16 %v3433
        %v3953 = vunpack.c.l.b16 %v3434
        %v3954 = vunpack.c.l.b16 %v3435
        %v3955 = vunpack.c.l.b16 %v3436
        %v3956 = vunpack.c.l.b16 %v3437
        %v3957 = vunpack.c.l.b16 %v3438
        %v3958 = vunpack.c.l.b16 %v3439
        %v3959 = vunpack.c.l.b16 %v3440
        %v3960 = vunpack.c.l.b16 %v3441
        %v3961 = vunpack.c.l.b16 %v3442
        %v3962 = vunpack.c.l.b16 %v3443
        %v3963 = vunpack.c.l.b16 %v3444
        %v3964 = vunpack.c.l.b16 %v3445
        %v3965 = vunpack.c.l.b16 %v3446
        %v3966 = vunpack.c.l.b16 %v3447
        %v3967 = vunpack.c.l.b16 %v3448
        %v3968 = vunpack.c.l.b16 %v3449
        %v3969 = vunpack.c.l.b16 %v3450
        %v3970 = vunpack.c.l.b16 %v3451
        %v3971 = vunpack.c.l.b16 %v3452
        %v3972 = vunpack.c.l.b16 %v3453
        %v3973 = vunpack.c.l.b16 %v3454
        %v3974 = vunpack.c.l.b16 %v3455
        %v3975 = vunpack.c.l.b16 %v3456
        %v3976 = vunpack.c.l.b16 %v3457
        %v3977 = vunpack.c.l.b16 %v3458
        %v3978 = vunpack.c.l.b16 %v3459
        %v3979 = vunpack.c.l.b16 %v3460
        %v3980 = vunpack.c.l.b16 %v3461
        %v3981 = vunpack.c.l.b16 %v3462
        %v3982 = vunpack.c.l.b16 %v3463
        %v3983 = vunpack.c.l.b16 %v3464
        %v3984 = vunpack.c.l.b16 %v3465
        %v3985 = vunpack.c.l.b16 %v3466
        %v3986 = vunpack.c.l.b16 %v3467
        %v3987 = vunpack.c.l.b16 %v3468
        %v3988 = vunpack.c.l.b16 %v3469
        %v3989 = vunpack.c.l.b16 %v3470
        %v3990 = vunpack.c.l.b16 %v3471
        %v3991 = vunpack.c.l.b16 %v3472
        %v3992 = vunpack.c.l.b16 %v3473
        %v3993 = vunpack.c.l.b16 %v3474
        %v3994 = vunpack.c.l.b16 %v3475
        %v3995 = vunpack.c.l.b16 %v3476
        %v3996 = vunpack.c.l.b16 %v3477
        %v3997 = vunpack.c.l.b16 %v3478
        %v3998 = vunpack.c.l.b16 %v3479
        %v3999 = vunpack.c.l.b16 %v3480
        %v4000 = vunpack.c.l.b16 %v3481
        %v4001 = vunpack.c.l.b16 %v3482
        %v4002 = vunpack.c.l.b16 %v3483
        %v4003 = vunpack.c.l.b16 %v3484
        %v4004 = vunpack.c.l.b16 %v3485
        %v4005 = vunpack.c.l.b16 %v3486
        %v4006 = vunpack.c.l.b16 %v3487
        %v4007 = vunpack.c.l.b16 %v3488
        %v4008 = vunpack.c.l.b16 %v3489
        %v4009 = vunpack.c.l.b16 %v3490
        %v4010 = vunpack.c.l.b16 %v3491
        %v4011 = vunpack.c.l.b16 %v3492
        %v4012 = vunpack.c.l.b16 %v3493
        %v4013 = vunpack.c.l.b16 %v3494
        %v4014 = vunpack.c.l.b16 %v3495
        %v4015 = vunpack.c.l.b16 %v3496
        %v4016 = vunpack.c.l.b16 %v3497
        %v4017 = vunpack.c.l.b16 %v3498
        %v4018 = vunpack.c.l.b16 %v3499
        %v4019 = vunpack.c.l.b16 %v3500
        %v4020 = vunpack.c.l.b16 %v3501
        %v4021 = vunpack.c.l.b16 %v3502
        %v4022 = vunpack.c.l.b16 %v3503
        %v4023 = vunpack.c.l.b16 %v3504
        %v4024 = vunpack.c.l.b16 %v3505
        %v4025 = vunpack.c.l.b16 %v3506
        %v4026 = vunpack.c.l.b16 %v3507
        %v4027 = vunpack.c.l.b16 %v3508
        %v4028 = vunpack.c.l.b16 %v3509
        %v4029 = vunpack.c.l.b16 %v3510
        %v4030 = vunpack.c.l.b16 %v3511
        %v4031 = vunpack.c.l.b16 %v3512
        %v4032 = vunpack.c.l.b16 %v3513
        %v4033 = vunpack.c.l.b16 %v3514
        %v4034 = vunpack.c.l.b16 %v3515
        %v4035 = vunpack.c.l.b16 %v3516
        %v4036 = vunpack.c.l.b16 %v3517
        %v4037 = vunpack.c.l.b16 %v3518
        %v4038 = vunpack.c.l.b16 %v3519
        %v4039 = vunpack.c.l.b16 %v3520
        %v4040 = vunpack.c.l.b16 %v3521
        %v4041 = vunpack.c.l.b16 %v3522
        %v4042 = vunpack.c.l.b16 %v3523
        %v4043 = vunpack.c.l.b16 %v3524
        %v4044 = vunpack.c.l.b16 %v3525
        %v4045 = vunpack.c.l.b16 %v3526
        %v4046 = vunpack.c.l.b16 %v3527
        %v4047 = vunpack.c.l.b16 %v3528
        %v4048 = vunpack.c.l.b16 %v3529
        %v4049 = vunpack.c.l.b16 %v3530
        %v4050 = vunpack.c.l.b16 %v3531
        %v4051 = vunpack.c.l.b16 %v3532
        %v4052 = vunpack.c.l.b16 %v3533
        %v4053 = vunpack.c.l.b16 %v3534
        %v4054 = vunpack.c.l.b16 %v3535
        %v4055 = vunpack.c.l.b16 %v3536
        %v4056 = vunpack.c.l.b16 %v3537
        %v4057 = vunpack.c.l.b16 %v3538
        %v4058 = vunpack.c.l.b16 %v3539
        %v4059 = vunpack.c.l.b16 %v3540
        %v4060 = vunpack.c.l.b16 %v3541
        %v4061 = vunpack.c.l.b16 %v3542
        %v4062 = vunpack.c.l.b16 %v3543
        %v4063 = vunpack.c.l.b16 %v3544
        %v4064 = vunpack.c.l.b16 %v3545
        %v4065 = vunpack.c.l.b16 %v3546
        %v4066 = vunpack.c.l.b16 %v3547
        %v4067 = vunpack.c.l.b16 %v3548
        %v4068 = vunpack.c.l.b16 %v3549
        %v4069 = vunpack.c.l.b16 %v3550
        %v4070 = vunpack.c.l.b16 %v3551
        %v4071 = vunpack.c.l.b16 %v3552
        %v4072 = vunpack.c.l.b16 %v3553
        %v4073 = vunpack.c.l.b16 %v3554
        %v4074 = vunpack.c.l.b16 %v3555
        %v4075 = vunpack.c.l.b16 %v3556
        %v4076 = vunpack.c.l.b16 %v3557
        %v4077 = vunpack.c.l.b16 %v3558
        %v4078 = vunpack.c.l.b16 %v3559
        %v4079 = vunpack.c.l.b16 %v3560
        %v4080 = vunpack.c.l.b16 %v3561
        %v4081 = vunpack.c.l.b16 %v3562
        %v4082 = vunpack.c.l.b16 %v3563
        %v4083 = vunpack.c.l.b16 %v3564
        %v4084 = vunpack.c.l.b16 %v3565
        %v4085 = vunpack.c.l.b16 %v3566
        %v4086 = vunpack.c.l.b16 %v3567
        %v4087 = vunpack.c.l.b16 %v3568
        %v4088 = vunpack.c.l.b16 %v3569
        %v4089 = vunpack.c.l.b16 %v3570
        %v4090 = vunpack.c.l.b16 %v3571
        %v4091 = vunpack.c.l.b16 %v3572
        %v4092 = vunpack.c.l.b16 %v3573
        %v4093 = vunpack.c.l.b16 %v3574
        %v4094 = vunpack.c.l.b16 %v3575
        %v4095 = vunpack.c.l.b16 %v3576
        %v4096 = vunpack.c.l.b16 %v3577
        %v4097 = vunpack.c.l.b16 %v3578
        %v4098 = vunpack.c.l.b16 %v3579
        %v4099 = vunpack.c.l.b16 %v3580
        %v4100 = vunpack.c.l.b16 %v3581
        %v4101 = vunpack.c.l.b16 %v3582
        %v4102 = vunpack.c.l.b16 %v3583
        %v4103 = vunpack.c.l.b16 %v3584
        %v4104 = vunpack.c.l.b16 %v3585
        %v4105 = vunpack.c.l.b16 %v3586
        %v4106 = vunpack.c.l.b16 %v3587
        %v4107 = vunpack.c.l.b16 %v3588
        %v4108 = vunpack.c.l.b16 %v3589
        %v4109 = vunpack.c.l.b16 %v3590
        %v4110 = vunpack.c.l.b16 %v3591
        %v4111 = vunpack.c.l.b16 %v3592
        %v4112 = vunpack.c.l.b16 %v3593
        %v4113 = vunpack.c.l.b16 %v3594
        %v4114 = vunpack.c.l.b16 %v3595
        %v4115 = vunpack.c.l.b16 %v3596
        %v4116 = vunpack.c.l.b16 %v3597
        %v4117 = vunpack.c.l.b16 %v3598
        %v4118 = vunpack.c.l.b16 %v3599
        %v4119 = vunpack.c.l.b16 %v3600
        %v4120 = vunpack.c.l.b16 %v3601
        %v4121 = vunpack.c.l.b16 %v3602
        %v4122 = vunpack.c.l.b16 %v3603
        %v4123 = vunpack.c.l.b16 %v3604
        %v4124 = vpack.c.b16 %v3869, %v3868
        %v4125 = vpack.c.b16 %v3871, %v3870
        %v4126 = vpack.c.b16 %v3873, %v3872
        %v4127 = vpack.c.b16 %v3875, %v3874
        %v4128 = vpack.c.b16 %v3877, %v3876
        %v4129 = vpack.c.b16 %v3879, %v3878
        %v4130 = vpack.c.b16 %v3881, %v3880
        %v4131 = vpack.c.b16 %v3883, %v3882
        %v4132 = vpack.c.b16 %v3885, %v3884
        %v4133 = vpack.c.b16 %v3887, %v3886
        %v4134 = vpack.c.b16 %v3889, %v3888
        %v4135 = vpack.c.b16 %v3891, %v3890
        %v4136 = vpack.c.b16 %v3893, %v3892
        %v4137 = vpack.c.b16 %v3895, %v3894
        %v4138 = vpack.c.b16 %v3897, %v3896
        %v4139 = vpack.c.b16 %v3899, %v3898
        %v4140 = vpack.c.b16 %v3901, %v3900
        %v4141 = vpack.c.b16 %v3903, %v3902
        %v4142 = vpack.c.b16 %v3905, %v3904
        %v4143 = vpack.c.b16 %v3907, %v3906
        %v4144 = vpack.c.b16 %v3909, %v3908
        %v4145 = vpack.c.b16 %v3911, %v3910
        %v4146 = vpack.c.b16 %v3913, %v3912
        %v4147 = vpack.c.b16 %v3915, %v3914
        %v4148 = vpack.c.b16 %v3917, %v3916
        %v4149 = vpack.c.b16 %v3919, %v3918
        %v4150 = vpack.c.b16 %v3921, %v3920
        %v4151 = vpack.c.b16 %v3923, %v3922
        %v4152 = vpack.c.b16 %v3925, %v3924
        %v4153 = vpack.c.b16 %v3927, %v3926
        %v4154 = vpack.c.b16 %v3929, %v3928
        %v4155 = vpack.c.b16 %v3931, %v3930
        %v4156 = vpack.c.b16 %v3933, %v3932
        %v4157 = vpack.c.b16 %v3935, %v3934
        %v4158 = vpack.c.b16 %v3937, %v3936
        %v4159 = vpack.c.b16 %v3939, %v3938
        %v4160 = vpack.c.b16 %v3941, %v3940
        %v4161 = vpack.c.b16 %v3943, %v3942
        %v4162 = vpack.c.b16 %v3945, %v3944
        %v4163 = vpack.c.b16 %v3947, %v3946
        %v4164 = vpack.c.b16 %v3949, %v3948
        %v4165 = vpack.c.b16 %v3951, %v3950
        %v4166 = vpack.c.b16 %v3953, %v3952
        %v4167 = vpack.c.b16 %v3955, %v3954
        %v4168 = vpack.c.b16 %v3957, %v3956
        %v4169 = vpack.c.b16 %v3959, %v3958
        %v4170 = vpack.c.b16 %v3961, %v3960
        %v4171 = vpack.c.b16 %v3963, %v3962
        %v4172 = vpack.c.b16 %v3965, %v3964
        %v4173 = vpack.c.b16 %v3967, %v3966
        %v4174 = vpack.c.b16 %v3969, %v3968
        %v4175 = vpack.c.b16 %v3971, %v3970
        %v4176 = vpack.c.b16 %v3973, %v3972
        %v4177 = vpack.c.b16 %v3975, %v3974
        %v4178 = vpack.c.b16 %v3977, %v3976
        %v4179 = vpack.c.b16 %v3979, %v3978
        %v4180 = vpack.c.b16 %v3981, %v3980
        %v4181 = vpack.c.b16 %v3983, %v3982
        %v4182 = vpack.c.b16 %v3985, %v3984
        %v4183 = vpack.c.b16 %v3987, %v3986
        %v4184 = vpack.c.b16 %v3989, %v3988
        %v4185 = vpack.c.b16 %v3991, %v3990
        %v4186 = vpack.c.b16 %v3993, %v3992
        %v4187 = vpack.c.b16 %v3995, %v3994
        %v4188 = vpack.c.b16 %v3997, %v3996
        %v4189 = vpack.c.b16 %v3999, %v3998
        %v4190 = vpack.c.b16 %v4001, %v4000
        %v4191 = vpack.c.b16 %v4003, %v4002
        %v4192 = vpack.c.b16 %v4005, %v4004
        %v4193 = vpack.c.b16 %v4007, %v4006
        %v4194 = vpack.c.b16 %v4009, %v4008
        %v4195 = vpack.c.b16 %v4011, %v4010
        %v4196 = vpack.c.b16 %v4013, %v4012
        %v4197 = vpack.c.b16 %v4015, %v4014
        %v4198 = vpack.c.b16 %v4017, %v4016
        %v4199 = vpack.c.b16 %v4019, %v4018
        %v4200 = vpack.c.b16 %v4021, %v4020
        %v4201 = vpack.c.b16 %v4023, %v4022
        %v4202 = vpack.c.b16 %v4025, %v4024
        %v4203 = vpack.c.b16 %v4027, %v4026
        %v4204 = vpack.c.b16 %v4029, %v4028
        %v4205 = vpack.c.b16 %v4031, %v4030
        %v4206 = vpack.c.b16 %v4033, %v4032
        %v4207 = vpack.c.b16 %v4035, %v4034
        %v4208 = vpack.c.b16 %v4037, %v4036
        %v4209 = vpack.c.b16 %v4039, %v4038
        %v4210 = vpack.c.b16 %v4041, %v4040
        %v4211 = vpack.c.b16 %v4043, %v4042
        %v4212 = vpack.c.b16 %v4045, %v4044
        %v4213 = vpack.c.b16 %v4047, %v4046
        %v4214 = vpack.c.b16 %v4049, %v4048
        %v4215 = vpack.c.b16 %v4051, %v4050
        %v4216 = vpack.c.b16 %v4053, %v4052
        %v4217 = vpack.c.b16 %v4055, %v4054
        %v4218 = vpack.c.b16 %v4057, %v4056
        %v4219 = vpack.c.b16 %v4059, %v4058
        %v4220 = vpack.c.b16 %v4061, %v4060
        %v4221 = vpack.c.b16 %v4063, %v4062
        %v4222 = vpack.c.b16 %v4065, %v4064
        %v4223 = vpack.c.b16 %v4067, %v4066
        %v4224 = vpack.c.b16 %v4069, %v4068
        %v4225 = vpack.c.b16 %v4071, %v4070
        %v4226 = vpack.c.b16 %v4073, %v4072
        %v4227 = vpack.c.b16 %v4075, %v4074
        %v4228 = vpack.c.b16 %v4077, %v4076
        %v4229 = vpack.c.b16 %v4079, %v4078
        %v4230 = vpack.c.b16 %v4081, %v4080
        %v4231 = vpack.c.b16 %v4083, %v4082
        %v4232 = vpack.c.b16 %v4085, %v4084
        %v4233 = vpack.c.b16 %v4087, %v4086
        %v4234 = vpack.c.b16 %v4089, %v4088
        %v4235 = vpack.c.b16 %v4091, %v4090
        %v4236 = vpack.c.b16 %v4093, %v4092
        %v4237 = vpack.c.b16 %v4095, %v4094
        %v4238 = vpack.c.b16 %v4097, %v4096
        %v4239 = vpack.c.b16 %v4099, %v4098
        %v4240 = vpack.c.b16 %v4101, %v4100
        %v4241 = vpack.c.b16 %v4103, %v4102
        %v4242 = vpack.c.b16 %v4105, %v4104
        %v4243 = vpack.c.b16 %v4107, %v4106
        %v4244 = vpack.c.b16 %v4109, %v4108
        %v4245 = vpack.c.b16 %v4111, %v4110
        %v4246 = vpack.c.b16 %v4113, %v4112
        %v4247 = vpack.c.b16 %v4115, %v4114
        %v4248 = vpack.c.b16 %v4117, %v4116
        %v4249 = vpack.c.b16 %v4119, %v4118
        %v4250 = vpack.c.b16 %v4121, %v4120
        %v4251 = vpack.c.b16 %v4123, %v4122
        %4380 = vmatprep.subr.bf16.mxu0 0
        %4381 = vmatpush1.bf16.msra.mxu0 %v4124
        %4382 = vmatprep.subr.bf16.mxu0 0
        %4383 = vmatpush1.bf16.msra.mxu0 %v4125
        %4384 = vmatprep.subr.bf16.mxu0 0
        %4385 = vmatpush1.bf16.msra.mxu0 %v4126
        %4386 = vmatprep.subr.bf16.mxu0 0
        %4387 = vmatpush1.bf16.msra.mxu0 %v4127
        %4388 = vmatprep.subr.bf16.mxu0 0
        %4389 = vmatpush1.bf16.msra.mxu0 %v4128
        %4390 = vmatprep.subr.bf16.mxu0 0
        %4391 = vmatpush1.bf16.msra.mxu0 %v4129
        %4392 = vmatprep.subr.bf16.mxu0 0
        %4393 = vmatpush1.bf16.msra.mxu0 %v4130
        %4394 = vmatprep.subr.bf16.mxu0 0
        %4395 = vmatpush1.bf16.msra.mxu0 %v4131
        %4396 = vmatprep.subr.bf16.mxu0 0
        %4397 = vmatpush1.bf16.msra.mxu0 %v4132
        %4398 = vmatprep.subr.bf16.mxu0 0
        %4399 = vmatpush1.bf16.msra.mxu0 %v4133
        %4400 = vmatprep.subr.bf16.mxu0 0
        %4401 = vmatpush1.bf16.msra.mxu0 %v4134
        %4402 = vmatprep.subr.bf16.mxu0 0
        %4403 = vmatpush1.bf16.msra.mxu0 %v4135
        %4404 = vmatprep.subr.bf16.mxu0 0
        %4405 = vmatpush1.bf16.msra.mxu0 %v4136
        %4406 = vmatprep.subr.bf16.mxu0 0
        %4407 = vmatpush1.bf16.msra.mxu0 %v4137
        %4408 = vmatprep.subr.bf16.mxu0 0
        %4409 = vmatpush1.bf16.msra.mxu0 %v4138
        %4410 = vmatprep.subr.bf16.mxu0 0
        %4411 = vmatpush1.bf16.msra.mxu0 %v4139
        %4412 = vmatprep.mubr.bf16.mxu0 %v3222
        %4413 = vmatmul.mubr.bf16.gmra.mrb[0].mxu0 %v3221
        %v4414 = vpop.f32.mrb[0].mxu0
        %v4415 = vadd.f32 %v3610, %v4414
        %v4416 = vpop.f32.mrb[0].mxu0
        %v4417 = vpop.f32.mrb[0].mxu0
        %v4418 = vadd.f32 %v3610, %v4417
        %v4419 = vpop.f32.mrb[0].mxu0
        %4420 = vmatprep.mubr.bf16.mxu0 %v3238
        %4421 = vmatmul.mubr.bf16.gmra.mrb[0].mxu0 %v3237
        %v4422 = vpop.f32.mrb[0].mxu0
        %v4423 = vadd.f32 %v3610, %v4422
        %v4424 = vpop.f32.mrb[0].mxu0
        %v4425 = vpop.f32.mrb[0].mxu0
        %v4426 = vadd.f32 %v3610, %v4425
        %v4427 = vpop.f32.mrb[0].mxu0
        %4428 = vmatprep.mubr.bf16.mxu0 %v3254
        %4429 = vmatmul.mubr.bf16.gmra.mrb[0].mxu0 %v3253
        %v4430 = vpop.f32.mrb[0].mxu0
        %v4431 = vadd.f32 %v3610, %v4430
        %v4432 = vpop.f32.mrb[0].mxu0
        %v4433 = vpop.f32.mrb[0].mxu0
        %v4434 = vadd.f32 %v3610, %v4433
        %v4435 = vpop.f32.mrb[0].mxu0
        %4436 = vmatprep.mubr.bf16.mxu0 %v3270
        %4437 = vmatmul.mubr.bf16.gmra.mrb[0].mxu0 %v3269
        %v4438 = vpop.f32.mrb[0].mxu0
        %v4439 = vadd.f32 %v3610, %v4438
        %v4440 = vpop.f32.mrb[0].mxu0
        %v4441 = vpop.f32.mrb[0].mxu0
        %v4442 = vadd.f32 %v3610, %v4441
        %v4443 = vpop.f32.mrb[0].mxu0
        %4444 = vmatprep.mubr.bf16.mxu0 %v3286
        %4445 = vmatmul.mubr.bf16.gmra.mrb[0].mxu0 %v3285
        %v4446 = vpop.f32.mrb[0].mxu0
        %v4447 = vadd.f32 %v3610, %v4446
        %v4448 = vpop.f32.mrb[0].mxu0
        %v4449 = vpop.f32.mrb[0].mxu0
        %v4450 = vadd.f32 %v3610, %v4449
        %v4451 = vpop.f32.mrb[0].mxu0
        %4452 = vmatprep.mubr.bf16.mxu0 %v3302
        %4453 = vmatmul.mubr.bf16.gmra.mrb[0].mxu0 %v3301
        %v4454 = vpop.f32.mrb[0].mxu0
        %v4455 = vadd.f32 %v3610, %v4454
        %v4456 = vpop.f32.mrb[0].mxu0
        %v4457 = vpop.f32.mrb[0].mxu0
        %v4458 = vadd.f32 %v3610, %v4457
        %v4459 = vpop.f32.mrb[0].mxu0
        %4460 = vmatprep.mubr.bf16.mxu0 %v3318
        %4461 = vmatmul.mubr.bf16.gmra.mrb[0].mxu0 %v3317
        %v4462 = vpop.f32.mrb[0].mxu0
        %v4463 = vadd.f32 %v3610, %v4462
        %v4464 = vpop.f32.mrb[0].mxu0
        %v4465 = vpop.f32.mrb[0].mxu0
        %v4466 = vadd.f32 %v3610, %v4465
        %v4467 = vpop.f32.mrb[0].mxu0
        %4468 = vmatprep.mubr.bf16.mxu0 %v3334
        %4469 = vmatmul.mubr.bf16.gmra.mrb[0].mxu0 %v3333
        %v4470 = vpop.f32.mrb[0].mxu0
        %v4471 = vadd.f32 %v3610, %v4470
        %v4472 = vpop.f32.mrb[0].mxu0
        %v4473 = vpop.f32.mrb[0].mxu0
        %v4474 = vadd.f32 %v3610, %v4473
        %v4475 = vpop.f32.mrb[0].mxu0
        %4476 = vdwg.mxu0
        %4477 = vmatprep.subr.bf16.mxu0 0
        %4478 = vmatpush1.bf16.msra.mxu0 %v4140
        %4479 = vmatprep.subr.bf16.mxu0 0
        %4480 = vmatpush1.bf16.msra.mxu0 %v4141
        %4481 = vmatprep.subr.bf16.mxu0 0
        %4482 = vmatpush1.bf16.msra.mxu0 %v4142
        %4483 = vmatprep.subr.bf16.mxu0 0
        %4484 = vmatpush1.bf16.msra.mxu0 %v4143
        %4485 = vmatprep.subr.bf16.mxu0 0
        %4486 = vmatpush1.bf16.msra.mxu0 %v4144
        %4487 = vmatprep.subr.bf16.mxu0 0
        %4488 = vmatpush1.bf16.msra.mxu0 %v4145
        %4489 = vmatprep.subr.bf16.mxu0 0
        %4490 = vmatpush1.bf16.msra.mxu0 %v4146
        %4491 = vmatprep.subr.bf16.mxu0 0
        %4492 = vmatpush1.bf16.msra.mxu0 %v4147
        %4493 = vmatprep.subr.bf16.mxu0 0
        %4494 = vmatpush1.bf16.msra.mxu0 %v4148
        %4495 = vmatprep.subr.bf16.mxu0 0
        %4496 = vmatpush1.bf16.msra.mxu0 %v4149
        %4497 = vmatprep.subr.bf16.mxu0 0
        %4498 = vmatpush1.bf16.msra.mxu0 %v4150
        %4499 = vmatprep.subr.bf16.mxu0 0
        %4500 = vmatpush1.bf16.msra.mxu0 %v4151
        %4501 = vmatprep.subr.bf16.mxu0 0
        %4502 = vmatpush1.bf16.msra.mxu0 %v4152
        %4503 = vmatprep.subr.bf16.mxu0 0
        %4504 = vmatpush1.bf16.msra.mxu0 %v4153
        %4505 = vmatprep.subr.bf16.mxu0 0
        %4506 = vmatpush1.bf16.msra.mxu0 %v4154
        %4507 = vmatprep.subr.bf16.mxu0 0
        %4508 = vmatpush1.bf16.msra.mxu0 %v4155
        %4509 = vmatprep.mubr.bf16.mxu0 %v3224
        %4510 = vmatmul.mubr.bf16.gmra.mrb[0].mxu0 %v3223
        %v4511 = vpop.f32.mrb[0].mxu0
        %v4512 = vadd.f32 %v4415, %v4511
        %v4513 = vpop.f32.mrb[0].mxu0
        %v4514 = vpop.f32.mrb[0].mxu0
        %v4515 = vadd.f32 %v4418, %v4514
        %v4516 = vpop.f32.mrb[0].mxu0
        %4517 = vmatprep.mubr.bf16.mxu0 %v3240
        %4518 = vmatmul.mubr.bf16.gmra.mrb[0].mxu0 %v3239
        %v4519 = vpop.f32.mrb[0].mxu0
        %v4520 = vadd.f32 %v4423, %v4519
        %v4521 = vpop.f32.mrb[0].mxu0
        %v4522 = vpop.f32.mrb[0].mxu0
        %v4523 = vadd.f32 %v4426, %v4522
        %v4524 = vpop.f32.mrb[0].mxu0
        %4525 = vmatprep.mubr.bf16.mxu0 %v3256
        %4526 = vmatmul.mubr.bf16.gmra.mrb[0].mxu0 %v3255
        %v4527 = vpop.f32.mrb[0].mxu0
        %v4528 = vadd.f32 %v4431, %v4527
        %v4529 = vpop.f32.mrb[0].mxu0
        %v4530 = vpop.f32.mrb[0].mxu0
        %v4531 = vadd.f32 %v4434, %v4530
        %v4532 = vpop.f32.mrb[0].mxu0
        %4533 = vmatprep.mubr.bf16.mxu0 %v3272
        %4534 = vmatmul.mubr.bf16.gmra.mrb[0].mxu0 %v3271
        %v4535 = vpop.f32.mrb[0].mxu0
        %v4536 = vadd.f32 %v4439, %v4535
        %v4537 = vpop.f32.mrb[0].mxu0
        %v4538 = vpop.f32.mrb[0].mxu0
        %v4539 = vadd.f32 %v4442, %v4538
        %v4540 = vpop.f32.mrb[0].mxu0
        %4541 = vmatprep.mubr.bf16.mxu0 %v3288
        %4542 = vmatmul.mubr.bf16.gmra.mrb[0].mxu0 %v3287
        %v4543 = vpop.f32.mrb[0].mxu0
        %v4544 = vadd.f32 %v4447, %v4543
        %v4545 = vpop.f32.mrb[0].mxu0
        %v4546 = vpop.f32.mrb[0].mxu0
        %v4547 = vadd.f32 %v4450, %v4546
        %v4548 = vpop.f32.mrb[0].mxu0
        %4549 = vmatprep.mubr.bf16.mxu0 %v3304
        %4550 = vmatmul.mubr.bf16.gmra.mrb[0].mxu0 %v3303
        %v4551 = vpop.f32.mrb[0].mxu0
        %v4552 = vadd.f32 %v4455, %v4551
        %v4553 = vpop.f32.mrb[0].mxu0
        %v4554 = vpop.f32.mrb[0].mxu0
        %v4555 = vadd.f32 %v4458, %v4554
        %v4556 = vpop.f32.mrb[0].mxu0
        %4557 = vmatprep.mubr.bf16.mxu0 %v3320
        %4558 = vmatmul.mubr.bf16.gmra.mrb[0].mxu0 %v3319
        %v4559 = vpop.f32.mrb[0].mxu0
        %v4560 = vadd.f32 %v4463, %v4559
        %v4561 = vpop.f32.mrb[0].mxu0
        %v4562 = vpop.f32.mrb[0].mxu0
        %v4563 = vadd.f32 %v4466, %v4562
        %v4564 = vpop.f32.mrb[0].mxu0
        %4565 = vmatprep.mubr.bf16.mxu0 %v3336
        %4566 = vmatmul.mubr.bf16.gmra.mrb[0].mxu0 %v3335
        %v4567 = vpop.f32.mrb[0].mxu0
        %v4568 = vadd.f32 %v4471, %v4567
        %v4569 = vpop.f32.mrb[0].mxu0
        %v4570 = vpop.f32.mrb[0].mxu0
        %v4571 = vadd.f32 %v4474, %v4570
        %v4572 = vpop.f32.mrb[0].mxu0
        %4573 = vdwg.mxu0
        %4574 = vmatprep.subr.bf16.mxu0 0
        %4575 = vmatpush1.bf16.msra.mxu0 %v4156
        %4576 = vmatprep.subr.bf16.mxu0 0
        %4577 = vmatpush1.bf16.msra.mxu0 %v4157
        %4578 = vmatprep.subr.bf16.mxu0 0
        %4579 = vmatpush1.bf16.msra.mxu0 %v4158
        %4580 = vmatprep.subr.bf16.mxu0 0
        %4581 = vmatpush1.bf16.msra.mxu0 %v4159
        %4582 = vmatprep.subr.bf16.mxu0 0
        %4583 = vmatpush1.bf16.msra.mxu0 %v4160
        %4584 = vmatprep.subr.bf16.mxu0 0
        %4585 = vmatpush1.bf16.msra.mxu0 %v4161
        %4586 = vmatprep.subr.bf16.mxu0 0
        %4587 = vmatpush1.bf16.msra.mxu0 %v4162
        %4588 = vmatprep.subr.bf16.mxu0 0
        %4589 = vmatpush1.bf16.msra.mxu0 %v4163
        %4590 = vmatprep.subr.bf16.mxu0 0
        %4591 = vmatpush1.bf16.msra.mxu0 %v4164
        %4592 = vmatprep.subr.bf16.mxu0 0
        %4593 = vmatpush1.bf16.msra.mxu0 %v4165
        %4594 = vmatprep.subr.bf16.mxu0 0
        %4595 = vmatpush1.bf16.msra.mxu0 %v4166
        %4596 = vmatprep.subr.bf16.mxu0 0
        %4597 = vmatpush1.bf16.msra.mxu0 %v4167
        %4598 = vmatprep.subr.bf16.mxu0 0
        %4599 = vmatpush1.bf16.msra.mxu0 %v4168
        %4600 = vmatprep.subr.bf16.mxu0 0
        %4601 = vmatpush1.bf16.msra.mxu0 %v4169
        %4602 = vmatprep.subr.bf16.mxu0 0
        %4603 = vmatpush1.bf16.msra.mxu0 %v4170
        %4604 = vmatprep.subr.bf16.mxu0 0
        %4605 = vmatpush1.bf16.msra.mxu0 %v4171
        %4606 = vmatprep.mubr.bf16.mxu0 %v3226
        %4607 = vmatmul.mubr.bf16.gmra.mrb[0].mxu0 %v3225
        %v4608 = vpop.f32.mrb[0].mxu0
        %v4609 = vadd.f32 %v4512, %v4608
        %v4610 = vpop.f32.mrb[0].mxu0
        %v4611 = vpop.f32.mrb[0].mxu0
        %v4612 = vadd.f32 %v4515, %v4611
        %v4613 = vpop.f32.mrb[0].mxu0
        %4614 = vmatprep.mubr.bf16.mxu0 %v3242
        %4615 = vmatmul.mubr.bf16.gmra.mrb[0].mxu0 %v3241
        %v4616 = vpop.f32.mrb[0].mxu0
        %v4617 = vadd.f32 %v4520, %v4616
        %v4618 = vpop.f32.mrb[0].mxu0
        %v4619 = vpop.f32.mrb[0].mxu0
        %v4620 = vadd.f32 %v4523, %v4619
        %v4621 = vpop.f32.mrb[0].mxu0
        %4622 = vmatprep.mubr.bf16.mxu0 %v3258
        %4623 = vmatmul.mubr.bf16.gmra.mrb[0].mxu0 %v3257
        %v4624 = vpop.f32.mrb[0].mxu0
        %v4625 = vadd.f32 %v4528, %v4624
        %v4626 = vpop.f32.mrb[0].mxu0
        %v4627 = vpop.f32.mrb[0].mxu0
        %v4628 = vadd.f32 %v4531, %v4627
        %v4629 = vpop.f32.mrb[0].mxu0
        %4630 = vmatprep.mubr.bf16.mxu0 %v3274
        %4631 = vmatmul.mubr.bf16.gmra.mrb[0].mxu0 %v3273
        %v4632 = vpop.f32.mrb[0].mxu0
        %v4633 = vadd.f32 %v4536, %v4632
        %v4634 = vpop.f32.mrb[0].mxu0
        %v4635 = vpop.f32.mrb[0].mxu0
        %v4636 = vadd.f32 %v4539, %v4635
        %v4637 = vpop.f32.mrb[0].mxu0
        %4638 = vmatprep.mubr.bf16.mxu0 %v3290
        %4639 = vmatmul.mubr.bf16.gmra.mrb[0].mxu0 %v3289
        %v4640 = vpop.f32.mrb[0].mxu0
        %v4641 = vadd.f32 %v4544, %v4640
        %v4642 = vpop.f32.mrb[0].mxu0
        %v4643 = vpop.f32.mrb[0].mxu0
        %v4644 = vadd.f32 %v4547, %v4643
        %v4645 = vpop.f32.mrb[0].mxu0
        %4646 = vmatprep.mubr.bf16.mxu0 %v3306
        %4647 = vmatmul.mubr.bf16.gmra.mrb[0].mxu0 %v3305
        %v4648 = vpop.f32.mrb[0].mxu0
        %v4649 = vadd.f32 %v4552, %v4648
        %v4650 = vpop.f32.mrb[0].mxu0
        %v4651 = vpop.f32.mrb[0].mxu0
        %v4652 = vadd.f32 %v4555, %v4651
        %v4653 = vpop.f32.mrb[0].mxu0
        %4654 = vmatprep.mubr.bf16.mxu0 %v3322
        %4655 = vmatmul.mubr.bf16.gmra.mrb[0].mxu0 %v3321
        %v4656 = vpop.f32.mrb[0].mxu0
        %v4657 = vadd.f32 %v4560, %v4656
        %v4658 = vpop.f32.mrb[0].mxu0
        %v4659 = vpop.f32.mrb[0].mxu0
        %v4660 = vadd.f32 %v4563, %v4659
        %v4661 = vpop.f32.mrb[0].mxu0
        %4662 = vmatprep.mubr.bf16.mxu0 %v3338
        %4663 = vmatmul.mubr.bf16.gmra.mrb[0].mxu0 %v3337
        %v4664 = vpop.f32.mrb[0].mxu0
        %v4665 = vadd.f32 %v4568, %v4664
        %v4666 = vpop.f32.mrb[0].mxu0
        %v4667 = vpop.f32.mrb[0].mxu0
        %v4668 = vadd.f32 %v4571, %v4667
        %v4669 = vpop.f32.mrb[0].mxu0
        %4670 = vdwg.mxu0
        %4671 = vmatprep.subr.bf16.mxu0 0
        %4672 = vmatpush1.bf16.msra.mxu0 %v4172
        %4673 = vmatprep.subr.bf16.mxu0 0
        %4674 = vmatpush1.bf16.msra.mxu0 %v4173
        %4675 = vmatprep.subr.bf16.mxu0 0
        %4676 = vmatpush1.bf16.msra.mxu0 %v4174
        %4677 = vmatprep.subr.bf16.mxu0 0
        %4678 = vmatpush1.bf16.msra.mxu0 %v4175
        %4679 = vmatprep.subr.bf16.mxu0 0
        %4680 = vmatpush1.bf16.msra.mxu0 %v4176
        %4681 = vmatprep.subr.bf16.mxu0 0
        %4682 = vmatpush1.bf16.msra.mxu0 %v4177
        %4683 = vmatprep.subr.bf16.mxu0 0
        %4684 = vmatpush1.bf16.msra.mxu0 %v4178
        %4685 = vmatprep.subr.bf16.mxu0 0
        %4686 = vmatpush1.bf16.msra.mxu0 %v4179
        %4687 = vmatprep.subr.bf16.mxu0 0
        %4688 = vmatpush1.bf16.msra.mxu0 %v4180
        %4689 = vmatprep.subr.bf16.mxu0 0
        %4690 = vmatpush1.bf16.msra.mxu0 %v4181
        %4691 = vmatprep.subr.bf16.mxu0 0
        %4692 = vmatpush1.bf16.msra.mxu0 %v4182
        %4693 = vmatprep.subr.bf16.mxu0 0
        %4694 = vmatpush1.bf16.msra.mxu0 %v4183
        %4695 = vmatprep.subr.bf16.mxu0 0
        %4696 = vmatpush1.bf16.msra.mxu0 %v4184
        %4697 = vmatprep.subr.bf16.mxu0 0
        %4698 = vmatpush1.bf16.msra.mxu0 %v4185
        %4699 = vmatprep.subr.bf16.mxu0 0
        %4700 = vmatpush1.bf16.msra.mxu0 %v4186
        %4701 = vmatprep.subr.bf16.mxu0 0
        %4702 = vmatpush1.bf16.msra.mxu0 %v4187
        %4703 = vmatprep.mubr.bf16.mxu0 %v3228
        %4704 = vmatmul.mubr.bf16.gmra.mrb[0].mxu0 %v3227
        %v4705 = vpop.f32.mrb[0].mxu0
        %v4706 = vadd.f32 %v4609, %v4705
        %v4707 = vpop.f32.mrb[0].mxu0
        %v4708 = vpop.f32.mrb[0].mxu0
        %v4709 = vadd.f32 %v4612, %v4708
        %v4710 = vpop.f32.mrb[0].mxu0
        %4711 = vmatprep.mubr.bf16.mxu0 %v3244
        %4712 = vmatmul.mubr.bf16.gmra.mrb[0].mxu0 %v3243
        %v4713 = vpop.f32.mrb[0].mxu0
        %v4714 = vadd.f32 %v4617, %v4713
        %v4715 = vpop.f32.mrb[0].mxu0
        %v4716 = vpop.f32.mrb[0].mxu0
        %v4717 = vadd.f32 %v4620, %v4716
        %v4718 = vpop.f32.mrb[0].mxu0
        %4719 = vmatprep.mubr.bf16.mxu0 %v3260
        %4720 = vmatmul.mubr.bf16.gmra.mrb[0].mxu0 %v3259
        %v4721 = vpop.f32.mrb[0].mxu0
        %v4722 = vadd.f32 %v4625, %v4721
        %v4723 = vpop.f32.mrb[0].mxu0
        %v4724 = vpop.f32.mrb[0].mxu0
        %v4725 = vadd.f32 %v4628, %v4724
        %v4726 = vpop.f32.mrb[0].mxu0
        %4727 = vmatprep.mubr.bf16.mxu0 %v3276
        %4728 = vmatmul.mubr.bf16.gmra.mrb[0].mxu0 %v3275
        %v4729 = vpop.f32.mrb[0].mxu0
        %v4730 = vadd.f32 %v4633, %v4729
        %v4731 = vpop.f32.mrb[0].mxu0
        %v4732 = vpop.f32.mrb[0].mxu0
        %v4733 = vadd.f32 %v4636, %v4732
        %v4734 = vpop.f32.mrb[0].mxu0
        %4735 = vmatprep.mubr.bf16.mxu0 %v3292
        %4736 = vmatmul.mubr.bf16.gmra.mrb[0].mxu0 %v3291
        %v4737 = vpop.f32.mrb[0].mxu0
        %v4738 = vadd.f32 %v4641, %v4737
        %v4739 = vpop.f32.mrb[0].mxu0
        %v4740 = vpop.f32.mrb[0].mxu0
        %v4741 = vadd.f32 %v4644, %v4740
        %v4742 = vpop.f32.mrb[0].mxu0
        %4743 = vmatprep.mubr.bf16.mxu0 %v3308
        %4744 = vmatmul.mubr.bf16.gmra.mrb[0].mxu0 %v3307
        %v4745 = vpop.f32.mrb[0].mxu0
        %v4746 = vadd.f32 %v4649, %v4745
        %v4747 = vpop.f32.mrb[0].mxu0
        %v4748 = vpop.f32.mrb[0].mxu0
        %v4749 = vadd.f32 %v4652, %v4748
        %v4750 = vpop.f32.mrb[0].mxu0
        %4751 = vmatprep.mubr.bf16.mxu0 %v3324
        %4752 = vmatmul.mubr.bf16.gmra.mrb[0].mxu0 %v3323
        %v4753 = vpop.f32.mrb[0].mxu0
        %v4754 = vadd.f32 %v4657, %v4753
        %v4755 = vpop.f32.mrb[0].mxu0
        %v4756 = vpop.f32.mrb[0].mxu0
        %v4757 = vadd.f32 %v4660, %v4756
        %v4758 = vpop.f32.mrb[0].mxu0
        %4759 = vmatprep.mubr.bf16.mxu0 %v3340
        %4760 = vmatmul.mubr.bf16.gmra.mrb[0].mxu0 %v3339
        %v4761 = vpop.f32.mrb[0].mxu0
        %v4762 = vadd.f32 %v4665, %v4761
        %v4763 = vpop.f32.mrb[0].mxu0
        %v4764 = vpop.f32.mrb[0].mxu0
        %v4765 = vadd.f32 %v4668, %v4764
        %v4766 = vpop.f32.mrb[0].mxu0
        %4767 = vdwg.mxu0
        %4768 = vmatprep.subr.bf16.mxu0 0
        %4769 = vmatpush1.bf16.msra.mxu0 %v4188
        %4770 = vmatprep.subr.bf16.mxu0 0
        %4771 = vmatpush1.bf16.msra.mxu0 %v4189
        %4772 = vmatprep.subr.bf16.mxu0 0
        %4773 = vmatpush1.bf16.msra.mxu0 %v4190
        %4774 = vmatprep.subr.bf16.mxu0 0
        %4775 = vmatpush1.bf16.msra.mxu0 %v4191
        %4776 = vmatprep.subr.bf16.mxu0 0
        %4777 = vmatpush1.bf16.msra.mxu0 %v4192
        %4778 = vmatprep.subr.bf16.mxu0 0
        %4779 = vmatpush1.bf16.msra.mxu0 %v4193
        %4780 = vmatprep.subr.bf16.mxu0 0
        %4781 = vmatpush1.bf16.msra.mxu0 %v4194
        %4782 = vmatprep.subr.bf16.mxu0 0
        %4783 = vmatpush1.bf16.msra.mxu0 %v4195
        %4784 = vmatprep.subr.bf16.mxu0 0
        %4785 = vmatpush1.bf16.msra.mxu0 %v4196
        %4786 = vmatprep.subr.bf16.mxu0 0
        %4787 = vmatpush1.bf16.msra.mxu0 %v4197
        %4788 = vmatprep.subr.bf16.mxu0 0
        %4789 = vmatpush1.bf16.msra.mxu0 %v4198
        %4790 = vmatprep.subr.bf16.mxu0 0
        %4791 = vmatpush1.bf16.msra.mxu0 %v4199
        %4792 = vmatprep.subr.bf16.mxu0 0
        %4793 = vmatpush1.bf16.msra.mxu0 %v4200
        %4794 = vmatprep.subr.bf16.mxu0 0
        %4795 = vmatpush1.bf16.msra.mxu0 %v4201
        %4796 = vmatprep.subr.bf16.mxu0 0
        %4797 = vmatpush1.bf16.msra.mxu0 %v4202
        %4798 = vmatprep.subr.bf16.mxu0 0
        %4799 = vmatpush1.bf16.msra.mxu0 %v4203
        %4800 = vmatprep.mubr.bf16.mxu0 %v3230
        %4801 = vmatmul.mubr.bf16.gmra.mrb[0].mxu0 %v3229
        %v4802 = vpop.f32.mrb[0].mxu0
        %v4803 = vadd.f32 %v4706, %v4802
        %v4804 = vpop.f32.mrb[0].mxu0
        %v4805 = vpop.f32.mrb[0].mxu0
        %v4806 = vadd.f32 %v4709, %v4805
        %v4807 = vpop.f32.mrb[0].mxu0
        %4808 = vmatprep.mubr.bf16.mxu0 %v3246
        %4809 = vmatmul.mubr.bf16.gmra.mrb[0].mxu0 %v3245
        %v4810 = vpop.f32.mrb[0].mxu0
        %v4811 = vadd.f32 %v4714, %v4810
        %v4812 = vpop.f32.mrb[0].mxu0
        %v4813 = vpop.f32.mrb[0].mxu0
        %v4814 = vadd.f32 %v4717, %v4813
        %v4815 = vpop.f32.mrb[0].mxu0
        %4816 = vmatprep.mubr.bf16.mxu0 %v3262
        %4817 = vmatmul.mubr.bf16.gmra.mrb[0].mxu0 %v3261
        %v4818 = vpop.f32.mrb[0].mxu0
        %v4819 = vadd.f32 %v4722, %v4818
        %v4820 = vpop.f32.mrb[0].mxu0
        %v4821 = vpop.f32.mrb[0].mxu0
        %v4822 = vadd.f32 %v4725, %v4821
        %v4823 = vpop.f32.mrb[0].mxu0
        %4824 = vmatprep.mubr.bf16.mxu0 %v3278
        %4825 = vmatmul.mubr.bf16.gmra.mrb[0].mxu0 %v3277
        %v4826 = vpop.f32.mrb[0].mxu0
        %v4827 = vadd.f32 %v4730, %v4826
        %v4828 = vpop.f32.mrb[0].mxu0
        %v4829 = vpop.f32.mrb[0].mxu0
        %v4830 = vadd.f32 %v4733, %v4829
        %v4831 = vpop.f32.mrb[0].mxu0
        %4832 = vmatprep.mubr.bf16.mxu0 %v3294
        %4833 = vmatmul.mubr.bf16.gmra.mrb[0].mxu0 %v3293
        %v4834 = vpop.f32.mrb[0].mxu0
        %v4835 = vadd.f32 %v4738, %v4834
        %v4836 = vpop.f32.mrb[0].mxu0
        %v4837 = vpop.f32.mrb[0].mxu0
        %v4838 = vadd.f32 %v4741, %v4837
        %v4839 = vpop.f32.mrb[0].mxu0
        %4840 = vmatprep.mubr.bf16.mxu0 %v3310
        %4841 = vmatmul.mubr.bf16.gmra.mrb[0].mxu0 %v3309
        %v4842 = vpop.f32.mrb[0].mxu0
        %v4843 = vadd.f32 %v4746, %v4842
        %v4844 = vpop.f32.mrb[0].mxu0
        %v4845 = vpop.f32.mrb[0].mxu0
        %v4846 = vadd.f32 %v4749, %v4845
        %v4847 = vpop.f32.mrb[0].mxu0
        %4848 = vmatprep.mubr.bf16.mxu0 %v3326
        %4849 = vmatmul.mubr.bf16.gmra.mrb[0].mxu0 %v3325
        %v4850 = vpop.f32.mrb[0].mxu0
        %v4851 = vadd.f32 %v4754, %v4850
        %v4852 = vpop.f32.mrb[0].mxu0
        %v4853 = vpop.f32.mrb[0].mxu0
        %v4854 = vadd.f32 %v4757, %v4853
        %v4855 = vpop.f32.mrb[0].mxu0
        %4856 = vmatprep.mubr.bf16.mxu0 %v3342
        %4857 = vmatmul.mubr.bf16.gmra.mrb[0].mxu0 %v3341
        %v4858 = vpop.f32.mrb[0].mxu0
        %v4859 = vadd.f32 %v4762, %v4858
        %v4860 = vpop.f32.mrb[0].mxu0
        %v4861 = vpop.f32.mrb[0].mxu0
        %v4862 = vadd.f32 %v4765, %v4861
        %v4863 = vpop.f32.mrb[0].mxu0
        %4864 = vdwg.mxu0
        %4865 = vmatprep.subr.bf16.mxu0 0
        %4866 = vmatpush1.bf16.msra.mxu0 %v4204
        %4867 = vmatprep.subr.bf16.mxu0 0
        %4868 = vmatpush1.bf16.msra.mxu0 %v4205
        %4869 = vmatprep.subr.bf16.mxu0 0
        %4870 = vmatpush1.bf16.msra.mxu0 %v4206
        %4871 = vmatprep.subr.bf16.mxu0 0
        %4872 = vmatpush1.bf16.msra.mxu0 %v4207
        %4873 = vmatprep.subr.bf16.mxu0 0
        %4874 = vmatpush1.bf16.msra.mxu0 %v4208
        %4875 = vmatprep.subr.bf16.mxu0 0
        %4876 = vmatpush1.bf16.msra.mxu0 %v4209
        %4877 = vmatprep.subr.bf16.mxu0 0
        %4878 = vmatpush1.bf16.msra.mxu0 %v4210
        %4879 = vmatprep.subr.bf16.mxu0 0
        %4880 = vmatpush1.bf16.msra.mxu0 %v4211
        %4881 = vmatprep.subr.bf16.mxu0 0
        %4882 = vmatpush1.bf16.msra.mxu0 %v4212
        %4883 = vmatprep.subr.bf16.mxu0 0
        %4884 = vmatpush1.bf16.msra.mxu0 %v4213
        %4885 = vmatprep.subr.bf16.mxu0 0
        %4886 = vmatpush1.bf16.msra.mxu0 %v4214
        %4887 = vmatprep.subr.bf16.mxu0 0
        %4888 = vmatpush1.bf16.msra.mxu0 %v4215
        %4889 = vmatprep.subr.bf16.mxu0 0
        %4890 = vmatpush1.bf16.msra.mxu0 %v4216
        %4891 = vmatprep.subr.bf16.mxu0 0
        %4892 = vmatpush1.bf16.msra.mxu0 %v4217
        %4893 = vmatprep.subr.bf16.mxu0 0
        %4894 = vmatpush1.bf16.msra.mxu0 %v4218
        %4895 = vmatprep.subr.bf16.mxu0 0
        %4896 = vmatpush1.bf16.msra.mxu0 %v4219
        %4897 = vmatprep.mubr.bf16.mxu0 %v3232
        %4898 = vmatmul.mubr.bf16.gmra.mrb[0].mxu0 %v3231
        %v4899 = vpop.f32.mrb[0].mxu0
        %v4900 = vadd.f32 %v4803, %v4899
        %v4901 = vpop.f32.mrb[0].mxu0
        %v4902 = vpop.f32.mrb[0].mxu0
        %v4903 = vadd.f32 %v4806, %v4902
        %v4904 = vpop.f32.mrb[0].mxu0
        %4905 = vmatprep.mubr.bf16.mxu0 %v3248
        %4906 = vmatmul.mubr.bf16.gmra.mrb[0].mxu0 %v3247
        %v4907 = vpop.f32.mrb[0].mxu0
        %v4908 = vadd.f32 %v4811, %v4907
        %v4909 = vpop.f32.mrb[0].mxu0
        %v4910 = vpop.f32.mrb[0].mxu0
        %v4911 = vadd.f32 %v4814, %v4910
        %v4912 = vpop.f32.mrb[0].mxu0
        %4913 = vmatprep.mubr.bf16.mxu0 %v3264
        %4914 = vmatmul.mubr.bf16.gmra.mrb[0].mxu0 %v3263
        %v4915 = vpop.f32.mrb[0].mxu0
        %v4916 = vadd.f32 %v4819, %v4915
        %v4917 = vpop.f32.mrb[0].mxu0
        %v4918 = vpop.f32.mrb[0].mxu0
        %v4919 = vadd.f32 %v4822, %v4918
        %v4920 = vpop.f32.mrb[0].mxu0
        %4921 = vmatprep.mubr.bf16.mxu0 %v3280
        %4922 = vmatmul.mubr.bf16.gmra.mrb[0].mxu0 %v3279
        %v4923 = vpop.f32.mrb[0].mxu0
        %v4924 = vadd.f32 %v4827, %v4923
        %v4925 = vpop.f32.mrb[0].mxu0
        %v4926 = vpop.f32.mrb[0].mxu0
        %v4927 = vadd.f32 %v4830, %v4926
        %v4928 = vpop.f32.mrb[0].mxu0
        %4929 = vmatprep.mubr.bf16.mxu0 %v3296
        %4930 = vmatmul.mubr.bf16.gmra.mrb[0].mxu0 %v3295
        %v4931 = vpop.f32.mrb[0].mxu0
        %v4932 = vadd.f32 %v4835, %v4931
        %v4933 = vpop.f32.mrb[0].mxu0
        %v4934 = vpop.f32.mrb[0].mxu0
        %v4935 = vadd.f32 %v4838, %v4934
        %v4936 = vpop.f32.mrb[0].mxu0
        %4937 = vmatprep.mubr.bf16.mxu0 %v3312
        %4938 = vmatmul.mubr.bf16.gmra.mrb[0].mxu0 %v3311
        %v4939 = vpop.f32.mrb[0].mxu0
        %v4940 = vadd.f32 %v4843, %v4939
        %v4941 = vpop.f32.mrb[0].mxu0
        %v4942 = vpop.f32.mrb[0].mxu0
        %v4943 = vadd.f32 %v4846, %v4942
        %v4944 = vpop.f32.mrb[0].mxu0
        %4945 = vmatprep.mubr.bf16.mxu0 %v3328
        %4946 = vmatmul.mubr.bf16.gmra.mrb[0].mxu0 %v3327
        %v4947 = vpop.f32.mrb[0].mxu0
        %v4948 = vadd.f32 %v4851, %v4947
        %v4949 = vpop.f32.mrb[0].mxu0
        %v4950 = vpop.f32.mrb[0].mxu0
        %v4951 = vadd.f32 %v4854, %v4950
        %v4952 = vpop.f32.mrb[0].mxu0
        %4953 = vmatprep.mubr.bf16.mxu0 %v3344
        %4954 = vmatmul.mubr.bf16.gmra.mrb[0].mxu0 %v3343
        %v4955 = vpop.f32.mrb[0].mxu0
        %v4956 = vadd.f32 %v4859, %v4955
        %v4957 = vpop.f32.mrb[0].mxu0
        %v4958 = vpop.f32.mrb[0].mxu0
        %v4959 = vadd.f32 %v4862, %v4958
        %v4960 = vpop.f32.mrb[0].mxu0
        %4961 = vdwg.mxu0
        %4962 = vmatprep.subr.bf16.mxu0 0
        %4963 = vmatpush1.bf16.msra.mxu0 %v4220
        %4964 = vmatprep.subr.bf16.mxu0 0
        %4965 = vmatpush1.bf16.msra.mxu0 %v4221
        %4966 = vmatprep.subr.bf16.mxu0 0
        %4967 = vmatpush1.bf16.msra.mxu0 %v4222
        %4968 = vmatprep.subr.bf16.mxu0 0
        %4969 = vmatpush1.bf16.msra.mxu0 %v4223
        %4970 = vmatprep.subr.bf16.mxu0 0
        %4971 = vmatpush1.bf16.msra.mxu0 %v4224
        %4972 = vmatprep.subr.bf16.mxu0 0
        %4973 = vmatpush1.bf16.msra.mxu0 %v4225
        %4974 = vmatprep.subr.bf16.mxu0 0
        %4975 = vmatpush1.bf16.msra.mxu0 %v4226
        %4976 = vmatprep.subr.bf16.mxu0 0
        %4977 = vmatpush1.bf16.msra.mxu0 %v4227
        %4978 = vmatprep.subr.bf16.mxu0 0
        %4979 = vmatpush1.bf16.msra.mxu0 %v4228
        %4980 = vmatprep.subr.bf16.mxu0 0
        %4981 = vmatpush1.bf16.msra.mxu0 %v4229
        %4982 = vmatprep.subr.bf16.mxu0 0
        %4983 = vmatpush1.bf16.msra.mxu0 %v4230
        %4984 = vmatprep.subr.bf16.mxu0 0
        %4985 = vmatpush1.bf16.msra.mxu0 %v4231
        %4986 = vmatprep.subr.bf16.mxu0 0
        %4987 = vmatpush1.bf16.msra.mxu0 %v4232
        %4988 = vmatprep.subr.bf16.mxu0 0
        %4989 = vmatpush1.bf16.msra.mxu0 %v4233
        %4990 = vmatprep.subr.bf16.mxu0 0
        %4991 = vmatpush1.bf16.msra.mxu0 %v4234
        %4992 = vmatprep.subr.bf16.mxu0 0
        %4993 = vmatpush1.bf16.msra.mxu0 %v4235
        %4994 = vmatprep.mubr.bf16.mxu0 %v3234
        %4995 = vmatmul.mubr.bf16.gmra.mrb[0].mxu0 %v3233
        %v4996 = vpop.f32.mrb[0].mxu0
        %v4997 = vadd.f32 %v4900, %v4996
        %v4998 = vpop.f32.mrb[0].mxu0
        %v4999 = vpop.f32.mrb[0].mxu0
        %v5000 = vadd.f32 %v4903, %v4999
        %v5001 = vpop.f32.mrb[0].mxu0
        %5002 = vmatprep.mubr.bf16.mxu0 %v3250
        %5003 = vmatmul.mubr.bf16.gmra.mrb[0].mxu0 %v3249
        %v5004 = vpop.f32.mrb[0].mxu0
        %v5005 = vadd.f32 %v4908, %v5004
        %v5006 = vpop.f32.mrb[0].mxu0
        %v5007 = vpop.f32.mrb[0].mxu0
        %v5008 = vadd.f32 %v4911, %v5007
        %v5009 = vpop.f32.mrb[0].mxu0
        %5010 = vmatprep.mubr.bf16.mxu0 %v3266
        %5011 = vmatmul.mubr.bf16.gmra.mrb[0].mxu0 %v3265
        %v5012 = vpop.f32.mrb[0].mxu0
        %v5013 = vadd.f32 %v4916, %v5012
        %v5014 = vpop.f32.mrb[0].mxu0
        %v5015 = vpop.f32.mrb[0].mxu0
        %v5016 = vadd.f32 %v4919, %v5015
        %v5017 = vpop.f32.mrb[0].mxu0
        %5018 = vmatprep.mubr.bf16.mxu0 %v3282
        %5019 = vmatmul.mubr.bf16.gmra.mrb[0].mxu0 %v3281
        %v5020 = vpop.f32.mrb[0].mxu0
        %v5021 = vadd.f32 %v4924, %v5020
        %v5022 = vpop.f32.mrb[0].mxu0
        %v5023 = vpop.f32.mrb[0].mxu0
        %v5024 = vadd.f32 %v4927, %v5023
        %v5025 = vpop.f32.mrb[0].mxu0
        %5026 = vmatprep.mubr.bf16.mxu0 %v3298
        %5027 = vmatmul.mubr.bf16.gmra.mrb[0].mxu0 %v3297
        %v5028 = vpop.f32.mrb[0].mxu0
        %v5029 = vadd.f32 %v4932, %v5028
        %v5030 = vpop.f32.mrb[0].mxu0
        %v5031 = vpop.f32.mrb[0].mxu0
        %v5032 = vadd.f32 %v4935, %v5031
        %v5033 = vpop.f32.mrb[0].mxu0
        %5034 = vmatprep.mubr.bf16.mxu0 %v3314
        %5035 = vmatmul.mubr.bf16.gmra.mrb[0].mxu0 %v3313
        %v5036 = vpop.f32.mrb[0].mxu0
        %v5037 = vadd.f32 %v4940, %v5036
        %v5038 = vpop.f32.mrb[0].mxu0
        %v5039 = vpop.f32.mrb[0].mxu0
        %v5040 = vadd.f32 %v4943, %v5039
        %v5041 = vpop.f32.mrb[0].mxu0
        %5042 = vmatprep.mubr.bf16.mxu0 %v3330
        %5043 = vmatmul.mubr.bf16.gmra.mrb[0].mxu0 %v3329
        %v5044 = vpop.f32.mrb[0].mxu0
        %v5045 = vadd.f32 %v4948, %v5044
        %v5046 = vpop.f32.mrb[0].mxu0
        %v5047 = vpop.f32.mrb[0].mxu0
        %v5048 = vadd.f32 %v4951, %v5047
        %v5049 = vpop.f32.mrb[0].mxu0
        %5050 = vmatprep.mubr.bf16.mxu0 %v3346
        %5051 = vmatmul.mubr.bf16.gmra.mrb[0].mxu0 %v3345
        %v5052 = vpop.f32.mrb[0].mxu0
        %v5053 = vadd.f32 %v4956, %v5052
        %v5054 = vpop.f32.mrb[0].mxu0
        %v5055 = vpop.f32.mrb[0].mxu0
        %v5056 = vadd.f32 %v4959, %v5055
        %v5057 = vpop.f32.mrb[0].mxu0
        %5058 = vdwg.mxu0
        %5059 = vmatprep.subr.bf16.mxu0 0
        %5060 = vmatpush1.bf16.msra.mxu0 %v4236
        %5061 = vmatprep.subr.bf16.mxu0 0
        %5062 = vmatpush1.bf16.msra.mxu0 %v4237
        %5063 = vmatprep.subr.bf16.mxu0 0
        %5064 = vmatpush1.bf16.msra.mxu0 %v4238
        %5065 = vmatprep.subr.bf16.mxu0 0
        %5066 = vmatpush1.bf16.msra.mxu0 %v4239
        %5067 = vmatprep.subr.bf16.mxu0 0
        %5068 = vmatpush1.bf16.msra.mxu0 %v4240
        %5069 = vmatprep.subr.bf16.mxu0 0
        %5070 = vmatpush1.bf16.msra.mxu0 %v4241
        %5071 = vmatprep.subr.bf16.mxu0 0
        %5072 = vmatpush1.bf16.msra.mxu0 %v4242
        %5073 = vmatprep.subr.bf16.mxu0 0
        %5074 = vmatpush1.bf16.msra.mxu0 %v4243
        %5075 = vmatprep.subr.bf16.mxu0 0
        %5076 = vmatpush1.bf16.msra.mxu0 %v4244
        %5077 = vmatprep.subr.bf16.mxu0 0
        %5078 = vmatpush1.bf16.msra.mxu0 %v4245
        %5079 = vmatprep.subr.bf16.mxu0 0
        %5080 = vmatpush1.bf16.msra.mxu0 %v4246
        %5081 = vmatprep.subr.bf16.mxu0 0
        %5082 = vmatpush1.bf16.msra.mxu0 %v4247
        %5083 = vmatprep.subr.bf16.mxu0 0
        %5084 = vmatpush1.bf16.msra.mxu0 %v4248
        %5085 = vmatprep.subr.bf16.mxu0 0
        %5086 = vmatpush1.bf16.msra.mxu0 %v4249
        %5087 = vmatprep.subr.bf16.mxu0 0
        %5088 = vmatpush1.bf16.msra.mxu0 %v4250
        %5089 = vmatprep.subr.bf16.mxu0 0
        %5090 = vmatpush1.bf16.msra.mxu0 %v4251
        %5091 = vmatprep.mubr.bf16.mxu0 %v3236
        %5092 = vmatmul.mubr.bf16.gmra.mrb[0].mxu0 %v3235
        %v5093 = vpop.f32.mrb[0].mxu0
        %v5094 = vadd.f32 %v4997, %v5093
        %v5095 = vpop.f32.mrb[0].mxu0
        %v5096 = vpop.f32.mrb[0].mxu0
        %v5097 = vadd.f32 %v5000, %v5096
        %v5098 = vpop.f32.mrb[0].mxu0
        %5099 = vmatprep.mubr.bf16.mxu0 %v3252
        %5100 = vmatmul.mubr.bf16.gmra.mrb[0].mxu0 %v3251
        %v5101 = vpop.f32.mrb[0].mxu0
        %v5102 = vadd.f32 %v5005, %v5101
        %v5103 = vpop.f32.mrb[0].mxu0
        %v5104 = vpop.f32.mrb[0].mxu0
        %v5105 = vadd.f32 %v5008, %v5104
        %v5106 = vpop.f32.mrb[0].mxu0
        %5107 = vmatprep.mubr.bf16.mxu0 %v3268
        %5108 = vmatmul.mubr.bf16.gmra.mrb[0].mxu0 %v3267
        %v5109 = vpop.f32.mrb[0].mxu0
        %v5110 = vadd.f32 %v5013, %v5109
        %v5111 = vpop.f32.mrb[0].mxu0
        %v5112 = vpop.f32.mrb[0].mxu0
        %v5113 = vadd.f32 %v5016, %v5112
        %v5114 = vpop.f32.mrb[0].mxu0
        %5115 = vmatprep.mubr.bf16.mxu0 %v3284
        %5116 = vmatmul.mubr.bf16.gmra.mrb[0].mxu0 %v3283
        %v5117 = vpop.f32.mrb[0].mxu0
        %v5118 = vadd.f32 %v5021, %v5117
        %v5119 = vpop.f32.mrb[0].mxu0
        %v5120 = vpop.f32.mrb[0].mxu0
        %v5121 = vadd.f32 %v5024, %v5120
        %v5122 = vpop.f32.mrb[0].mxu0
        %5123 = vmatprep.mubr.bf16.mxu0 %v3300
        %5124 = vmatmul.mubr.bf16.gmra.mrb[0].mxu0 %v3299
        %v5125 = vpop.f32.mrb[0].mxu0
        %v5126 = vadd.f32 %v5029, %v5125
        %v5127 = vpop.f32.mrb[0].mxu0
        %v5128 = vpop.f32.mrb[0].mxu0
        %v5129 = vadd.f32 %v5032, %v5128
        %v5130 = vpop.f32.mrb[0].mxu0
        %5131 = vmatprep.mubr.bf16.mxu0 %v3316
        %5132 = vmatmul.mubr.bf16.gmra.mrb[0].mxu0 %v3315
        %v5133 = vpop.f32.mrb[0].mxu0
        %v5134 = vadd.f32 %v5037, %v5133
        %v5135 = vpop.f32.mrb[0].mxu0
        %v5136 = vpop.f32.mrb[0].mxu0
        %v5137 = vadd.f32 %v5040, %v5136
        %v5138 = vpop.f32.mrb[0].mxu0
        %5139 = vmatprep.mubr.bf16.mxu0 %v3332
        %5140 = vmatmul.mubr.bf16.gmra.mrb[0].mxu0 %v3331
        %v5141 = vpop.f32.mrb[0].mxu0
        %v5142 = vadd.f32 %v5045, %v5141
        %v5143 = vpop.f32.mrb[0].mxu0
        %v5144 = vpop.f32.mrb[0].mxu0
        %v5145 = vadd.f32 %v5048, %v5144
        %v5146 = vpop.f32.mrb[0].mxu0
        %5147 = vmatprep.mubr.bf16.mxu0 %v3348
        %5148 = vmatmul.mubr.bf16.gmra.mrb[0].mxu0 %v3347
        %v5149 = vpop.f32.mrb[0].mxu0
        %v5150 = vadd.f32 %v5053, %v5149
        %v5151 = vpop.f32.mrb[0].mxu0
        %v5152 = vpop.f32.mrb[0].mxu0
        %v5153 = vadd.f32 %v5056, %v5152
        %v5154 = vpop.f32.mrb[0].mxu0
        %5155 = vdwg.mxu0
        %vm5156 = vcmp.gt.f32.partialorder %v5094, 20.0
        %vm5157 = vcmp.gt.f32.partialorder %v5097, 20.0
        %vm5158 = vcmp.gt.f32.partialorder %v5102, 20.0
        %vm5159 = vcmp.gt.f32.partialorder %v5105, 20.0
        %vm5160 = vcmp.gt.f32.partialorder %v5110, 20.0
        %vm5161 = vcmp.gt.f32.partialorder %v5113, 20.0
        %vm5162 = vcmp.gt.f32.partialorder %v5118, 20.0
        %vm5163 = vcmp.gt.f32.partialorder %v5121, 20.0
        %vm5164 = vcmp.gt.f32.partialorder %v5126, 20.0
        %vm5165 = vcmp.gt.f32.partialorder %v5129, 20.0
        %vm5166 = vcmp.gt.f32.partialorder %v5134, 20.0
        %vm5167 = vcmp.gt.f32.partialorder %v5137, 20.0
        %vm5168 = vcmp.gt.f32.partialorder %v5142, 20.0
        %vm5169 = vcmp.gt.f32.partialorder %v5145, 20.0
        %vm5170 = vcmp.gt.f32.partialorder %v5150, 20.0
        %vm5171 = vcmp.gt.f32.partialorder %v5153, 20.0
        %v5172 = vmin.f32 %v5094, 20.0
        %v5173 = vmin.f32 %v5097, 20.0
        %v5174 = vmin.f32 %v5102, 20.0
        %v5175 = vmin.f32 %v5105, 20.0
        %v5176 = vmin.f32 %v5110, 20.0
        %v5177 = vmin.f32 %v5113, 20.0
        %v5178 = vmin.f32 %v5118, 20.0
        %v5179 = vmin.f32 %v5121, 20.0
        %v5180 = vmin.f32 %v5126, 20.0
        %v5181 = vmin.f32 %v5129, 20.0
        %v5182 = vmin.f32 %v5134, 20.0
        %v5183 = vmin.f32 %v5137, 20.0
        %v5184 = vmin.f32 %v5142, 20.0
        %v5185 = vmin.f32 %v5145, 20.0
        %v5186 = vmin.f32 %v5150, 20.0
        %v5187 = vmin.f32 %v5153, 20.0
        %v5188 = vmul.f32 %v5172, 1.442695
        %v5189 = vpow.pop %v5188
        %v5190 = vmul.f32 %v5173, 1.442695
        %v5191 = vpow.pop %v5190
        %v5192 = vmul.f32 %v5174, 1.442695
        %v5193 = vpow.pop %v5192
        %v5194 = vmul.f32 %v5175, 1.442695
        %v5195 = vpow.pop %v5194
        %v5196 = vmul.f32 %v5176, 1.442695
        %v5197 = vpow.pop %v5196
        %v5198 = vmul.f32 %v5177, 1.442695
        %v5199 = vpow.pop %v5198
        %v5200 = vmul.f32 %v5178, 1.442695
        %v5201 = vpow.pop %v5200
        %v5202 = vmul.f32 %v5179, 1.442695
        %v5203 = vpow.pop %v5202
        %v5204 = vmul.f32 %v5180, 1.442695
        %v5205 = vpow.pop %v5204
        %v5206 = vmul.f32 %v5181, 1.442695
        %v5207 = vpow.pop %v5206
        %v5208 = vmul.f32 %v5182, 1.442695
        %v5209 = vpow.pop %v5208
        %v5210 = vmul.f32 %v5183, 1.442695
        %v5211 = vpow.pop %v5210
        %v5212 = vmul.f32 %v5184, 1.442695
        %v5213 = vpow.pop %v5212
        %v5214 = vmul.f32 %v5185, 1.442695
        %v5215 = vpow.pop %v5214
        %v5216 = vmul.f32 %v5186, 1.442695
        %v5217 = vpow.pop %v5216
        %v5218 = vmul.f32 %v5187, 1.442695
        %v5219 = vpow.pop %v5218
        %v5220 = vadd.f32 %v5189, 1.0
        %v5221 = vlog2.pop %v5220
        %v5222 = vmul.f32 %v5221, 0.6931472
        %v5223 = vmul.f32 -0.5, %v5189
        %v5224 = vadd.f32 %v5223, 1.0
        %v5225 = vmul.f32 %v5224, %v5189
        %v5226 = vand.u32 2147483647, %v5189
        %vm5227 = vcmp.lt.f32.partialorder %v5226, 0.0004427343
        %v5228 = vsel %vm5227, %v5225, %v5222
        %v5229 = vadd.f32 %v5191, 1.0
        %v5230 = vlog2.pop %v5229
        %v5231 = vmul.f32 %v5230, 0.6931472
        %v5232 = vmul.f32 -0.5, %v5191
        %v5233 = vadd.f32 %v5232, 1.0
        %v5234 = vmul.f32 %v5233, %v5191
        %v5235 = vand.u32 2147483647, %v5191
        %vm5236 = vcmp.lt.f32.partialorder %v5235, 0.0004427343
        %v5237 = vsel %vm5236, %v5234, %v5231
        %v5238 = vadd.f32 %v5193, 1.0
        %v5239 = vlog2.pop %v5238
        %v5240 = vmul.f32 %v5239, 0.6931472
        %v5241 = vmul.f32 -0.5, %v5193
        %v5242 = vadd.f32 %v5241, 1.0
        %v5243 = vmul.f32 %v5242, %v5193
        %v5244 = vand.u32 2147483647, %v5193
        %vm5245 = vcmp.lt.f32.partialorder %v5244, 0.0004427343
        %v5246 = vsel %vm5245, %v5243, %v5240
        %v5247 = vadd.f32 %v5195, 1.0
        %v5248 = vlog2.pop %v5247
        %v5249 = vmul.f32 %v5248, 0.6931472
        %v5250 = vmul.f32 -0.5, %v5195
        %v5251 = vadd.f32 %v5250, 1.0
        %v5252 = vmul.f32 %v5251, %v5195
        %v5253 = vand.u32 2147483647, %v5195
        %vm5254 = vcmp.lt.f32.partialorder %v5253, 0.0004427343
        %v5255 = vsel %vm5254, %v5252, %v5249
        %v5256 = vadd.f32 %v5197, 1.0
        %v5257 = vlog2.pop %v5256
        %v5258 = vmul.f32 %v5257, 0.6931472
        %v5259 = vmul.f32 -0.5, %v5197
        %v5260 = vadd.f32 %v5259, 1.0
        %v5261 = vmul.f32 %v5260, %v5197
        %v5262 = vand.u32 2147483647, %v5197
        %vm5263 = vcmp.lt.f32.partialorder %v5262, 0.0004427343
        %v5264 = vsel %vm5263, %v5261, %v5258
        %v5265 = vadd.f32 %v5199, 1.0
        %v5266 = vlog2.pop %v5265
        %v5267 = vmul.f32 %v5266, 0.6931472
        %v5268 = vmul.f32 -0.5, %v5199
        %v5269 = vadd.f32 %v5268, 1.0
        %v5270 = vmul.f32 %v5269, %v5199
        %v5271 = vand.u32 2147483647, %v5199
        %vm5272 = vcmp.lt.f32.partialorder %v5271, 0.0004427343
        %v5273 = vsel %vm5272, %v5270, %v5267
        %v5274 = vadd.f32 %v5201, 1.0
        %v5275 = vlog2.pop %v5274
        %v5276 = vmul.f32 %v5275, 0.6931472
        %v5277 = vmul.f32 -0.5, %v5201
        %v5278 = vadd.f32 %v5277, 1.0
        %v5279 = vmul.f32 %v5278, %v5201
        %v5280 = vand.u32 2147483647, %v5201
        %vm5281 = vcmp.lt.f32.partialorder %v5280, 0.0004427343
        %v5282 = vsel %vm5281, %v5279, %v5276
        %v5283 = vadd.f32 %v5203, 1.0
        %v5284 = vlog2.pop %v5283
        %v5285 = vmul.f32 %v5284, 0.6931472
        %v5286 = vmul.f32 -0.5, %v5203
        %v5287 = vadd.f32 %v5286, 1.0
        %v5288 = vmul.f32 %v5287, %v5203
        %v5289 = vand.u32 2147483647, %v5203
        %vm5290 = vcmp.lt.f32.partialorder %v5289, 0.0004427343
        %v5291 = vsel %vm5290, %v5288, %v5285
        %v5292 = vadd.f32 %v5205, 1.0
        %v5293 = vlog2.pop %v5292
        %v5294 = vmul.f32 %v5293, 0.6931472
        %v5295 = vmul.f32 -0.5, %v5205
        %v5296 = vadd.f32 %v5295, 1.0
        %v5297 = vmul.f32 %v5296, %v5205
        %v5298 = vand.u32 2147483647, %v5205
        %vm5299 = vcmp.lt.f32.partialorder %v5298, 0.0004427343
        %v5300 = vsel %vm5299, %v5297, %v5294
        %v5301 = vadd.f32 %v5207, 1.0
        %v5302 = vlog2.pop %v5301
        %v5303 = vmul.f32 %v5302, 0.6931472
        %v5304 = vmul.f32 -0.5, %v5207
        %v5305 = vadd.f32 %v5304, 1.0
        %v5306 = vmul.f32 %v5305, %v5207
        %v5307 = vand.u32 2147483647, %v5207
        %vm5308 = vcmp.lt.f32.partialorder %v5307, 0.0004427343
        %v5309 = vsel %vm5308, %v5306, %v5303
        %v5310 = vadd.f32 %v5209, 1.0
        %v5311 = vlog2.pop %v5310
        %v5312 = vmul.f32 %v5311, 0.6931472
        %v5313 = vmul.f32 -0.5, %v5209
        %v5314 = vadd.f32 %v5313, 1.0
        %v5315 = vmul.f32 %v5314, %v5209
        %v5316 = vand.u32 2147483647, %v5209
        %vm5317 = vcmp.lt.f32.partialorder %v5316, 0.0004427343
        %v5318 = vsel %vm5317, %v5315, %v5312
        %v5319 = vadd.f32 %v5211, 1.0
        %v5320 = vlog2.pop %v5319
        %v5321 = vmul.f32 %v5320, 0.6931472
        %v5322 = vmul.f32 -0.5, %v5211
        %v5323 = vadd.f32 %v5322, 1.0
        %v5324 = vmul.f32 %v5323, %v5211
        %v5325 = vand.u32 2147483647, %v5211
        %vm5326 = vcmp.lt.f32.partialorder %v5325, 0.0004427343
        %v5327 = vsel %vm5326, %v5324, %v5321
        %v5328 = vadd.f32 %v5213, 1.0
        %v5329 = vlog2.pop %v5328
        %v5330 = vmul.f32 %v5329, 0.6931472
        %v5331 = vmul.f32 -0.5, %v5213
        %v5332 = vadd.f32 %v5331, 1.0
        %v5333 = vmul.f32 %v5332, %v5213
        %v5334 = vand.u32 2147483647, %v5213
        %vm5335 = vcmp.lt.f32.partialorder %v5334, 0.0004427343
        %v5336 = vsel %vm5335, %v5333, %v5330
        %v5337 = vadd.f32 %v5215, 1.0
        %v5338 = vlog2.pop %v5337
        %v5339 = vmul.f32 %v5338, 0.6931472
        %v5340 = vmul.f32 -0.5, %v5215
        %v5341 = vadd.f32 %v5340, 1.0
        %v5342 = vmul.f32 %v5341, %v5215
        %v5343 = vand.u32 2147483647, %v5215
        %vm5344 = vcmp.lt.f32.partialorder %v5343, 0.0004427343
        %v5345 = vsel %vm5344, %v5342, %v5339
        %v5346 = vadd.f32 %v5217, 1.0
        %v5347 = vlog2.pop %v5346
        %v5348 = vmul.f32 %v5347, 0.6931472
        %v5349 = vmul.f32 -0.5, %v5217
        %v5350 = vadd.f32 %v5349, 1.0
        %v5351 = vmul.f32 %v5350, %v5217
        %v5352 = vand.u32 2147483647, %v5217
        %vm5353 = vcmp.lt.f32.partialorder %v5352, 0.0004427343
        %v5354 = vsel %vm5353, %v5351, %v5348
        %v5355 = vadd.f32 %v5219, 1.0
        %v5356 = vlog2.pop %v5355
        %v5357 = vmul.f32 %v5356, 0.6931472
        %v5358 = vmul.f32 -0.5, %v5219
        %v5359 = vadd.f32 %v5358, 1.0
        %v5360 = vmul.f32 %v5359, %v5219
        %v5361 = vand.u32 2147483647, %v5219
        %vm5362 = vcmp.lt.f32.partialorder %v5361, 0.0004427343
        %v5363 = vsel %vm5362, %v5360, %v5357
        %v5364 = vsel %vm5156, %v5094, %v5228
        %v5365 = vsel %vm5157, %v5097, %v5237
        %v5366 = vsel %vm5158, %v5102, %v5246
        %v5367 = vsel %vm5159, %v5105, %v5255
        %v5368 = vsel %vm5160, %v5110, %v5264
        %v5369 = vsel %vm5161, %v5113, %v5273
        %v5370 = vsel %vm5162, %v5118, %v5282
        %v5371 = vsel %vm5163, %v5121, %v5291
        %v5372 = vsel %vm5164, %v5126, %v5300
        %v5373 = vsel %vm5165, %v5129, %v5309
        %v5374 = vsel %vm5166, %v5134, %v5318
        %v5375 = vsel %vm5167, %v5137, %v5327
        %v5376 = vsel %vm5168, %v5142, %v5336
        %v5377 = vsel %vm5169, %v5145, %v5345
        %v5378 = vsel %vm5170, %v5150, %v5354
        %v5379 = vsel %vm5171, %v5153, %v5363
        %5380 = vst [vmem:[%s408] sm:$0xff] %v5364
        %5381 = vst [vmem:[%s408 + $0x8] sm:$0xff] %v5365
        %5382 = vst [vmem:[%s408 + $0x10] sm:$0xff] %v5366
        %5383 = vst [vmem:[%s408 + $0x18] sm:$0xff] %v5367
        %5384 = vst [vmem:[%s408 + $0x20] sm:$0xff] %v5368
        %5385 = vst [vmem:[%s408 + $0x28] sm:$0xff] %v5369
        %5386 = vst [vmem:[%s408 + $0x30] sm:$0xff] %v5370
        %5387 = vst [vmem:[%s408 + $0x38] sm:$0xff] %v5371
        %5388 = vst [vmem:[%s408 + $0x40] sm:$0xff] %v5372
        %5389 = vst [vmem:[%s408 + $0x48] sm:$0xff] %v5373
        %5390 = vst [vmem:[%s408 + $0x50] sm:$0xff] %v5374
        %5391 = vst [vmem:[%s408 + $0x58] sm:$0xff] %v5375
        %5392 = vst [vmem:[%s408 + $0x60] sm:$0xff] %v5376
        %5393 = vst [vmem:[%s408 + $0x68] sm:$0xff] %v5377
        %5394 = vst [vmem:[%s408 + $0x70] sm:$0xff] %v5378
        %5395 = vst [vmem:[%s408 + $0x78] sm:$0xff] %v5379
        %s5396 = sand.u32 %s230, 1
        %s5397 = scalar_lea.sflag [#allocation4], %s5396
        %s5398 = sand.u32 %s230, 1
        %s5399 = smul.addr %s5398, 128
        %s5400 = scalar_lea.vmem [#allocation11], %s5399
        // Predicated region
        $region77: #{tpu_custom_call.1} parent=55 // pred_check
          %p5401 = pneg %p240
        $region78: #{tpu_custom_call.1} parent=55 // pred_check_branch
          %5403 = sbr.rel (%p5401) target = $region80
        $region79: #{tpu_custom_call.1} parent=55 // pred_region
          %s5404 = smul.u32 16, %s28
          %s5406 = ssub.s32 2048, 2048
          %5407 = vsyncadd %s5397, %s5406
          %s5408 = smul.addr %s5404, 128
          %s5409 = scalar_lea.hbm %s9, %s5408
          %s5410 = sshll.u32 %s5400, 4
          %s5411 = int_to_ptr.vmem [resolvable:$true] %s5410
          %5416 = dma.vmem_to_hbm [thread:$0]  %s5411, 2048, %s5409, %s5397, 128, 128, 8
        $region80: #{tpu_custom_call.1} parent=55 // pred_fallthru
          _
      $region56: #{tpu_custom_call.1} parent=5 // pred_fallthru
        _
      %p5417 = scmp.le.s32.totalorder 2, %s23
      // Predicated region
      $region81: #{tpu_custom_call.1} parent=5 // pred_check
        %p5418 = pneg %p5417
      $region82: #{tpu_custom_call.1} parent=5 // pred_check_branch
        %5420 = sbr.rel (%p5418) target = $region84
      $region83: #{tpu_custom_call.1} parent=5 // pred_region
        %s5421 = ssub.s32 %s23, 2
        // Predicated region
        $region85: #{tpu_custom_call.1} parent=83 // pred_check
          %p5422 = pneg %p246
        $region86: #{tpu_custom_call.1} parent=83 // pred_check_branch
          %5424 = sbr.rel (%p5422) target = $region88
        $region87: #{tpu_custom_call.1} parent=83 // pred_region
          %s5425 = sand.u32 %s231, 1
          %s5426 = scalar_lea.sflag [#allocation4], %s5425
          %s5427 = sand.u32 %s231, 1
          %s5428 = smul.addr %s5427, 128
          %s5429 = scalar_lea.vmem [#allocation11], %s5428
          %5430 = dma.done %s5426, 2048
        $region88: #{tpu_custom_call.1} parent=83 // pred_fallthru
          _
      $region84: #{tpu_custom_call.1} parent=5 // pred_fallthru
        _
    $region6: #{tpu_custom_call.1} parent=1 // loop_footer
      %s27 = sadd.s32 1, %s23
    $region7: #{tpu_custom_call.1} parent=1 // loop_footer_branch
      %22 = sbr.rel target = $region3
    $region8: #{tpu_custom_call.1} parent=1 // loop_exit
      _
    %5431 = vsyncpa [#allocation3], 1
    %s5432 = scalar_lea.sflag [#allocation3], 1
    %5433 = vsyncpa %s5432, 1
    %5434 = vsyncpa [#allocation6], 1
    %5435 = vsyncpa [#allocation9], 1
    %5436 = vsyncpa [#allocation4], 1
    %s5437 = scalar_lea.sflag [#allocation4], 1
    %5438 = vsyncpa %s5437, 1

</llo_original>
